<compile_context>
chip_gen: v7x
topology: tpu7x:2x2x1
jax: 0.10.0
libtpu: 0.0.40
codegen_flags: <defaults>
</compile_context>

<pallas_src>
import numpy as np
import jax
import jax.numpy as jnp
from jax.experimental import pallas as pl
from jax.experimental.pallas import tpu as pltpu

EPS = 1e-5


# ----------------------------------------------------------------------------
# Fused whole-network Pallas kernel (one image per grid program)
# ----------------------------------------------------------------------------
def _make_resnet_kernel(H, W, num_classes):
    Ho, Wo = H // 2, W // 2

    def conv3x3(x, mask, w_ref, b_ref, width, relu=True, add_bias=True):
        """3x3 'same' conv on a (Cin, M) activation via 9 rolled+masked taps.

        x:     (Cin, M)  f32 activation, M = rows*width flattened spatially
        mask:  (9, M)    f32 0/1 border masks (one row per tap)
        w_ref: (Cout, 9*Cin) bf16 weight matrix with BN scale folded in
        b_ref: (Cout, 1) f32 folded BN bias
        """
        M = x.shape[1]
        taps = []
        for dy in range(3):
            for dx in range(3):
                t = 3 * dy + dx
                # A_tap[m] = x[m + (dy-1)*width + (dx-1)]  (masked to 0 off-image)
                shift = ((1 - dy) * width + (1 - dx)) % M
                r = pltpu.roll(x, shift=shift, axis=1) if shift else x
                taps.append(r * mask[t:t + 1, :])
        patches = jnp.concatenate(taps, axis=0).astype(jnp.bfloat16)   # (9*Cin, M)
        acc = jnp.dot(w_ref[...], patches, preferred_element_type=jnp.float32)
        if add_bias:
            acc = acc + b_ref[...]
        if relu:
            acc = jnp.maximum(acc, 0.0)
        return acc

    def kernel(*refs):
        x_ref, m_hi_ref, m_lo_ref, sel_ref = refs[:4]
        wb = refs[4:-1]
        o_ref = refs[-1]
        Wm = lambda i: wb[2 * i]          # conv i weight matrix ref
        Bv = lambda i: wb[2 * i + 1]      # conv i folded-BN bias ref

        m_hi = m_hi_ref[...]              # (9, H*W)    masks at full resolution
        m_lo = m_lo_ref[...]              # (9, Ho*Wo)  masks at half resolution

        x = x_ref[...]                    # (8, H*W) f32, input channels zero-padded

        # stem: conv3x3 + BN + ReLU
        a = conv3x3(x, m_hi, Wm(0), Bv(0), W)                              # (16, H*W)

        # layer1: two identity BasicBlocks (16 -> 16, stride 1)
        for i in (1, 3):
            resid = a
            a = conv3x3(a, m_hi, Wm(i), Bv(i), W)
            a = conv3x3(a, m_hi, Wm(i + 1), Bv(i + 1), W, relu=False)
            a = jnp.maximum(a + resid, 0.0)

        # layer2 block1: stride-2 BasicBlock (16 -> 32) with 1x1 downsample.
        # The stride-2 conv is computed densely at stride 1, then subsampled with
        # an exact 0/1 selection matmul (per-channel BN bias commutes with it).
        sel = sel_ref[...]                                                 # (H*W, Ho*Wo)
        x_in = a
        full = conv3x3(x_in, m_hi, Wm(5), Bv(5), W, relu=False, add_bias=False)
        a = jnp.dot(full, sel, preferred_element_type=jnp.float32) + Bv(5)[...]
        a = jnp.maximum(a, 0.0)                                            # (32, Ho*Wo)
        a = conv3x3(a, m_lo, Wm(7), Bv(7), Wo, relu=False)
        x_sub = jnp.dot(x_in, sel, preferred_element_type=jnp.float32)     # (16, Ho*Wo)
        ident = jnp.dot(Wm(6)[...], x_sub.astype(jnp.bfloat16),
                        preferred_element_type=jnp.float32) + Bv(6)[...]
        a = jnp.maximum(a + ident, 0.0)

        # layer2 block2: identity BasicBlock (32 -> 32)
        resid = a
        a = conv3x3(a, m_lo, Wm(8), Bv(8), Wo)
        a = conv3x3(a, m_lo, Wm(9), Bv(9), Wo, relu=False)
        a = jnp.maximum(a + resid, 0.0)                                    # (32, Ho*Wo)

        # head: adaptive-avg-pool(1,1) + Linear, fused into the same kernel
        t = jnp.dot(Wm(10)[...], a, preferred_element_type=jnp.float32)    # (nc, Ho*Wo)
        logits = jnp.mean(t, axis=1, keepdims=True) + Bv(10)[...]          # (nc, 1)

        o_ref[...] = jnp.zeros_like(o_ref)                                 # (8, 128) tile
        o_ref[0:num_classes, :] = jnp.broadcast_to(logits, (num_classes, 128))

    return kernel


# ----------------------------------------------------------------------------
# One-time parameter preparation (BN folding, MXU weight layout, constants)
# ----------------------------------------------------------------------------
def _fold_conv_bn(w_oihw, bn, cin_pad=None):
    scale = bn["gamma"] / jnp.sqrt(bn["var"] + EPS)
    bias = bn["beta"] - bn["mean"] * scale
    cout, cin, kh, kw = w_oihw.shape
    if cin_pad is not None and cin_pad > cin:
        w_oihw = jnp.pad(w_oihw, ((0, 0), (0, cin_pad - cin), (0, 0), (0, 0)))
        cin = cin_pad
    # (Cout, Cin, kh, kw) -> (Cout, kh, kw, Cin) -> (Cout, kh*kw*Cin): column index
    # (3*dy+dx)*Cin + c matches the tap order built inside the kernel.
    wmat = jnp.transpose(w_oihw, (0, 2, 3, 1)).reshape(cout, kh * kw * cin)
    wmat = wmat * scale[:, None]
    return wmat.astype(jnp.bfloat16), bias[:, None].astype(jnp.float32)


def _tap_masks(H, W):
    m = np.zeros((9, H * W), np.float32)
    for dy in range(3):
        for dx in range(3):
            t = 3 * dy + dx
            for h in range(H):
                hh = h + dy - 1
                if not (0 <= hh < H):
                    continue
                for w in range(W):
                    if 0 <= w + dx - 1 < W:
                        m[t, h * W + w] = 1.0
    return m


def _subsample_matrix(H, W, stride):
    Ho, Wo = H // stride, W // stride
    s = np.zeros((H * W, Ho * Wo), np.float32)
    for ho in range(Ho):
        for wo in range(Wo):
            s[ho * stride * W + wo * stride, ho * Wo + wo] = 1.0
    return s


def prepare_params(params, H=16, W=16):
    """Fold BN into bf16 (Cout, 9*Cin) weight matrices, build constant tap masks
    and the stride-2 selection matrix.  Done once, outside the per-forward path."""
    wb = []

    def add(w, bn, cin_pad=None):
        wm, b = _fold_conv_bn(w, bn, cin_pad)
        wb.extend([wm, b])

    add(params["conv1"], params["bn1"], cin_pad=8)      # 0: stem
    for blk in params["layer1"]:                        # 1..4
        add(blk["conv1"], blk["bn1"])
        add(blk["conv2"], blk["bn2"])
    b20, b21 = params["layer2"]
    add(b20["conv1"], b20["bn1"])                       # 5: stride-2 conv
    add(b20["ds_conv"], b20["ds_bn"])                   # 6: 1x1 downsample
    add(b20["conv2"], b20["bn2"])                       # 7
    add(b21["conv1"], b21["bn1"])                       # 8
    add(b21["conv2"], b21["bn2"])                       # 9
    wb.append(params["fc_w"].astype(jnp.float32))       # 10: (nc, 32)
    wb.append(params["fc_b"][:, None].astype(jnp.float32))
    return {
        "wb": tuple(wb),
        "mask_hi": jnp.asarray(_tap_masks(H, W)),
        "mask_lo": jnp.asarray(_tap_masks(H // 2, W // 2)),
        "sel": jnp.asarray(_subsample_matrix(H, W, 2)),
    }


# ----------------------------------------------------------------------------
# Forward pass: one pallas_call over a (batch,)-parallel grid
# ----------------------------------------------------------------------------
@jax.jit
def medium_resnet_forward(x_nchw, prep):
    N, Cin, H, W = x_nchw.shape
    assert Cin <= 8 and H % 2 == 0 and W % 2 == 0
    M0 = H * W
    nc = prep["wb"][-2].shape[0]

    # NCHW -> per-image (8, H*W) lane-dense layout, channels zero-padded to 8.
    x = x_nchw.astype(jnp.float32).reshape(N, Cin, M0)
    x = jnp.pad(x, ((0, 0), (0, 8 - Cin), (0, 0))).reshape(N * 8, M0)

    args = (x, prep["mask_hi"], prep["mask_lo"], prep["sel"]) + tuple(prep["wb"])
    in_specs = [pl.BlockSpec((8, M0), lambda n: (n, 0))]          # per-image input
    in_specs += [pl.BlockSpec(a.shape, lambda n: (0, 0)) for a in args[1:]]

    out = pl.pallas_call(
        _make_resnet_kernel(H, W, nc),
        grid=(N,),
        in_specs=in_specs,
        out_specs=pl.BlockSpec((8, 128), lambda n: (n, 0)),       # one padded tile/image
        out_shape=jax.ShapeDtypeStruct((N * 8, 128), jnp.float32),
        compiler_params=pltpu.CompilerParams(
            dimension_semantics=("parallel",)),
    )(*args)
    return out.reshape(N, 8, 128)[:, :nc, 0]                      # (N, num_classes)


# ----------------------------------------------------------------------------
# Deterministic parameter init (synthetic weights, PyTorch shapes)
# ----------------------------------------------------------------------------
def init_conv(key, cout, cin, k):
    return jax.random.normal(key, (cout, cin, k, k), jnp.float32) / np.sqrt(cin * k * k)


def init_bn(key, c):
    k1, k2, k3, k4 = jax.random.split(key, 4)
    return {
        "gamma": jax.random.uniform(k1, (c,), jnp.float32, 0.5, 1.5),
        "beta": 0.1 * jax.random.normal(k2, (c,), jnp.float32),
        "mean": 0.1 * jax.random.normal(k3, (c,), jnp.float32),
        "var": jax.random.uniform(k4, (c,), jnp.float32, 0.5, 1.5),
    }


def init_block(key, cin, cout, downsample):
    ks = jax.random.split(key, 6)
    p = {
        "conv1": init_conv(ks[0], cout, cin, 3), "bn1": init_bn(ks[1], cout),
        "conv2": init_conv(ks[2], cout, cout, 3), "bn2": init_bn(ks[3], cout),
    }
    if downsample:
        p["ds_conv"] = init_conv(ks[4], cout, cin, 1)
        p["ds_bn"] = init_bn(ks[5], cout)
    return p


def init_params(key, num_classes=2):
    ks = jax.random.split(key, 9)
    return {
        "conv1": init_conv(ks[0], 16, 3, 3),
        "bn1": init_bn(ks[1], 16),
        "layer1": [init_block(ks[2], 16, 16, False), init_block(ks[3], 16, 16, False)],
        "layer2": [init_block(ks[4], 16, 32, True), init_block(ks[5], 32, 32, False)],
        "fc_w": jax.random.normal(ks[6], (num_classes, 32), jnp.float32) / np.sqrt(32.0),
        "fc_b": 0.1 * jax.random.normal(ks[7], (num_classes,), jnp.float32),
    }


# ----------------------------------------------------------------------------
# Pure-JAX reference (lax.conv, f32) for a sanity check
# ----------------------------------------------------------------------------
def _ref_conv(x, w_oihw, stride, pad):
    return jax.lax.conv_general_dilated(
        x, jnp.transpose(w_oihw, (2, 3, 1, 0)), (stride, stride),
        ((pad, pad), (pad, pad)), dimension_numbers=("NHWC", "HWIO", "NHWC"))


def _ref_bn(x, bn):
    scale = bn["gamma"] / jnp.sqrt(bn["var"] + EPS)
    bias = bn["beta"] - bn["mean"] * scale
    return x * scale + bias


def _ref_block(x, p, stride):
    out = jnp.maximum(_ref_bn(_ref_conv(x, p["conv1"], stride, 1), p["bn1"]), 0.0)
    out = _ref_bn(_ref_conv(out, p["conv2"], 1, 1), p["bn2"])
    ident = x if "ds_conv" not in p else _ref_bn(_ref_conv(x, p["ds_conv"], stride, 0), p["ds_bn"])
    return jnp.maximum(out + ident, 0.0)


def ref_forward(x_nchw, params):
    x = jnp.transpose(x_nchw, (0, 2, 3, 1)).astype(jnp.float32)
    x = jnp.maximum(_ref_bn(_ref_conv(x, params["conv1"], 1, 1), params["bn1"]), 0.0)
    for bp in params["layer1"]:
        x = _ref_block(x, bp, 1)
    x = _ref_block(x, params["layer2"][0], 2)
    x = _ref_block(x, params["layer2"][1], 1)
    pooled = jnp.mean(x, axis=(1, 2))
    return pooled @ params["fc_w"].T + params["fc_b"]


# ----------------------------------------------------------------------------
if __name__ == "__main__":
    key = jax.random.PRNGKey(0)
    kx, kp = jax.random.split(key)
    # NCHW input matching the PyTorch module: batch=2, channels=3, spatial=16x16
    x = jax.random.normal(kx, (2, 3, 16, 16), jnp.float32)
    params = init_params(kp, num_classes=2)
    prep = prepare_params(params, H=16, W=16)      # one-time weight/const prep

    logits = jax.block_until_ready(medium_resnet_forward(x, prep))
    assert logits.shape == (2, 2) and logits.dtype == jnp.float32

    ref = jax.block_until_ready(ref_forward(x, params))
    # Tolerance accounts for bf16 MXU operands (f32 accumulation) vs. pure-f32 ref.
    np.testing.assert_allclose(np.asarray(logits), np.asarray(ref),
                               rtol=5e-2, atol=5e-2)

    print("KERNEL_OK")
</pallas_src>

<mosaic_0001>
module attributes {stable_mosaic.version = 11 : i64} {
  func.func @kernel(%arg0: i32, %arg1: memref<8x256xf32, #tpu.memory_space<vmem>>, %arg2: memref<9x256xf32, #tpu.memory_space<vmem>>, %arg3: memref<9x64xf32, #tpu.memory_space<vmem>>, %arg4: memref<256x64xf32, #tpu.memory_space<vmem>>, %arg5: memref<16x72xbf16, #tpu.memory_space<vmem>>, %arg6: memref<16x1xf32, #tpu.memory_space<vmem>>, %arg7: memref<16x144xbf16, #tpu.memory_space<vmem>>, %arg8: memref<16x1xf32, #tpu.memory_space<vmem>>, %arg9: memref<16x144xbf16, #tpu.memory_space<vmem>>, %arg10: memref<16x1xf32, #tpu.memory_space<vmem>>, %arg11: memref<16x144xbf16, #tpu.memory_space<vmem>>, %arg12: memref<16x1xf32, #tpu.memory_space<vmem>>, %arg13: memref<16x144xbf16, #tpu.memory_space<vmem>>, %arg14: memref<16x1xf32, #tpu.memory_space<vmem>>, %arg15: memref<32x144xbf16, #tpu.memory_space<vmem>>, %arg16: memref<32x1xf32, #tpu.memory_space<vmem>>, %arg17: memref<32x16xbf16, #tpu.memory_space<vmem>>, %arg18: memref<32x1xf32, #tpu.memory_space<vmem>>, %arg19: memref<32x288xbf16, #tpu.memory_space<vmem>>, %arg20: memref<32x1xf32, #tpu.memory_space<vmem>>, %arg21: memref<32x288xbf16, #tpu.memory_space<vmem>>, %arg22: memref<32x1xf32, #tpu.memory_space<vmem>>, %arg23: memref<32x288xbf16, #tpu.memory_space<vmem>>, %arg24: memref<32x1xf32, #tpu.memory_space<vmem>>, %arg25: memref<2x32xf32, #tpu.memory_space<vmem>>, %arg26: memref<2x1xf32, #tpu.memory_space<vmem>>, %arg27: memref<8x128xf32, #tpu.memory_space<vmem>>) attributes {dimension_semantics = [#tpu.dimension_semantics<parallel>], iteration_bounds = array<i64: 2>, scalar_prefetch = 0 : i64, scratch_operands = 0 : i64, tpu.core_type = #tpu.core_type<tc>, window_params = [{transform_indices = @transform_0, window_bounds = array<i64: 8, 256>}, {pipeline_mode = #tpu.pipeline_mode<synchronous>, transform_indices = @transform_1, window_bounds = array<i64: 9, 256>}, {pipeline_mode = #tpu.pipeline_mode<synchronous>, transform_indices = @transform_2, window_bounds = array<i64: 9, 64>}, {pipeline_mode = #tpu.pipeline_mode<synchronous>, transform_indices = @transform_3, window_bounds = array<i64: 256, 64>}, {pipeline_mode = #tpu.pipeline_mode<synchronous>, transform_indices = @transform_4, window_bounds = array<i64: 16, 72>}, {pipeline_mode = #tpu.pipeline_mode<synchronous>, transform_indices = @transform_5, window_bounds = array<i64: 16, 1>}, {pipeline_mode = #tpu.pipeline_mode<synchronous>, transform_indices = @transform_6, window_bounds = array<i64: 16, 144>}, {pipeline_mode = #tpu.pipeline_mode<synchronous>, transform_indices = @transform_7, window_bounds = array<i64: 16, 1>}, {pipeline_mode = #tpu.pipeline_mode<synchronous>, transform_indices = @transform_8, window_bounds = array<i64: 16, 144>}, {pipeline_mode = #tpu.pipeline_mode<synchronous>, transform_indices = @transform_9, window_bounds = array<i64: 16, 1>}, {pipeline_mode = #tpu.pipeline_mode<synchronous>, transform_indices = @transform_10, window_bounds = array<i64: 16, 144>}, {pipeline_mode = #tpu.pipeline_mode<synchronous>, transform_indices = @transform_11, window_bounds = array<i64: 16, 1>}, {pipeline_mode = #tpu.pipeline_mode<synchronous>, transform_indices = @transform_12, window_bounds = array<i64: 16, 144>}, {pipeline_mode = #tpu.pipeline_mode<synchronous>, transform_indices = @transform_13, window_bounds = array<i64: 16, 1>}, {pipeline_mode = #tpu.pipeline_mode<synchronous>, transform_indices = @transform_14, window_bounds = array<i64: 32, 144>}, {pipeline_mode = #tpu.pipeline_mode<synchronous>, transform_indices = @transform_15, window_bounds = array<i64: 32, 1>}, {pipeline_mode = #tpu.pipeline_mode<synchronous>, transform_indices = @transform_16, window_bounds = array<i64: 32, 16>}, {pipeline_mode = #tpu.pipeline_mode<synchronous>, transform_indices = @transform_17, window_bounds = array<i64: 32, 1>}, {pipeline_mode = #tpu.pipeline_mode<synchronous>, transform_indices = @transform_18, window_bounds = array<i64: 32, 288>}, {pipeline_mode = #tpu.pipeline_mode<synchronous>, transform_indices = @transform_19, window_bounds = array<i64: 32, 1>}, {pipeline_mode = #tpu.pipeline_mode<synchronous>, transform_indices = @transform_20, window_bounds = array<i64: 32, 288>}, {pipeline_mode = #tpu.pipeline_mode<synchronous>, transform_indices = @transform_21, window_bounds = array<i64: 32, 1>}, {pipeline_mode = #tpu.pipeline_mode<synchronous>, transform_indices = @transform_22, window_bounds = array<i64: 32, 288>}, {pipeline_mode = #tpu.pipeline_mode<synchronous>, transform_indices = @transform_23, window_bounds = array<i64: 32, 1>}, {pipeline_mode = #tpu.pipeline_mode<synchronous>, transform_indices = @transform_24, window_bounds = array<i64: 2, 32>}, {pipeline_mode = #tpu.pipeline_mode<synchronous>, transform_indices = @transform_25, window_bounds = array<i64: 2, 1>}, {transform_indices = @transform_26, window_bounds = array<i64: 8, 128>}]} {
    %c0 = arith.constant 0 : index
    %c0_0 = arith.constant 0 : index
    %0 = vector.load %arg2[%c0, %c0_0] : memref<9x256xf32, #tpu.memory_space<vmem>>, vector<9x256xf32>
    %c0_1 = arith.constant 0 : index
    %c0_2 = arith.constant 0 : index
    %1 = vector.load %arg3[%c0_1, %c0_2] : memref<9x64xf32, #tpu.memory_space<vmem>>, vector<9x64xf32>
    %c0_3 = arith.constant 0 : index
    %c0_4 = arith.constant 0 : index
    %2 = vector.load %arg1[%c0_3, %c0_4] : memref<8x256xf32, #tpu.memory_space<vmem>>, vector<8x256xf32>
    %c17_i32 = arith.constant 17 : i32
    %3 = tpu.dynamic_rotate %2 by %c17_i32 dim 1 : vector<8x256xf32>, i32 -> vector<8x256xf32>
    %4 = vector.extract_strided_slice %0 {offsets = [0, 0], sizes = [1, 256], strides = [1, 1]} : vector<9x256xf32> to vector<1x256xf32>
    %5 = vector.broadcast %4 : vector<1x256xf32> to vector<8x256xf32>
    %6 = arith.mulf %3, %5 : vector<8x256xf32>
    %c16_i32 = arith.constant 16 : i32
    %7 = tpu.dynamic_rotate %2 by %c16_i32 dim 1 : vector<8x256xf32>, i32 -> vector<8x256xf32>
    %8 = vector.extract_strided_slice %0 {offsets = [1, 0], sizes = [1, 256], strides = [1, 1]} : vector<9x256xf32> to vector<1x256xf32>
    %9 = vector.broadcast %8 : vector<1x256xf32> to vector<8x256xf32>
    %10 = arith.mulf %7, %9 : vector<8x256xf32>
    %c15_i32 = arith.constant 15 : i32
    %11 = tpu.dynamic_rotate %2 by %c15_i32 dim 1 : vector<8x256xf32>, i32 -> vector<8x256xf32>
    %12 = vector.extract_strided_slice %0 {offsets = [2, 0], sizes = [1, 256], strides = [1, 1]} : vector<9x256xf32> to vector<1x256xf32>
    %13 = vector.broadcast %12 : vector<1x256xf32> to vector<8x256xf32>
    %14 = arith.mulf %11, %13 : vector<8x256xf32>
    %c1_i32 = arith.constant 1 : i32
    %15 = tpu.dynamic_rotate %2 by %c1_i32 dim 1 : vector<8x256xf32>, i32 -> vector<8x256xf32>
    %16 = vector.extract_strided_slice %0 {offsets = [3, 0], sizes = [1, 256], strides = [1, 1]} : vector<9x256xf32> to vector<1x256xf32>
    %17 = vector.broadcast %16 : vector<1x256xf32> to vector<8x256xf32>
    %18 = arith.mulf %15, %17 : vector<8x256xf32>
    %19 = vector.extract_strided_slice %0 {offsets = [4, 0], sizes = [1, 256], strides = [1, 1]} : vector<9x256xf32> to vector<1x256xf32>
    %20 = vector.broadcast %19 : vector<1x256xf32> to vector<8x256xf32>
    %21 = arith.mulf %2, %20 : vector<8x256xf32>
    %c255_i32 = arith.constant 255 : i32
    %22 = tpu.dynamic_rotate %2 by %c255_i32 dim 1 : vector<8x256xf32>, i32 -> vector<8x256xf32>
    %23 = vector.extract_strided_slice %0 {offsets = [5, 0], sizes = [1, 256], strides = [1, 1]} : vector<9x256xf32> to vector<1x256xf32>
    %24 = vector.broadcast %23 : vector<1x256xf32> to vector<8x256xf32>
    %25 = arith.mulf %22, %24 : vector<8x256xf32>
    %c241_i32 = arith.constant 241 : i32
    %26 = tpu.dynamic_rotate %2 by %c241_i32 dim 1 : vector<8x256xf32>, i32 -> vector<8x256xf32>
    %27 = vector.extract_strided_slice %0 {offsets = [6, 0], sizes = [1, 256], strides = [1, 1]} : vector<9x256xf32> to vector<1x256xf32>
    %28 = vector.broadcast %27 : vector<1x256xf32> to vector<8x256xf32>
    %29 = arith.mulf %26, %28 : vector<8x256xf32>
    %c240_i32 = arith.constant 240 : i32
    %30 = tpu.dynamic_rotate %2 by %c240_i32 dim 1 : vector<8x256xf32>, i32 -> vector<8x256xf32>
    %31 = vector.extract_strided_slice %0 {offsets = [7, 0], sizes = [1, 256], strides = [1, 1]} : vector<9x256xf32> to vector<1x256xf32>
    %32 = vector.broadcast %31 : vector<1x256xf32> to vector<8x256xf32>
    %33 = arith.mulf %30, %32 : vector<8x256xf32>
    %c239_i32 = arith.constant 239 : i32
    %34 = tpu.dynamic_rotate %2 by %c239_i32 dim 1 : vector<8x256xf32>, i32 -> vector<8x256xf32>
    %35 = vector.extract_strided_slice %0 {offsets = [8, 0], sizes = [1, 256], strides = [1, 1]} : vector<9x256xf32> to vector<1x256xf32>
    %36 = vector.broadcast %35 : vector<1x256xf32> to vector<8x256xf32>
    %37 = arith.mulf %34, %36 : vector<8x256xf32>
    %38 = tpu.concatenate %6, %10, %14, %18, %21, %25, %29, %33, %37 in 0 : vector<8x256xf32>, vector<8x256xf32>, vector<8x256xf32>, vector<8x256xf32>, vector<8x256xf32>, vector<8x256xf32>, vector<8x256xf32>, vector<8x256xf32>, vector<8x256xf32> -> vector<72x256xf32>
    %39 = arith.truncf %38 : vector<72x256xf32> to vector<72x256xbf16>
    %c0_5 = arith.constant 0 : index
    %c0_6 = arith.constant 0 : index
    %40 = vector.load %arg5[%c0_5, %c0_6] : memref<16x72xbf16, #tpu.memory_space<vmem>>, vector<16x72xbf16>
    %cst = arith.constant dense<0.000000e+00> : vector<16x256xf32>
    %41 = tpu.matmul %40, %39, %cst {dimension_numbers = #tpu.dot_dimension_numbers<[1], [0], [0], [1], [0, 0, 1, 1], [], []>} : vector<16x72xbf16>, vector<72x256xbf16>, vector<16x256xf32> -> vector<16x256xf32>
    %c0_7 = arith.constant 0 : index
    %c0_8 = arith.constant 0 : index
    %42 = vector.load %arg6[%c0_7, %c0_8] : memref<16x1xf32, #tpu.memory_space<vmem>>, vector<16x1xf32>
    %43 = vector.broadcast %42 : vector<16x1xf32> to vector<16x256xf32>
    %44 = arith.addf %41, %43 : vector<16x256xf32>
    %cst_9 = arith.constant 0.000000e+00 : f32
    %45 = vector.broadcast %cst_9 : f32 to vector<16x256xf32>
    %46 = arith.maximumf %44, %45 : vector<16x256xf32>
    %c17_i32_10 = arith.constant 17 : i32
    %47 = tpu.dynamic_rotate %46 by %c17_i32_10 dim 1 : vector<16x256xf32>, i32 -> vector<16x256xf32>
    %48 = vector.extract_strided_slice %0 {offsets = [0, 0], sizes = [1, 256], strides = [1, 1]} : vector<9x256xf32> to vector<1x256xf32>
    %49 = vector.broadcast %48 : vector<1x256xf32> to vector<16x256xf32>
    %50 = arith.mulf %47, %49 : vector<16x256xf32>
    %c16_i32_11 = arith.constant 16 : i32
    %51 = tpu.dynamic_rotate %46 by %c16_i32_11 dim 1 : vector<16x256xf32>, i32 -> vector<16x256xf32>
    %52 = vector.extract_strided_slice %0 {offsets = [1, 0], sizes = [1, 256], strides = [1, 1]} : vector<9x256xf32> to vector<1x256xf32>
    %53 = vector.broadcast %52 : vector<1x256xf32> to vector<16x256xf32>
    %54 = arith.mulf %51, %53 : vector<16x256xf32>
    %c15_i32_12 = arith.constant 15 : i32
    %55 = tpu.dynamic_rotate %46 by %c15_i32_12 dim 1 : vector<16x256xf32>, i32 -> vector<16x256xf32>
    %56 = vector.extract_strided_slice %0 {offsets = [2, 0], sizes = [1, 256], strides = [1, 1]} : vector<9x256xf32> to vector<1x256xf32>
    %57 = vector.broadcast %56 : vector<1x256xf32> to vector<16x256xf32>
    %58 = arith.mulf %55, %57 : vector<16x256xf32>
    %c1_i32_13 = arith.constant 1 : i32
    %59 = tpu.dynamic_rotate %46 by %c1_i32_13 dim 1 : vector<16x256xf32>, i32 -> vector<16x256xf32>
    %60 = vector.extract_strided_slice %0 {offsets = [3, 0], sizes = [1, 256], strides = [1, 1]} : vector<9x256xf32> to vector<1x256xf32>
    %61 = vector.broadcast %60 : vector<1x256xf32> to vector<16x256xf32>
    %62 = arith.mulf %59, %61 : vector<16x256xf32>
    %63 = vector.extract_strided_slice %0 {offsets = [4, 0], sizes = [1, 256], strides = [1, 1]} : vector<9x256xf32> to vector<1x256xf32>
    %64 = vector.broadcast %63 : vector<1x256xf32> to vector<16x256xf32>
    %65 = arith.mulf %46, %64 : vector<16x256xf32>
    %c255_i32_14 = arith.constant 255 : i32
    %66 = tpu.dynamic_rotate %46 by %c255_i32_14 dim 1 : vector<16x256xf32>, i32 -> vector<16x256xf32>
    %67 = vector.extract_strided_slice %0 {offsets = [5, 0], sizes = [1, 256], strides = [1, 1]} : vector<9x256xf32> to vector<1x256xf32>
    %68 = vector.broadcast %67 : vector<1x256xf32> to vector<16x256xf32>
    %69 = arith.mulf %66, %68 : vector<16x256xf32>
    %c241_i32_15 = arith.constant 241 : i32
    %70 = tpu.dynamic_rotate %46 by %c241_i32_15 dim 1 : vector<16x256xf32>, i32 -> vector<16x256xf32>
    %71 = vector.extract_strided_slice %0 {offsets = [6, 0], sizes = [1, 256], strides = [1, 1]} : vector<9x256xf32> to vector<1x256xf32>
    %72 = vector.broadcast %71 : vector<1x256xf32> to vector<16x256xf32>
    %73 = arith.mulf %70, %72 : vector<16x256xf32>
    %c240_i32_16 = arith.constant 240 : i32
    %74 = tpu.dynamic_rotate %46 by %c240_i32_16 dim 1 : vector<16x256xf32>, i32 -> vector<16x256xf32>
    %75 = vector.extract_strided_slice %0 {offsets = [7, 0], sizes = [1, 256], strides = [1, 1]} : vector<9x256xf32> to vector<1x256xf32>
    %76 = vector.broadcast %75 : vector<1x256xf32> to vector<16x256xf32>
    %77 = arith.mulf %74, %76 : vector<16x256xf32>
    %c239_i32_17 = arith.constant 239 : i32
    %78 = tpu.dynamic_rotate %46 by %c239_i32_17 dim 1 : vector<16x256xf32>, i32 -> vector<16x256xf32>
    %79 = vector.extract_strided_slice %0 {offsets = [8, 0], sizes = [1, 256], strides = [1, 1]} : vector<9x256xf32> to vector<1x256xf32>
    %80 = vector.broadcast %79 : vector<1x256xf32> to vector<16x256xf32>
    %81 = arith.mulf %78, %80 : vector<16x256xf32>
    %82 = tpu.concatenate %50, %54, %58, %62, %65, %69, %73, %77, %81 in 0 : vector<16x256xf32>, vector<16x256xf32>, vector<16x256xf32>, vector<16x256xf32>, vector<16x256xf32>, vector<16x256xf32>, vector<16x256xf32>, vector<16x256xf32>, vector<16x256xf32> -> vector<144x256xf32>
    %83 = arith.truncf %82 : vector<144x256xf32> to vector<144x256xbf16>
    %c0_18 = arith.constant 0 : index
    %c0_19 = arith.constant 0 : index
    %84 = vector.load %arg7[%c0_18, %c0_19] : memref<16x144xbf16, #tpu.memory_space<vmem>>, vector<16x144xbf16>
    %cst_20 = arith.constant dense<0.000000e+00> : vector<16x256xf32>
    %85 = tpu.matmul %84, %83, %cst_20 {dimension_numbers = #tpu.dot_dimension_numbers<[1], [0], [0], [1], [0, 0, 1, 1], [], []>} : vector<16x144xbf16>, vector<144x256xbf16>, vector<16x256xf32> -> vector<16x256xf32>
    %c0_21 = arith.constant 0 : index
    %c0_22 = arith.constant 0 : index
    %86 = vector.load %arg8[%c0_21, %c0_22] : memref<16x1xf32, #tpu.memory_space<vmem>>, vector<16x1xf32>
    %87 = vector.broadcast %86 : vector<16x1xf32> to vector<16x256xf32>
    %88 = arith.addf %85, %87 : vector<16x256xf32>
    %cst_23 = arith.constant 0.000000e+00 : f32
    %89 = vector.broadcast %cst_23 : f32 to vector<16x256xf32>
    %90 = arith.maximumf %88, %89 : vector<16x256xf32>
    %c17_i32_24 = arith.constant 17 : i32
    %91 = tpu.dynamic_rotate %90 by %c17_i32_24 dim 1 : vector<16x256xf32>, i32 -> vector<16x256xf32>
    %92 = vector.extract_strided_slice %0 {offsets = [0, 0], sizes = [1, 256], strides = [1, 1]} : vector<9x256xf32> to vector<1x256xf32>
    %93 = vector.broadcast %92 : vector<1x256xf32> to vector<16x256xf32>
    %94 = arith.mulf %91, %93 : vector<16x256xf32>
    %c16_i32_25 = arith.constant 16 : i32
    %95 = tpu.dynamic_rotate %90 by %c16_i32_25 dim 1 : vector<16x256xf32>, i32 -> vector<16x256xf32>
    %96 = vector.extract_strided_slice %0 {offsets = [1, 0], sizes = [1, 256], strides = [1, 1]} : vector<9x256xf32> to vector<1x256xf32>
    %97 = vector.broadcast %96 : vector<1x256xf32> to vector<16x256xf32>
    %98 = arith.mulf %95, %97 : vector<16x256xf32>
    %c15_i32_26 = arith.constant 15 : i32
    %99 = tpu.dynamic_rotate %90 by %c15_i32_26 dim 1 : vector<16x256xf32>, i32 -> vector<16x256xf32>
    %100 = vector.extract_strided_slice %0 {offsets = [2, 0], sizes = [1, 256], strides = [1, 1]} : vector<9x256xf32> to vector<1x256xf32>
    %101 = vector.broadcast %100 : vector<1x256xf32> to vector<16x256xf32>
    %102 = arith.mulf %99, %101 : vector<16x256xf32>
    %c1_i32_27 = arith.constant 1 : i32
    %103 = tpu.dynamic_rotate %90 by %c1_i32_27 dim 1 : vector<16x256xf32>, i32 -> vector<16x256xf32>
    %104 = vector.extract_strided_slice %0 {offsets = [3, 0], sizes = [1, 256], strides = [1, 1]} : vector<9x256xf32> to vector<1x256xf32>
    %105 = vector.broadcast %104 : vector<1x256xf32> to vector<16x256xf32>
    %106 = arith.mulf %103, %105 : vector<16x256xf32>
    %107 = vector.extract_strided_slice %0 {offsets = [4, 0], sizes = [1, 256], strides = [1, 1]} : vector<9x256xf32> to vector<1x256xf32>
    %108 = vector.broadcast %107 : vector<1x256xf32> to vector<16x256xf32>
    %109 = arith.mulf %90, %108 : vector<16x256xf32>
    %c255_i32_28 = arith.constant 255 : i32
    %110 = tpu.dynamic_rotate %90 by %c255_i32_28 dim 1 : vector<16x256xf32>, i32 -> vector<16x256xf32>
    %111 = vector.extract_strided_slice %0 {offsets = [5, 0], sizes = [1, 256], strides = [1, 1]} : vector<9x256xf32> to vector<1x256xf32>
    %112 = vector.broadcast %111 : vector<1x256xf32> to vector<16x256xf32>
    %113 = arith.mulf %110, %112 : vector<16x256xf32>
    %c241_i32_29 = arith.constant 241 : i32
    %114 = tpu.dynamic_rotate %90 by %c241_i32_29 dim 1 : vector<16x256xf32>, i32 -> vector<16x256xf32>
    %115 = vector.extract_strided_slice %0 {offsets = [6, 0], sizes = [1, 256], strides = [1, 1]} : vector<9x256xf32> to vector<1x256xf32>
    %116 = vector.broadcast %115 : vector<1x256xf32> to vector<16x256xf32>
    %117 = arith.mulf %114, %116 : vector<16x256xf32>
    %c240_i32_30 = arith.constant 240 : i32
    %118 = tpu.dynamic_rotate %90 by %c240_i32_30 dim 1 : vector<16x256xf32>, i32 -> vector<16x256xf32>
    %119 = vector.extract_strided_slice %0 {offsets = [7, 0], sizes = [1, 256], strides = [1, 1]} : vector<9x256xf32> to vector<1x256xf32>
    %120 = vector.broadcast %119 : vector<1x256xf32> to vector<16x256xf32>
    %121 = arith.mulf %118, %120 : vector<16x256xf32>
    %c239_i32_31 = arith.constant 239 : i32
    %122 = tpu.dynamic_rotate %90 by %c239_i32_31 dim 1 : vector<16x256xf32>, i32 -> vector<16x256xf32>
    %123 = vector.extract_strided_slice %0 {offsets = [8, 0], sizes = [1, 256], strides = [1, 1]} : vector<9x256xf32> to vector<1x256xf32>
    %124 = vector.broadcast %123 : vector<1x256xf32> to vector<16x256xf32>
    %125 = arith.mulf %122, %124 : vector<16x256xf32>
    %126 = tpu.concatenate %94, %98, %102, %106, %109, %113, %117, %121, %125 in 0 : vector<16x256xf32>, vector<16x256xf32>, vector<16x256xf32>, vector<16x256xf32>, vector<16x256xf32>, vector<16x256xf32>, vector<16x256xf32>, vector<16x256xf32>, vector<16x256xf32> -> vector<144x256xf32>
    %127 = arith.truncf %126 : vector<144x256xf32> to vector<144x256xbf16>
    %c0_32 = arith.constant 0 : index
    %c0_33 = arith.constant 0 : index
    %128 = vector.load %arg9[%c0_32, %c0_33] : memref<16x144xbf16, #tpu.memory_space<vmem>>, vector<16x144xbf16>
    %cst_34 = arith.constant dense<0.000000e+00> : vector<16x256xf32>
    %129 = tpu.matmul %128, %127, %cst_34 {dimension_numbers = #tpu.dot_dimension_numbers<[1], [0], [0], [1], [0, 0, 1, 1], [], []>} : vector<16x144xbf16>, vector<144x256xbf16>, vector<16x256xf32> -> vector<16x256xf32>
    %c0_35 = arith.constant 0 : index
    %c0_36 = arith.constant 0 : index
    %130 = vector.load %arg10[%c0_35, %c0_36] : memref<16x1xf32, #tpu.memory_space<vmem>>, vector<16x1xf32>
    %131 = vector.broadcast %130 : vector<16x1xf32> to vector<16x256xf32>
    %132 = arith.addf %129, %131 : vector<16x256xf32>
    %133 = arith.addf %132, %46 : vector<16x256xf32>
    %cst_37 = arith.constant 0.000000e+00 : f32
    %134 = vector.broadcast %cst_37 : f32 to vector<16x256xf32>
    %135 = arith.maximumf %133, %134 : vector<16x256xf32>
    %c17_i32_38 = arith.constant 17 : i32
    %136 = tpu.dynamic_rotate %135 by %c17_i32_38 dim 1 : vector<16x256xf32>, i32 -> vector<16x256xf32>
    %137 = vector.extract_strided_slice %0 {offsets = [0, 0], sizes = [1, 256], strides = [1, 1]} : vector<9x256xf32> to vector<1x256xf32>
    %138 = vector.broadcast %137 : vector<1x256xf32> to vector<16x256xf32>
    %139 = arith.mulf %136, %138 : vector<16x256xf32>
    %c16_i32_39 = arith.constant 16 : i32
    %140 = tpu.dynamic_rotate %135 by %c16_i32_39 dim 1 : vector<16x256xf32>, i32 -> vector<16x256xf32>
    %141 = vector.extract_strided_slice %0 {offsets = [1, 0], sizes = [1, 256], strides = [1, 1]} : vector<9x256xf32> to vector<1x256xf32>
    %142 = vector.broadcast %141 : vector<1x256xf32> to vector<16x256xf32>
    %143 = arith.mulf %140, %142 : vector<16x256xf32>
    %c15_i32_40 = arith.constant 15 : i32
    %144 = tpu.dynamic_rotate %135 by %c15_i32_40 dim 1 : vector<16x256xf32>, i32 -> vector<16x256xf32>
    %145 = vector.extract_strided_slice %0 {offsets = [2, 0], sizes = [1, 256], strides = [1, 1]} : vector<9x256xf32> to vector<1x256xf32>
    %146 = vector.broadcast %145 : vector<1x256xf32> to vector<16x256xf32>
    %147 = arith.mulf %144, %146 : vector<16x256xf32>
    %c1_i32_41 = arith.constant 1 : i32
    %148 = tpu.dynamic_rotate %135 by %c1_i32_41 dim 1 : vector<16x256xf32>, i32 -> vector<16x256xf32>
    %149 = vector.extract_strided_slice %0 {offsets = [3, 0], sizes = [1, 256], strides = [1, 1]} : vector<9x256xf32> to vector<1x256xf32>
    %150 = vector.broadcast %149 : vector<1x256xf32> to vector<16x256xf32>
    %151 = arith.mulf %148, %150 : vector<16x256xf32>
    %152 = vector.extract_strided_slice %0 {offsets = [4, 0], sizes = [1, 256], strides = [1, 1]} : vector<9x256xf32> to vector<1x256xf32>
    %153 = vector.broadcast %152 : vector<1x256xf32> to vector<16x256xf32>
    %154 = arith.mulf %135, %153 : vector<16x256xf32>
    %c255_i32_42 = arith.constant 255 : i32
    %155 = tpu.dynamic_rotate %135 by %c255_i32_42 dim 1 : vector<16x256xf32>, i32 -> vector<16x256xf32>
    %156 = vector.extract_strided_slice %0 {offsets = [5, 0], sizes = [1, 256], strides = [1, 1]} : vector<9x256xf32> to vector<1x256xf32>
    %157 = vector.broadcast %156 : vector<1x256xf32> to vector<16x256xf32>
    %158 = arith.mulf %155, %157 : vector<16x256xf32>
    %c241_i32_43 = arith.constant 241 : i32
    %159 = tpu.dynamic_rotate %135 by %c241_i32_43 dim 1 : vector<16x256xf32>, i32 -> vector<16x256xf32>
    %160 = vector.extract_strided_slice %0 {offsets = [6, 0], sizes = [1, 256], strides = [1, 1]} : vector<9x256xf32> to vector<1x256xf32>
    %161 = vector.broadcast %160 : vector<1x256xf32> to vector<16x256xf32>
    %162 = arith.mulf %159, %161 : vector<16x256xf32>
    %c240_i32_44 = arith.constant 240 : i32
    %163 = tpu.dynamic_rotate %135 by %c240_i32_44 dim 1 : vector<16x256xf32>, i32 -> vector<16x256xf32>
    %164 = vector.extract_strided_slice %0 {offsets = [7, 0], sizes = [1, 256], strides = [1, 1]} : vector<9x256xf32> to vector<1x256xf32>
    %165 = vector.broadcast %164 : vector<1x256xf32> to vector<16x256xf32>
    %166 = arith.mulf %163, %165 : vector<16x256xf32>
    %c239_i32_45 = arith.constant 239 : i32
    %167 = tpu.dynamic_rotate %135 by %c239_i32_45 dim 1 : vector<16x256xf32>, i32 -> vector<16x256xf32>
    %168 = vector.extract_strided_slice %0 {offsets = [8, 0], sizes = [1, 256], strides = [1, 1]} : vector<9x256xf32> to vector<1x256xf32>
    %169 = vector.broadcast %168 : vector<1x256xf32> to vector<16x256xf32>
    %170 = arith.mulf %167, %169 : vector<16x256xf32>
    %171 = tpu.concatenate %139, %143, %147, %151, %154, %158, %162, %166, %170 in 0 : vector<16x256xf32>, vector<16x256xf32>, vector<16x256xf32>, vector<16x256xf32>, vector<16x256xf32>, vector<16x256xf32>, vector<16x256xf32>, vector<16x256xf32>, vector<16x256xf32> -> vector<144x256xf32>
    %172 = arith.truncf %171 : vector<144x256xf32> to vector<144x256xbf16>
    %c0_46 = arith.constant 0 : index
    %c0_47 = arith.constant 0 : index
    %173 = vector.load %arg11[%c0_46, %c0_47] : memref<16x144xbf16, #tpu.memory_space<vmem>>, vector<16x144xbf16>
    %cst_48 = arith.constant dense<0.000000e+00> : vector<16x256xf32>
    %174 = tpu.matmul %173, %172, %cst_48 {dimension_numbers = #tpu.dot_dimension_numbers<[1], [0], [0], [1], [0, 0, 1, 1], [], []>} : vector<16x144xbf16>, vector<144x256xbf16>, vector<16x256xf32> -> vector<16x256xf32>
    %c0_49 = arith.constant 0 : index
    %c0_50 = arith.constant 0 : index
    %175 = vector.load %arg12[%c0_49, %c0_50] : memref<16x1xf32, #tpu.memory_space<vmem>>, vector<16x1xf32>
    %176 = vector.broadcast %175 : vector<16x1xf32> to vector<16x256xf32>
    %177 = arith.addf %174, %176 : vector<16x256xf32>
    %cst_51 = arith.constant 0.000000e+00 : f32
    %178 = vector.broadcast %cst_51 : f32 to vector<16x256xf32>
    %179 = arith.maximumf %177, %178 : vector<16x256xf32>
    %c17_i32_52 = arith.constant 17 : i32
    %180 = tpu.dynamic_rotate %179 by %c17_i32_52 dim 1 : vector<16x256xf32>, i32 -> vector<16x256xf32>
    %181 = vector.extract_strided_slice %0 {offsets = [0, 0], sizes = [1, 256], strides = [1, 1]} : vector<9x256xf32> to vector<1x256xf32>
    %182 = vector.broadcast %181 : vector<1x256xf32> to vector<16x256xf32>
    %183 = arith.mulf %180, %182 : vector<16x256xf32>
    %c16_i32_53 = arith.constant 16 : i32
    %184 = tpu.dynamic_rotate %179 by %c16_i32_53 dim 1 : vector<16x256xf32>, i32 -> vector<16x256xf32>
    %185 = vector.extract_strided_slice %0 {offsets = [1, 0], sizes = [1, 256], strides = [1, 1]} : vector<9x256xf32> to vector<1x256xf32>
    %186 = vector.broadcast %185 : vector<1x256xf32> to vector<16x256xf32>
    %187 = arith.mulf %184, %186 : vector<16x256xf32>
    %c15_i32_54 = arith.constant 15 : i32
    %188 = tpu.dynamic_rotate %179 by %c15_i32_54 dim 1 : vector<16x256xf32>, i32 -> vector<16x256xf32>
    %189 = vector.extract_strided_slice %0 {offsets = [2, 0], sizes = [1, 256], strides = [1, 1]} : vector<9x256xf32> to vector<1x256xf32>
    %190 = vector.broadcast %189 : vector<1x256xf32> to vector<16x256xf32>
    %191 = arith.mulf %188, %190 : vector<16x256xf32>
    %c1_i32_55 = arith.constant 1 : i32
    %192 = tpu.dynamic_rotate %179 by %c1_i32_55 dim 1 : vector<16x256xf32>, i32 -> vector<16x256xf32>
    %193 = vector.extract_strided_slice %0 {offsets = [3, 0], sizes = [1, 256], strides = [1, 1]} : vector<9x256xf32> to vector<1x256xf32>
    %194 = vector.broadcast %193 : vector<1x256xf32> to vector<16x256xf32>
    %195 = arith.mulf %192, %194 : vector<16x256xf32>
    %196 = vector.extract_strided_slice %0 {offsets = [4, 0], sizes = [1, 256], strides = [1, 1]} : vector<9x256xf32> to vector<1x256xf32>
    %197 = vector.broadcast %196 : vector<1x256xf32> to vector<16x256xf32>
    %198 = arith.mulf %179, %197 : vector<16x256xf32>
    %c255_i32_56 = arith.constant 255 : i32
    %199 = tpu.dynamic_rotate %179 by %c255_i32_56 dim 1 : vector<16x256xf32>, i32 -> vector<16x256xf32>
    %200 = vector.extract_strided_slice %0 {offsets = [5, 0], sizes = [1, 256], strides = [1, 1]} : vector<9x256xf32> to vector<1x256xf32>
    %201 = vector.broadcast %200 : vector<1x256xf32> to vector<16x256xf32>
    %202 = arith.mulf %199, %201 : vector<16x256xf32>
    %c241_i32_57 = arith.constant 241 : i32
    %203 = tpu.dynamic_rotate %179 by %c241_i32_57 dim 1 : vector<16x256xf32>, i32 -> vector<16x256xf32>
    %204 = vector.extract_strided_slice %0 {offsets = [6, 0], sizes = [1, 256], strides = [1, 1]} : vector<9x256xf32> to vector<1x256xf32>
    %205 = vector.broadcast %204 : vector<1x256xf32> to vector<16x256xf32>
    %206 = arith.mulf %203, %205 : vector<16x256xf32>
    %c240_i32_58 = arith.constant 240 : i32
    %207 = tpu.dynamic_rotate %179 by %c240_i32_58 dim 1 : vector<16x256xf32>, i32 -> vector<16x256xf32>
    %208 = vector.extract_strided_slice %0 {offsets = [7, 0], sizes = [1, 256], strides = [1, 1]} : vector<9x256xf32> to vector<1x256xf32>
    %209 = vector.broadcast %208 : vector<1x256xf32> to vector<16x256xf32>
    %210 = arith.mulf %207, %209 : vector<16x256xf32>
    %c239_i32_59 = arith.constant 239 : i32
    %211 = tpu.dynamic_rotate %179 by %c239_i32_59 dim 1 : vector<16x256xf32>, i32 -> vector<16x256xf32>
    %212 = vector.extract_strided_slice %0 {offsets = [8, 0], sizes = [1, 256], strides = [1, 1]} : vector<9x256xf32> to vector<1x256xf32>
    %213 = vector.broadcast %212 : vector<1x256xf32> to vector<16x256xf32>
    %214 = arith.mulf %211, %213 : vector<16x256xf32>
    %215 = tpu.concatenate %183, %187, %191, %195, %198, %202, %206, %210, %214 in 0 : vector<16x256xf32>, vector<16x256xf32>, vector<16x256xf32>, vector<16x256xf32>, vector<16x256xf32>, vector<16x256xf32>, vector<16x256xf32>, vector<16x256xf32>, vector<16x256xf32> -> vector<144x256xf32>
    %216 = arith.truncf %215 : vector<144x256xf32> to vector<144x256xbf16>
    %c0_60 = arith.constant 0 : index
    %c0_61 = arith.constant 0 : index
    %217 = vector.load %arg13[%c0_60, %c0_61] : memref<16x144xbf16, #tpu.memory_space<vmem>>, vector<16x144xbf16>
    %cst_62 = arith.constant dense<0.000000e+00> : vector<16x256xf32>
    %218 = tpu.matmul %217, %216, %cst_62 {dimension_numbers = #tpu.dot_dimension_numbers<[1], [0], [0], [1], [0, 0, 1, 1], [], []>} : vector<16x144xbf16>, vector<144x256xbf16>, vector<16x256xf32> -> vector<16x256xf32>
    %c0_63 = arith.constant 0 : index
    %c0_64 = arith.constant 0 : index
    %219 = vector.load %arg14[%c0_63, %c0_64] : memref<16x1xf32, #tpu.memory_space<vmem>>, vector<16x1xf32>
    %220 = vector.broadcast %219 : vector<16x1xf32> to vector<16x256xf32>
    %221 = arith.addf %218, %220 : vector<16x256xf32>
    %222 = arith.addf %221, %135 : vector<16x256xf32>
    %cst_65 = arith.constant 0.000000e+00 : f32
    %223 = vector.broadcast %cst_65 : f32 to vector<16x256xf32>
    %224 = arith.maximumf %222, %223 : vector<16x256xf32>
    %c0_66 = arith.constant 0 : index
    %c0_67 = arith.constant 0 : index
    %225 = vector.load %arg4[%c0_66, %c0_67] : memref<256x64xf32, #tpu.memory_space<vmem>>, vector<256x64xf32>
    %c17_i32_68 = arith.constant 17 : i32
    %226 = tpu.dynamic_rotate %224 by %c17_i32_68 dim 1 : vector<16x256xf32>, i32 -> vector<16x256xf32>
    %227 = vector.extract_strided_slice %0 {offsets = [0, 0], sizes = [1, 256], strides = [1, 1]} : vector<9x256xf32> to vector<1x256xf32>
    %228 = vector.broadcast %227 : vector<1x256xf32> to vector<16x256xf32>
    %229 = arith.mulf %226, %228 : vector<16x256xf32>
    %c16_i32_69 = arith.constant 16 : i32
    %230 = tpu.dynamic_rotate %224 by %c16_i32_69 dim 1 : vector<16x256xf32>, i32 -> vector<16x256xf32>
    %231 = vector.extract_strided_slice %0 {offsets = [1, 0], sizes = [1, 256], strides = [1, 1]} : vector<9x256xf32> to vector<1x256xf32>
    %232 = vector.broadcast %231 : vector<1x256xf32> to vector<16x256xf32>
    %233 = arith.mulf %230, %232 : vector<16x256xf32>
    %c15_i32_70 = arith.constant 15 : i32
    %234 = tpu.dynamic_rotate %224 by %c15_i32_70 dim 1 : vector<16x256xf32>, i32 -> vector<16x256xf32>
    %235 = vector.extract_strided_slice %0 {offsets = [2, 0], sizes = [1, 256], strides = [1, 1]} : vector<9x256xf32> to vector<1x256xf32>
    %236 = vector.broadcast %235 : vector<1x256xf32> to vector<16x256xf32>
    %237 = arith.mulf %234, %236 : vector<16x256xf32>
    %c1_i32_71 = arith.constant 1 : i32
    %238 = tpu.dynamic_rotate %224 by %c1_i32_71 dim 1 : vector<16x256xf32>, i32 -> vector<16x256xf32>
    %239 = vector.extract_strided_slice %0 {offsets = [3, 0], sizes = [1, 256], strides = [1, 1]} : vector<9x256xf32> to vector<1x256xf32>
    %240 = vector.broadcast %239 : vector<1x256xf32> to vector<16x256xf32>
    %241 = arith.mulf %238, %240 : vector<16x256xf32>
    %242 = vector.extract_strided_slice %0 {offsets = [4, 0], sizes = [1, 256], strides = [1, 1]} : vector<9x256xf32> to vector<1x256xf32>
    %243 = vector.broadcast %242 : vector<1x256xf32> to vector<16x256xf32>
    %244 = arith.mulf %224, %243 : vector<16x256xf32>
    %c255_i32_72 = arith.constant 255 : i32
    %245 = tpu.dynamic_rotate %224 by %c255_i32_72 dim 1 : vector<16x256xf32>, i32 -> vector<16x256xf32>
    %246 = vector.extract_strided_slice %0 {offsets = [5, 0], sizes = [1, 256], strides = [1, 1]} : vector<9x256xf32> to vector<1x256xf32>
    %247 = vector.broadcast %246 : vector<1x256xf32> to vector<16x256xf32>
    %248 = arith.mulf %245, %247 : vector<16x256xf32>
    %c241_i32_73 = arith.constant 241 : i32
    %249 = tpu.dynamic_rotate %224 by %c241_i32_73 dim 1 : vector<16x256xf32>, i32 -> vector<16x256xf32>
    %250 = vector.extract_strided_slice %0 {offsets = [6, 0], sizes = [1, 256], strides = [1, 1]} : vector<9x256xf32> to vector<1x256xf32>
    %251 = vector.broadcast %250 : vector<1x256xf32> to vector<16x256xf32>
    %252 = arith.mulf %249, %251 : vector<16x256xf32>
    %c240_i32_74 = arith.constant 240 : i32
    %253 = tpu.dynamic_rotate %224 by %c240_i32_74 dim 1 : vector<16x256xf32>, i32 -> vector<16x256xf32>
    %254 = vector.extract_strided_slice %0 {offsets = [7, 0], sizes = [1, 256], strides = [1, 1]} : vector<9x256xf32> to vector<1x256xf32>
    %255 = vector.broadcast %254 : vector<1x256xf32> to vector<16x256xf32>
    %256 = arith.mulf %253, %255 : vector<16x256xf32>
    %c239_i32_75 = arith.constant 239 : i32
    %257 = tpu.dynamic_rotate %224 by %c239_i32_75 dim 1 : vector<16x256xf32>, i32 -> vector<16x256xf32>
    %258 = vector.extract_strided_slice %0 {offsets = [8, 0], sizes = [1, 256], strides = [1, 1]} : vector<9x256xf32> to vector<1x256xf32>
    %259 = vector.broadcast %258 : vector<1x256xf32> to vector<16x256xf32>
    %260 = arith.mulf %257, %259 : vector<16x256xf32>
    %261 = tpu.concatenate %229, %233, %237, %241, %244, %248, %252, %256, %260 in 0 : vector<16x256xf32>, vector<16x256xf32>, vector<16x256xf32>, vector<16x256xf32>, vector<16x256xf32>, vector<16x256xf32>, vector<16x256xf32>, vector<16x256xf32>, vector<16x256xf32> -> vector<144x256xf32>
    %262 = arith.truncf %261 : vector<144x256xf32> to vector<144x256xbf16>
    %c0_76 = arith.constant 0 : index
    %c0_77 = arith.constant 0 : index
    %263 = vector.load %arg15[%c0_76, %c0_77] : memref<32x144xbf16, #tpu.memory_space<vmem>>, vector<32x144xbf16>
    %cst_78 = arith.constant dense<0.000000e+00> : vector<32x256xf32>
    %264 = tpu.matmul %263, %262, %cst_78 {dimension_numbers = #tpu.dot_dimension_numbers<[1], [0], [0], [1], [0, 0, 1, 1], [], []>} : vector<32x144xbf16>, vector<144x256xbf16>, vector<32x256xf32> -> vector<32x256xf32>
    %cst_79 = arith.constant dense<0.000000e+00> : vector<32x64xf32>
    %265 = tpu.matmul %264, %225, %cst_79 {dimension_numbers = #tpu.dot_dimension_numbers<[1], [0], [0], [1], [0, 0, 1, 1], [], []>} : vector<32x256xf32>, vector<256x64xf32>, vector<32x64xf32> -> vector<32x64xf32>
    %c0_80 = arith.constant 0 : index
    %c0_81 = arith.constant 0 : index
    %266 = vector.load %arg16[%c0_80, %c0_81] : memref<32x1xf32, #tpu.memory_space<vmem>>, vector<32x1xf32>
    %267 = vector.broadcast %266 : vector<32x1xf32> to vector<32x64xf32>
    %268 = arith.addf %265, %267 : vector<32x64xf32>
    %cst_82 = arith.constant 0.000000e+00 : f32
    %269 = vector.broadcast %cst_82 : f32 to vector<32x64xf32>
    %270 = arith.maximumf %268, %269 : vector<32x64xf32>
    %c9_i32 = arith.constant 9 : i32
    %271 = tpu.dynamic_rotate %270 by %c9_i32 dim 1 : vector<32x64xf32>, i32 -> vector<32x64xf32>
    %272 = vector.extract_strided_slice %1 {offsets = [0, 0], sizes = [1, 64], strides = [1, 1]} : vector<9x64xf32> to vector<1x64xf32>
    %273 = vector.broadcast %272 : vector<1x64xf32> to vector<32x64xf32>
    %274 = arith.mulf %271, %273 : vector<32x64xf32>
    %c8_i32 = arith.constant 8 : i32
    %275 = tpu.dynamic_rotate %270 by %c8_i32 dim 1 : vector<32x64xf32>, i32 -> vector<32x64xf32>
    %276 = vector.extract_strided_slice %1 {offsets = [1, 0], sizes = [1, 64], strides = [1, 1]} : vector<9x64xf32> to vector<1x64xf32>
    %277 = vector.broadcast %276 : vector<1x64xf32> to vector<32x64xf32>
    %278 = arith.mulf %275, %277 : vector<32x64xf32>
    %c7_i32 = arith.constant 7 : i32
    %279 = tpu.dynamic_rotate %270 by %c7_i32 dim 1 : vector<32x64xf32>, i32 -> vector<32x64xf32>
    %280 = vector.extract_strided_slice %1 {offsets = [2, 0], sizes = [1, 64], strides = [1, 1]} : vector<9x64xf32> to vector<1x64xf32>
    %281 = vector.broadcast %280 : vector<1x64xf32> to vector<32x64xf32>
    %282 = arith.mulf %279, %281 : vector<32x64xf32>
    %c1_i32_83 = arith.constant 1 : i32
    %283 = tpu.dynamic_rotate %270 by %c1_i32_83 dim 1 : vector<32x64xf32>, i32 -> vector<32x64xf32>
    %284 = vector.extract_strided_slice %1 {offsets = [3, 0], sizes = [1, 64], strides = [1, 1]} : vector<9x64xf32> to vector<1x64xf32>
    %285 = vector.broadcast %284 : vector<1x64xf32> to vector<32x64xf32>
    %286 = arith.mulf %283, %285 : vector<32x64xf32>
    %287 = vector.extract_strided_slice %1 {offsets = [4, 0], sizes = [1, 64], strides = [1, 1]} : vector<9x64xf32> to vector<1x64xf32>
    %288 = vector.broadcast %287 : vector<1x64xf32> to vector<32x64xf32>
    %289 = arith.mulf %270, %288 : vector<32x64xf32>
    %c63_i32 = arith.constant 63 : i32
    %290 = tpu.dynamic_rotate %270 by %c63_i32 dim 1 : vector<32x64xf32>, i32 -> vector<32x64xf32>
    %291 = vector.extract_strided_slice %1 {offsets = [5, 0], sizes = [1, 64], strides = [1, 1]} : vector<9x64xf32> to vector<1x64xf32>
    %292 = vector.broadcast %291 : vector<1x64xf32> to vector<32x64xf32>
    %293 = arith.mulf %290, %292 : vector<32x64xf32>
    %c57_i32 = arith.constant 57 : i32
    %294 = tpu.dynamic_rotate %270 by %c57_i32 dim 1 : vector<32x64xf32>, i32 -> vector<32x64xf32>
    %295 = vector.extract_strided_slice %1 {offsets = [6, 0], sizes = [1, 64], strides = [1, 1]} : vector<9x64xf32> to vector<1x64xf32>
    %296 = vector.broadcast %295 : vector<1x64xf32> to vector<32x64xf32>
    %297 = arith.mulf %294, %296 : vector<32x64xf32>
    %c56_i32 = arith.constant 56 : i32
    %298 = tpu.dynamic_rotate %270 by %c56_i32 dim 1 : vector<32x64xf32>, i32 -> vector<32x64xf32>
    %299 = vector.extract_strided_slice %1 {offsets = [7, 0], sizes = [1, 64], strides = [1, 1]} : vector<9x64xf32> to vector<1x64xf32>
    %300 = vector.broadcast %299 : vector<1x64xf32> to vector<32x64xf32>
    %301 = arith.mulf %298, %300 : vector<32x64xf32>
    %c55_i32 = arith.constant 55 : i32
    %302 = tpu.dynamic_rotate %270 by %c55_i32 dim 1 : vector<32x64xf32>, i32 -> vector<32x64xf32>
    %303 = vector.extract_strided_slice %1 {offsets = [8, 0], sizes = [1, 64], strides = [1, 1]} : vector<9x64xf32> to vector<1x64xf32>
    %304 = vector.broadcast %303 : vector<1x64xf32> to vector<32x64xf32>
    %305 = arith.mulf %302, %304 : vector<32x64xf32>
    %306 = tpu.concatenate %274, %278, %282, %286, %289, %293, %297, %301, %305 in 0 : vector<32x64xf32>, vector<32x64xf32>, vector<32x64xf32>, vector<32x64xf32>, vector<32x64xf32>, vector<32x64xf32>, vector<32x64xf32>, vector<32x64xf32>, vector<32x64xf32> -> vector<288x64xf32>
    %307 = arith.truncf %306 : vector<288x64xf32> to vector<288x64xbf16>
    %c0_84 = arith.constant 0 : index
    %c0_85 = arith.constant 0 : index
    %308 = vector.load %arg19[%c0_84, %c0_85] : memref<32x288xbf16, #tpu.memory_space<vmem>>, vector<32x288xbf16>
    %cst_86 = arith.constant dense<0.000000e+00> : vector<32x64xf32>
    %309 = tpu.matmul %308, %307, %cst_86 {dimension_numbers = #tpu.dot_dimension_numbers<[1], [0], [0], [1], [0, 0, 1, 1], [], []>} : vector<32x288xbf16>, vector<288x64xbf16>, vector<32x64xf32> -> vector<32x64xf32>
    %c0_87 = arith.constant 0 : index
    %c0_88 = arith.constant 0 : index
    %310 = vector.load %arg20[%c0_87, %c0_88] : memref<32x1xf32, #tpu.memory_space<vmem>>, vector<32x1xf32>
    %311 = vector.broadcast %310 : vector<32x1xf32> to vector<32x64xf32>
    %312 = arith.addf %309, %311 : vector<32x64xf32>
    %cst_89 = arith.constant dense<0.000000e+00> : vector<16x64xf32>
    %313 = tpu.matmul %224, %225, %cst_89 {dimension_numbers = #tpu.dot_dimension_numbers<[1], [0], [0], [1], [0, 0, 1, 1], [], []>} : vector<16x256xf32>, vector<256x64xf32>, vector<16x64xf32> -> vector<16x64xf32>
    %c0_90 = arith.constant 0 : index
    %c0_91 = arith.constant 0 : index
    %314 = vector.load %arg17[%c0_90, %c0_91] : memref<32x16xbf16, #tpu.memory_space<vmem>>, vector<32x16xbf16>
    %315 = arith.truncf %313 : vector<16x64xf32> to vector<16x64xbf16>
    %cst_92 = arith.constant dense<0.000000e+00> : vector<32x64xf32>
    %316 = tpu.matmul %314, %315, %cst_92 {dimension_numbers = #tpu.dot_dimension_numbers<[1], [0], [0], [1], [0, 0, 1, 1], [], []>} : vector<32x16xbf16>, vector<16x64xbf16>, vector<32x64xf32> -> vector<32x64xf32>
    %c0_93 = arith.constant 0 : index
    %c0_94 = arith.constant 0 : index
    %317 = vector.load %arg18[%c0_93, %c0_94] : memref<32x1xf32, #tpu.memory_space<vmem>>, vector<32x1xf32>
    %318 = vector.broadcast %317 : vector<32x1xf32> to vector<32x64xf32>
    %319 = arith.addf %316, %318 : vector<32x64xf32>
    %320 = arith.addf %312, %319 : vector<32x64xf32>
    %cst_95 = arith.constant 0.000000e+00 : f32
    %321 = vector.broadcast %cst_95 : f32 to vector<32x64xf32>
    %322 = arith.maximumf %320, %321 : vector<32x64xf32>
    %c9_i32_96 = arith.constant 9 : i32
    %323 = tpu.dynamic_rotate %322 by %c9_i32_96 dim 1 : vector<32x64xf32>, i32 -> vector<32x64xf32>
    %324 = vector.extract_strided_slice %1 {offsets = [0, 0], sizes = [1, 64], strides = [1, 1]} : vector<9x64xf32> to vector<1x64xf32>
    %325 = vector.broadcast %324 : vector<1x64xf32> to vector<32x64xf32>
    %326 = arith.mulf %323, %325 : vector<32x64xf32>
    %c8_i32_97 = arith.constant 8 : i32
    %327 = tpu.dynamic_rotate %322 by %c8_i32_97 dim 1 : vector<32x64xf32>, i32 -> vector<32x64xf32>
    %328 = vector.extract_strided_slice %1 {offsets = [1, 0], sizes = [1, 64], strides = [1, 1]} : vector<9x64xf32> to vector<1x64xf32>
    %329 = vector.broadcast %328 : vector<1x64xf32> to vector<32x64xf32>
    %330 = arith.mulf %327, %329 : vector<32x64xf32>
    %c7_i32_98 = arith.constant 7 : i32
    %331 = tpu.dynamic_rotate %322 by %c7_i32_98 dim 1 : vector<32x64xf32>, i32 -> vector<32x64xf32>
    %332 = vector.extract_strided_slice %1 {offsets = [2, 0], sizes = [1, 64], strides = [1, 1]} : vector<9x64xf32> to vector<1x64xf32>
    %333 = vector.broadcast %332 : vector<1x64xf32> to vector<32x64xf32>
    %334 = arith.mulf %331, %333 : vector<32x64xf32>
    %c1_i32_99 = arith.constant 1 : i32
    %335 = tpu.dynamic_rotate %322 by %c1_i32_99 dim 1 : vector<32x64xf32>, i32 -> vector<32x64xf32>
    %336 = vector.extract_strided_slice %1 {offsets = [3, 0], sizes = [1, 64], strides = [1, 1]} : vector<9x64xf32> to vector<1x64xf32>
    %337 = vector.broadcast %336 : vector<1x64xf32> to vector<32x64xf32>
    %338 = arith.mulf %335, %337 : vector<32x64xf32>
    %339 = vector.extract_strided_slice %1 {offsets = [4, 0], sizes = [1, 64], strides = [1, 1]} : vector<9x64xf32> to vector<1x64xf32>
    %340 = vector.broadcast %339 : vector<1x64xf32> to vector<32x64xf32>
    %341 = arith.mulf %322, %340 : vector<32x64xf32>
    %c63_i32_100 = arith.constant 63 : i32
    %342 = tpu.dynamic_rotate %322 by %c63_i32_100 dim 1 : vector<32x64xf32>, i32 -> vector<32x64xf32>
    %343 = vector.extract_strided_slice %1 {offsets = [5, 0], sizes = [1, 64], strides = [1, 1]} : vector<9x64xf32> to vector<1x64xf32>
    %344 = vector.broadcast %343 : vector<1x64xf32> to vector<32x64xf32>
    %345 = arith.mulf %342, %344 : vector<32x64xf32>
    %c57_i32_101 = arith.constant 57 : i32
    %346 = tpu.dynamic_rotate %322 by %c57_i32_101 dim 1 : vector<32x64xf32>, i32 -> vector<32x64xf32>
    %347 = vector.extract_strided_slice %1 {offsets = [6, 0], sizes = [1, 64], strides = [1, 1]} : vector<9x64xf32> to vector<1x64xf32>
    %348 = vector.broadcast %347 : vector<1x64xf32> to vector<32x64xf32>
    %349 = arith.mulf %346, %348 : vector<32x64xf32>
    %c56_i32_102 = arith.constant 56 : i32
    %350 = tpu.dynamic_rotate %322 by %c56_i32_102 dim 1 : vector<32x64xf32>, i32 -> vector<32x64xf32>
    %351 = vector.extract_strided_slice %1 {offsets = [7, 0], sizes = [1, 64], strides = [1, 1]} : vector<9x64xf32> to vector<1x64xf32>
    %352 = vector.broadcast %351 : vector<1x64xf32> to vector<32x64xf32>
    %353 = arith.mulf %350, %352 : vector<32x64xf32>
    %c55_i32_103 = arith.constant 55 : i32
    %354 = tpu.dynamic_rotate %322 by %c55_i32_103 dim 1 : vector<32x64xf32>, i32 -> vector<32x64xf32>
    %355 = vector.extract_strided_slice %1 {offsets = [8, 0], sizes = [1, 64], strides = [1, 1]} : vector<9x64xf32> to vector<1x64xf32>
    %356 = vector.broadcast %355 : vector<1x64xf32> to vector<32x64xf32>
    %357 = arith.mulf %354, %356 : vector<32x64xf32>
    %358 = tpu.concatenate %326, %330, %334, %338, %341, %345, %349, %353, %357 in 0 : vector<32x64xf32>, vector<32x64xf32>, vector<32x64xf32>, vector<32x64xf32>, vector<32x64xf32>, vector<32x64xf32>, vector<32x64xf32>, vector<32x64xf32>, vector<32x64xf32> -> vector<288x64xf32>
    %359 = arith.truncf %358 : vector<288x64xf32> to vector<288x64xbf16>
    %c0_104 = arith.constant 0 : index
    %c0_105 = arith.constant 0 : index
    %360 = vector.load %arg21[%c0_104, %c0_105] : memref<32x288xbf16, #tpu.memory_space<vmem>>, vector<32x288xbf16>
    %cst_106 = arith.constant dense<0.000000e+00> : vector<32x64xf32>
    %361 = tpu.matmul %360, %359, %cst_106 {dimension_numbers = #tpu.dot_dimension_numbers<[1], [0], [0], [1], [0, 0, 1, 1], [], []>} : vector<32x288xbf16>, vector<288x64xbf16>, vector<32x64xf32> -> vector<32x64xf32>
    %c0_107 = arith.constant 0 : index
    %c0_108 = arith.constant 0 : index
    %362 = vector.load %arg22[%c0_107, %c0_108] : memref<32x1xf32, #tpu.memory_space<vmem>>, vector<32x1xf32>
    %363 = vector.broadcast %362 : vector<32x1xf32> to vector<32x64xf32>
    %364 = arith.addf %361, %363 : vector<32x64xf32>
    %cst_109 = arith.constant 0.000000e+00 : f32
    %365 = vector.broadcast %cst_109 : f32 to vector<32x64xf32>
    %366 = arith.maximumf %364, %365 : vector<32x64xf32>
    %c9_i32_110 = arith.constant 9 : i32
    %367 = tpu.dynamic_rotate %366 by %c9_i32_110 dim 1 : vector<32x64xf32>, i32 -> vector<32x64xf32>
    %368 = vector.extract_strided_slice %1 {offsets = [0, 0], sizes = [1, 64], strides = [1, 1]} : vector<9x64xf32> to vector<1x64xf32>
    %369 = vector.broadcast %368 : vector<1x64xf32> to vector<32x64xf32>
    %370 = arith.mulf %367, %369 : vector<32x64xf32>
    %c8_i32_111 = arith.constant 8 : i32
    %371 = tpu.dynamic_rotate %366 by %c8_i32_111 dim 1 : vector<32x64xf32>, i32 -> vector<32x64xf32>
    %372 = vector.extract_strided_slice %1 {offsets = [1, 0], sizes = [1, 64], strides = [1, 1]} : vector<9x64xf32> to vector<1x64xf32>
    %373 = vector.broadcast %372 : vector<1x64xf32> to vector<32x64xf32>
    %374 = arith.mulf %371, %373 : vector<32x64xf32>
    %c7_i32_112 = arith.constant 7 : i32
    %375 = tpu.dynamic_rotate %366 by %c7_i32_112 dim 1 : vector<32x64xf32>, i32 -> vector<32x64xf32>
    %376 = vector.extract_strided_slice %1 {offsets = [2, 0], sizes = [1, 64], strides = [1, 1]} : vector<9x64xf32> to vector<1x64xf32>
    %377 = vector.broadcast %376 : vector<1x64xf32> to vector<32x64xf32>
    %378 = arith.mulf %375, %377 : vector<32x64xf32>
    %c1_i32_113 = arith.constant 1 : i32
    %379 = tpu.dynamic_rotate %366 by %c1_i32_113 dim 1 : vector<32x64xf32>, i32 -> vector<32x64xf32>
    %380 = vector.extract_strided_slice %1 {offsets = [3, 0], sizes = [1, 64], strides = [1, 1]} : vector<9x64xf32> to vector<1x64xf32>
    %381 = vector.broadcast %380 : vector<1x64xf32> to vector<32x64xf32>
    %382 = arith.mulf %379, %381 : vector<32x64xf32>
    %383 = vector.extract_strided_slice %1 {offsets = [4, 0], sizes = [1, 64], strides = [1, 1]} : vector<9x64xf32> to vector<1x64xf32>
    %384 = vector.broadcast %383 : vector<1x64xf32> to vector<32x64xf32>
    %385 = arith.mulf %366, %384 : vector<32x64xf32>
    %c63_i32_114 = arith.constant 63 : i32
    %386 = tpu.dynamic_rotate %366 by %c63_i32_114 dim 1 : vector<32x64xf32>, i32 -> vector<32x64xf32>
    %387 = vector.extract_strided_slice %1 {offsets = [5, 0], sizes = [1, 64], strides = [1, 1]} : vector<9x64xf32> to vector<1x64xf32>
    %388 = vector.broadcast %387 : vector<1x64xf32> to vector<32x64xf32>
    %389 = arith.mulf %386, %388 : vector<32x64xf32>
    %c57_i32_115 = arith.constant 57 : i32
    %390 = tpu.dynamic_rotate %366 by %c57_i32_115 dim 1 : vector<32x64xf32>, i32 -> vector<32x64xf32>
    %391 = vector.extract_strided_slice %1 {offsets = [6, 0], sizes = [1, 64], strides = [1, 1]} : vector<9x64xf32> to vector<1x64xf32>
    %392 = vector.broadcast %391 : vector<1x64xf32> to vector<32x64xf32>
    %393 = arith.mulf %390, %392 : vector<32x64xf32>
    %c56_i32_116 = arith.constant 56 : i32
    %394 = tpu.dynamic_rotate %366 by %c56_i32_116 dim 1 : vector<32x64xf32>, i32 -> vector<32x64xf32>
    %395 = vector.extract_strided_slice %1 {offsets = [7, 0], sizes = [1, 64], strides = [1, 1]} : vector<9x64xf32> to vector<1x64xf32>
    %396 = vector.broadcast %395 : vector<1x64xf32> to vector<32x64xf32>
    %397 = arith.mulf %394, %396 : vector<32x64xf32>
    %c55_i32_117 = arith.constant 55 : i32
    %398 = tpu.dynamic_rotate %366 by %c55_i32_117 dim 1 : vector<32x64xf32>, i32 -> vector<32x64xf32>
    %399 = vector.extract_strided_slice %1 {offsets = [8, 0], sizes = [1, 64], strides = [1, 1]} : vector<9x64xf32> to vector<1x64xf32>
    %400 = vector.broadcast %399 : vector<1x64xf32> to vector<32x64xf32>
    %401 = arith.mulf %398, %400 : vector<32x64xf32>
    %402 = tpu.concatenate %370, %374, %378, %382, %385, %389, %393, %397, %401 in 0 : vector<32x64xf32>, vector<32x64xf32>, vector<32x64xf32>, vector<32x64xf32>, vector<32x64xf32>, vector<32x64xf32>, vector<32x64xf32>, vector<32x64xf32>, vector<32x64xf32> -> vector<288x64xf32>
    %403 = arith.truncf %402 : vector<288x64xf32> to vector<288x64xbf16>
    %c0_118 = arith.constant 0 : index
    %c0_119 = arith.constant 0 : index
    %404 = vector.load %arg23[%c0_118, %c0_119] : memref<32x288xbf16, #tpu.memory_space<vmem>>, vector<32x288xbf16>
    %cst_120 = arith.constant dense<0.000000e+00> : vector<32x64xf32>
    %405 = tpu.matmul %404, %403, %cst_120 {dimension_numbers = #tpu.dot_dimension_numbers<[1], [0], [0], [1], [0, 0, 1, 1], [], []>} : vector<32x288xbf16>, vector<288x64xbf16>, vector<32x64xf32> -> vector<32x64xf32>
    %c0_121 = arith.constant 0 : index
    %c0_122 = arith.constant 0 : index
    %406 = vector.load %arg24[%c0_121, %c0_122] : memref<32x1xf32, #tpu.memory_space<vmem>>, vector<32x1xf32>
    %407 = vector.broadcast %406 : vector<32x1xf32> to vector<32x64xf32>
    %408 = arith.addf %405, %407 : vector<32x64xf32>
    %409 = arith.addf %408, %322 : vector<32x64xf32>
    %cst_123 = arith.constant 0.000000e+00 : f32
    %410 = vector.broadcast %cst_123 : f32 to vector<32x64xf32>
    %411 = arith.maximumf %409, %410 : vector<32x64xf32>
    %c0_124 = arith.constant 0 : index
    %c0_125 = arith.constant 0 : index
    %412 = vector.load %arg25[%c0_124, %c0_125] : memref<2x32xf32, #tpu.memory_space<vmem>>, vector<2x32xf32>
    %cst_126 = arith.constant dense<0.000000e+00> : vector<2x64xf32>
    %413 = tpu.matmul %412, %411, %cst_126 {dimension_numbers = #tpu.dot_dimension_numbers<[1], [0], [0], [1], [0, 0, 1, 1], [], []>} : vector<2x32xf32>, vector<32x64xf32>, vector<2x64xf32> -> vector<2x64xf32>
    %cst_127 = arith.constant dense<0.000000e+00> : vector<2xf32>
    %414 = vector.multi_reduction <add>, %413, %cst_127 [1] : vector<2x64xf32> to vector<2xf32>
    %415 = vector.shape_cast %414 : vector<2xf32> to vector<2x1xf32>
    %cst_128 = arith.constant 6.400000e+01 : f32
    %416 = vector.broadcast %cst_128 : f32 to vector<2x1xf32>
    %417 = arith.divf %415, %416 : vector<2x1xf32>
    %c0_129 = arith.constant 0 : index
    %c0_130 = arith.constant 0 : index
    %418 = vector.load %arg26[%c0_129, %c0_130] : memref<2x1xf32, #tpu.memory_space<vmem>>, vector<2x1xf32>
    %419 = arith.addf %417, %418 : vector<2x1xf32>
    %cst_131 = arith.constant 0.000000e+00 : f32
    %420 = vector.broadcast %cst_131 : f32 to vector<8x128xf32>
    %c0_132 = arith.constant 0 : index
    %c0_133 = arith.constant 0 : index
    %421 = vector.load %arg27[%c0_132, %c0_133] : memref<8x128xf32, #tpu.memory_space<vmem>>, vector<8x128xf32>
    tpu.vector_store %arg27[%c0_132, %c0_133], %420 {strides = array<i32>} : memref<8x128xf32, #tpu.memory_space<vmem>>, vector<8x128xf32>,
    %422 = vector.shape_cast %419 : vector<2x1xf32> to vector<2x1xf32>
    %423 = vector.broadcast %422 : vector<2x1xf32> to vector<2x128xf32>
    %c0_134 = arith.constant 0 : index
    %c0_135 = arith.constant 0 : index
    %424 = vector.load %arg27[%c0_134, %c0_135] : memref<8x128xf32, #tpu.memory_space<vmem>>, vector<2x128xf32>
    tpu.vector_store %arg27[%c0_134, %c0_135], %423 {strides = array<i32>} : memref<8x128xf32, #tpu.memory_space<vmem>>, vector<2x128xf32>,
    return
  }
  func.func @transform_0(%arg0: i32) -> (i32, i32) {
    %c0_i32 = arith.constant 0 : i32
    %c0_i32_0 = arith.constant 0 : i32
    return %arg0, %c0_i32 : i32, i32
  }
  func.func @transform_1(%arg0: i32) -> (i32, i32) {
    %c0_i32 = arith.constant 0 : i32
    %c0_i32_0 = arith.constant 0 : i32
    %c0_i32_1 = arith.constant 0 : i32
    return %c0_i32, %c0_i32_0 : i32, i32
  }
  func.func @transform_2(%arg0: i32) -> (i32, i32) {
    %c0_i32 = arith.constant 0 : i32
    %c0_i32_0 = arith.constant 0 : i32
    %c0_i32_1 = arith.constant 0 : i32
    return %c0_i32, %c0_i32_0 : i32, i32
  }
  func.func @transform_3(%arg0: i32) -> (i32, i32) {
    %c0_i32 = arith.constant 0 : i32
    %c0_i32_0 = arith.constant 0 : i32
    %c0_i32_1 = arith.constant 0 : i32
    return %c0_i32, %c0_i32_0 : i32, i32
  }
  func.func @transform_4(%arg0: i32) -> (i32, i32) {
    %c0_i32 = arith.constant 0 : i32
    %c0_i32_0 = arith.constant 0 : i32
    %c0_i32_1 = arith.constant 0 : i32
    return %c0_i32, %c0_i32_0 : i32, i32
  }
  func.func @transform_5(%arg0: i32) -> (i32, i32) {
    %c0_i32 = arith.constant 0 : i32
    %c0_i32_0 = arith.constant 0 : i32
    %c0_i32_1 = arith.constant 0 : i32
    return %c0_i32, %c0_i32_0 : i32, i32
  }
  func.func @transform_6(%arg0: i32) -> (i32, i32) {
    %c0_i32 = arith.constant 0 : i32
    %c0_i32_0 = arith.constant 0 : i32
    %c0_i32_1 = arith.constant 0 : i32
    return %c0_i32, %c0_i32_0 : i32, i32
  }
  func.func @transform_7(%arg0: i32) -> (i32, i32) {
    %c0_i32 = arith.constant 0 : i32
    %c0_i32_0 = arith.constant 0 : i32
    %c0_i32_1 = arith.constant 0 : i32
    return %c0_i32, %c0_i32_0 : i32, i32
  }
  func.func @transform_8(%arg0: i32) -> (i32, i32) {
    %c0_i32 = arith.constant 0 : i32
    %c0_i32_0 = arith.constant 0 : i32
    %c0_i32_1 = arith.constant 0 : i32
    return %c0_i32, %c0_i32_0 : i32, i32
  }
  func.func @transform_9(%arg0: i32) -> (i32, i32) {
    %c0_i32 = arith.constant 0 : i32
    %c0_i32_0 = arith.constant 0 : i32
    %c0_i32_1 = arith.constant 0 : i32
    return %c0_i32, %c0_i32_0 : i32, i32
  }
  func.func @transform_10(%arg0: i32) -> (i32, i32) {
    %c0_i32 = arith.constant 0 : i32
    %c0_i32_0 = arith.constant 0 : i32
    %c0_i32_1 = arith.constant 0 : i32
    return %c0_i32, %c0_i32_0 : i32, i32
  }
  func.func @transform_11(%arg0: i32) -> (i32, i32) {
    %c0_i32 = arith.constant 0 : i32
    %c0_i32_0 = arith.constant 0 : i32
    %c0_i32_1 = arith.constant 0 : i32
    return %c0_i32, %c0_i32_0 : i32, i32
  }
  func.func @transform_12(%arg0: i32) -> (i32, i32) {
    %c0_i32 = arith.constant 0 : i32
    %c0_i32_0 = arith.constant 0 : i32
    %c0_i32_1 = arith.constant 0 : i32
    return %c0_i32, %c0_i32_0 : i32, i32
  }
  func.func @transform_13(%arg0: i32) -> (i32, i32) {
    %c0_i32 = arith.constant 0 : i32
    %c0_i32_0 = arith.constant 0 : i32
    %c0_i32_1 = arith.constant 0 : i32
    return %c0_i32, %c0_i32_0 : i32, i32
  }
  func.func @transform_14(%arg0: i32) -> (i32, i32) {
    %c0_i32 = arith.constant 0 : i32
    %c0_i32_0 = arith.constant 0 : i32
    %c0_i32_1 = arith.constant 0 : i32
    return %c0_i32, %c0_i32_0 : i32, i32
  }
  func.func @transform_15(%arg0: i32) -> (i32, i32) {
    %c0_i32 = arith.constant 0 : i32
    %c0_i32_0 = arith.constant 0 : i32
    %c0_i32_1 = arith.constant 0 : i32
    return %c0_i32, %c0_i32_0 : i32, i32
  }
  func.func @transform_16(%arg0: i32) -> (i32, i32) {
    %c0_i32 = arith.constant 0 : i32
    %c0_i32_0 = arith.constant 0 : i32
    %c0_i32_1 = arith.constant 0 : i32
    return %c0_i32, %c0_i32_0 : i32, i32
  }
  func.func @transform_17(%arg0: i32) -> (i32, i32) {
    %c0_i32 = arith.constant 0 : i32
    %c0_i32_0 = arith.constant 0 : i32
    %c0_i32_1 = arith.constant 0 : i32
    return %c0_i32, %c0_i32_0 : i32, i32
  }
  func.func @transform_18(%arg0: i32) -> (i32, i32) {
    %c0_i32 = arith.constant 0 : i32
    %c0_i32_0 = arith.constant 0 : i32
    %c0_i32_1 = arith.constant 0 : i32
    return %c0_i32, %c0_i32_0 : i32, i32
  }
  func.func @transform_19(%arg0: i32) -> (i32, i32) {
    %c0_i32 = arith.constant 0 : i32
    %c0_i32_0 = arith.constant 0 : i32
    %c0_i32_1 = arith.constant 0 : i32
    return %c0_i32, %c0_i32_0 : i32, i32
  }
  func.func @transform_20(%arg0: i32) -> (i32, i32) {
    %c0_i32 = arith.constant 0 : i32
    %c0_i32_0 = arith.constant 0 : i32
    %c0_i32_1 = arith.constant 0 : i32
    return %c0_i32, %c0_i32_0 : i32, i32
  }
  func.func @transform_21(%arg0: i32) -> (i32, i32) {
    %c0_i32 = arith.constant 0 : i32
    %c0_i32_0 = arith.constant 0 : i32
    %c0_i32_1 = arith.constant 0 : i32
    return %c0_i32, %c0_i32_0 : i32, i32
  }
  func.func @transform_22(%arg0: i32) -> (i32, i32) {
    %c0_i32 = arith.constant 0 : i32
    %c0_i32_0 = arith.constant 0 : i32
    %c0_i32_1 = arith.constant 0 : i32
    return %c0_i32, %c0_i32_0 : i32, i32
  }
  func.func @transform_23(%arg0: i32) -> (i32, i32) {
    %c0_i32 = arith.constant 0 : i32
    %c0_i32_0 = arith.constant 0 : i32
    %c0_i32_1 = arith.constant 0 : i32
    return %c0_i32, %c0_i32_0 : i32, i32
  }
  func.func @transform_24(%arg0: i32) -> (i32, i32) {
    %c0_i32 = arith.constant 0 : i32
    %c0_i32_0 = arith.constant 0 : i32
    %c0_i32_1 = arith.constant 0 : i32
    return %c0_i32, %c0_i32_0 : i32, i32
  }
  func.func @transform_25(%arg0: i32) -> (i32, i32) {
    %c0_i32 = arith.constant 0 : i32
    %c0_i32_0 = arith.constant 0 : i32
    %c0_i32_1 = arith.constant 0 : i32
    return %c0_i32, %c0_i32_0 : i32, i32
  }
  func.func @transform_26(%arg0: i32) -> (i32, i32) {
    %c0_i32 = arith.constant 0 : i32
    %c0_i32_0 = arith.constant 0 : i32
    return %arg0, %c0_i32 : i32, i32
  }
}

</mosaic_0001>

<llo_original>
// kernel: medium_resnet_forward.1
$region0: #{medium_resnet_forward.1}
  #allocation0 [shape = 'u32[]', space=smem, size = 0x4, offset = 0x4, fixed_abs, tag = 'smem constant byte address 0x4 - core index']
  #allocation1 [shape = 'u32[144,128]{1,0:T(1,128)}', space=vmem, size = 0x12000, scoped, tag = 'internal scratch']
  %s0 = inlined_call_operand.vmem [shape: f32[16,256], index: 0, kind: input, shape index: {}]
  %s1 = inlined_call_operand.vmem [shape: f32[9,256], index: 1, kind: input, shape index: {}]
  %s2 = inlined_call_operand.vmem [shape: f32[9,64], index: 2, kind: input, shape index: {}]
  %s3 = inlined_call_operand.vmem [shape: f32[256,64], index: 3, kind: input, shape index: {}]
  %s4 = inlined_call_operand.vmem [shape: bf16[16,72], index: 4, kind: input, shape index: {}]
  %s5 = inlined_call_operand.vmem [shape: f32[16,1], index: 5, kind: input, shape index: {}]
  %s6 = inlined_call_operand.vmem [shape: bf16[16,144], index: 6, kind: input, shape index: {}]
  %s7 = inlined_call_operand.vmem [shape: f32[16,1], index: 7, kind: input, shape index: {}]
  %s8 = inlined_call_operand.vmem [shape: bf16[16,144], index: 8, kind: input, shape index: {}]
  %s9 = inlined_call_operand.vmem [shape: f32[16,1], index: 9, kind: input, shape index: {}]
  %s10 = inlined_call_operand.vmem [shape: bf16[16,144], index: 10, kind: input, shape index: {}]
  %s11 = inlined_call_operand.vmem [shape: f32[16,1], index: 11, kind: input, shape index: {}]
  %s12 = inlined_call_operand.vmem [shape: bf16[16,144], index: 12, kind: input, shape index: {}]
  %s13 = inlined_call_operand.vmem [shape: f32[16,1], index: 13, kind: input, shape index: {}]
  %s14 = inlined_call_operand.vmem [shape: bf16[32,144], index: 14, kind: input, shape index: {}]
  %s15 = inlined_call_operand.vmem [shape: f32[32,1], index: 15, kind: input, shape index: {}]
  %s16 = inlined_call_operand.vmem [shape: bf16[32,16], index: 16, kind: input, shape index: {}]
  %s17 = inlined_call_operand.vmem [shape: f32[32,1], index: 17, kind: input, shape index: {}]
  %s18 = inlined_call_operand.vmem [shape: bf16[32,288], index: 18, kind: input, shape index: {}]
  %s19 = inlined_call_operand.vmem [shape: f32[32,1], index: 19, kind: input, shape index: {}]
  %s20 = inlined_call_operand.vmem [shape: bf16[32,288], index: 20, kind: input, shape index: {}]
  %s21 = inlined_call_operand.vmem [shape: f32[32,1], index: 21, kind: input, shape index: {}]
  %s22 = inlined_call_operand.vmem [shape: bf16[32,288], index: 22, kind: input, shape index: {}]
  %s23 = inlined_call_operand.vmem [shape: f32[32,1], index: 23, kind: input, shape index: {}]
  %s24 = inlined_call_operand.vmem [shape: f32[2,32], index: 24, kind: input, shape index: {}]
  %s25 = inlined_call_operand.vmem [shape: f32[2,1], index: 25, kind: input, shape index: {}]
  %s26 = inlined_call_operand.vmem [shape: f32[16,128], index: 26, kind: output, shape index: {}]
  %s27 = sld [smem:[#allocation0]]
  $region137: #{medium_resnet_forward.1} parent=0
    _
  %s29 = ssub.s32 1, %s27
  %s30 = scalar_select 0, %s29, %s27
  loop: start=0, step=1, limit=4
  $region2: #{medium_resnet_forward.1} parent=0 // loop_pre_header
    _
  $region3: #{medium_resnet_forward.1} parent=0 // loop_header
    %s32 = sphi 0, %s36
    %p33 = scmp.ge.s32.totalorder %s32, 4
    %s42 = sphi 0, %s44
    %s45 = sphi 0, %s42
    %s46 = sphi 0, %s45
    %s62 = sphi 0, %s46
    %s66 = sphi 0, %s66
    %s68 = sphi 0, %s66
    %s69 = sphi 0, %s68
    %s83 = sphi 0, %s69
    %s87 = sphi 0, %s87
    %s89 = sphi 0, %s87
    %s90 = sphi 0, %s89
    %s104 = sphi 0, %s90
    %s108 = sphi 0, %s108
    %s110 = sphi 0, %s108
    %s111 = sphi 0, %s110
    %s125 = sphi 0, %s111
    %s129 = sphi 0, %s129
    %s131 = sphi 0, %s129
    %s132 = sphi 0, %s131
    %s146 = sphi 0, %s132
    %s150 = sphi 0, %s150
    %s152 = sphi 0, %s150
    %s153 = sphi 0, %s152
    %s167 = sphi 0, %s153
    %s171 = sphi 0, %s171
    %s173 = sphi 0, %s171
    %s174 = sphi 0, %s173
    %s188 = sphi 0, %s174
    %s192 = sphi 0, %s192
    %s194 = sphi 0, %s192
    %s195 = sphi 0, %s194
    %s209 = sphi 0, %s195
    %s213 = sphi 0, %s213
    %s215 = sphi 0, %s213
    %s216 = sphi 0, %s215
    %s230 = sphi 0, %s216
    %s234 = sphi 0, %s234
    %s236 = sphi 0, %s234
    %s237 = sphi 0, %s236
    %s251 = sphi 0, %s237
    %s255 = sphi 0, %s255
    %s257 = sphi 0, %s255
    %s258 = sphi 0, %s257
    %s272 = sphi 0, %s258
    %s276 = sphi 0, %s276
    %s278 = sphi 0, %s276
    %s279 = sphi 0, %s278
    %s293 = sphi 0, %s279
    %s297 = sphi 0, %s297
    %s299 = sphi 0, %s297
    %s300 = sphi 0, %s299
    %s314 = sphi 0, %s300
    %s318 = sphi 0, %s318
    %s320 = sphi 0, %s318
    %s321 = sphi 0, %s320
    %s335 = sphi 0, %s321
    %s339 = sphi 0, %s339
    %s341 = sphi 0, %s339
    %s342 = sphi 0, %s341
    %s356 = sphi 0, %s342
    %s360 = sphi 0, %s360
    %s362 = sphi 0, %s360
    %s363 = sphi 0, %s362
    %s377 = sphi 0, %s363
    %s381 = sphi 0, %s381
    %s383 = sphi 0, %s381
    %s384 = sphi 0, %s383
    %s398 = sphi 0, %s384
    %s402 = sphi 0, %s402
    %s404 = sphi 0, %s402
    %s405 = sphi 0, %s404
    %s419 = sphi 0, %s405
    %s423 = sphi 0, %s423
    %s425 = sphi 0, %s423
    %s426 = sphi 0, %s425
    %s440 = sphi 0, %s426
    %s444 = sphi 0, %s444
    %s446 = sphi 0, %s444
    %s447 = sphi 0, %s446
    %s461 = sphi 0, %s447
    %s465 = sphi 0, %s465
    %s467 = sphi 0, %s465
    %s468 = sphi 0, %s467
    %s482 = sphi 0, %s468
    %s486 = sphi 0, %s486
    %s488 = sphi 0, %s486
    %s489 = sphi 0, %s488
    %s503 = sphi 0, %s489
    %s507 = sphi 0, %s507
    %s509 = sphi 0, %s507
    %s510 = sphi 0, %s509
    %s524 = sphi 0, %s510
    %s528 = sphi 0, %s528
    %s530 = sphi 0, %s528
    %s531 = sphi 0, %s530
    %s545 = sphi 0, %s531
    %s549 = sphi 0, %s549
    %s551 = sphi 0, %s549
    %s552 = sphi 0, %s551
    %s566 = sphi 0, %s552
    %s570 = sphi 0, %s570
    %s572 = sphi 0, %s570
    %s573 = sphi 0, %s572
    %s587 = sphi 0, %s573
    %s593 = sphi 0, %s595
    %s596 = sphi 0, %s593
    %s597 = sphi 0, %s596
    %s613 = sphi 0, %s597
  $region4: #{medium_resnet_forward.1} parent=0 // loop_header_branch
    %35 = sbr.rel (%p33) target = $region8
  $region5: #{medium_resnet_forward.1} parent=0 // loop_body
    %s37 = ssub.s32 %s32, 1
    %s38 = ssub.s32 %s32, 2
    %s39 = sadd.s32 %s32, 1
    %s40 = ssub.s32 %s32, %s39
    %p41 = scmp.eq.s32.totalorder %s40, 0
    %s43 = sadd.s32 %s42, 1
    %s44 = scalar_select %p41, %s42, %s43
    %p47 = pneg %p41
    %p48 = scmp.eq.s32.totalorder %s32, 1
    %p49 = por %p47, %p48
    %p50 = scmp.ne.s32.totalorder %s42, %s45
    %p51 = scmp.eq.s32.totalorder %s32, 0
    %p52 = por %p50, %p51
    %p53 = scmp.ne.s32.totalorder %s42, %s45
    %p54 = scmp.eq.s32.totalorder %s37, 1
    %p55 = por %p53, %p54
    %p56 = scmp.ne.s32.totalorder %s45, %s46
    %p57 = scmp.eq.s32.totalorder %s37, 0
    %p58 = por %p56, %p57
    %p59 = scmp.ne.s32.totalorder %s45, %s46
    %p60 = scmp.eq.s32.totalorder %s38, 1
    %p61 = por %p59, %p60
    %p63 = scmp.ne.s32.totalorder %s46, %s62
    %p64 = scmp.eq.s32.totalorder %s38, 0
    %p65 = por %p63, %p64
    %s67 = sadd.s32 %s66, 1
    %p70 = scmp.eq.s32.totalorder %s32, 1
    %p71 = scmp.ne.s32.totalorder %s66, %s68
    %p72 = scmp.eq.s32.totalorder %s32, 0
    %p73 = por %p71, %p72
    %p74 = scmp.ne.s32.totalorder %s66, %s68
    %p75 = scmp.eq.s32.totalorder %s37, 1
    %p76 = por %p74, %p75
    %p77 = scmp.ne.s32.totalorder %s68, %s69
    %p78 = scmp.eq.s32.totalorder %s37, 0
    %p79 = por %p77, %p78
    %p80 = scmp.ne.s32.totalorder %s68, %s69
    %p81 = scmp.eq.s32.totalorder %s38, 1
    %p82 = por %p80, %p81
    %p84 = scmp.ne.s32.totalorder %s69, %s83
    %p85 = scmp.eq.s32.totalorder %s38, 0
    %p86 = por %p84, %p85
    %s88 = sadd.s32 %s87, 1
    %p91 = scmp.eq.s32.totalorder %s32, 1
    %p92 = scmp.ne.s32.totalorder %s87, %s89
    %p93 = scmp.eq.s32.totalorder %s32, 0
    %p94 = por %p92, %p93
    %p95 = scmp.ne.s32.totalorder %s87, %s89
    %p96 = scmp.eq.s32.totalorder %s37, 1
    %p97 = por %p95, %p96
    %p98 = scmp.ne.s32.totalorder %s89, %s90
    %p99 = scmp.eq.s32.totalorder %s37, 0
    %p100 = por %p98, %p99
    %p101 = scmp.ne.s32.totalorder %s89, %s90
    %p102 = scmp.eq.s32.totalorder %s38, 1
    %p103 = por %p101, %p102
    %p105 = scmp.ne.s32.totalorder %s90, %s104
    %p106 = scmp.eq.s32.totalorder %s38, 0
    %p107 = por %p105, %p106
    %s109 = sadd.s32 %s108, 1
    %p112 = scmp.eq.s32.totalorder %s32, 1
    %p113 = scmp.ne.s32.totalorder %s108, %s110
    %p114 = scmp.eq.s32.totalorder %s32, 0
    %p115 = por %p113, %p114
    %p116 = scmp.ne.s32.totalorder %s108, %s110
    %p117 = scmp.eq.s32.totalorder %s37, 1
    %p118 = por %p116, %p117
    %p119 = scmp.ne.s32.totalorder %s110, %s111
    %p120 = scmp.eq.s32.totalorder %s37, 0
    %p121 = por %p119, %p120
    %p122 = scmp.ne.s32.totalorder %s110, %s111
    %p123 = scmp.eq.s32.totalorder %s38, 1
    %p124 = por %p122, %p123
    %p126 = scmp.ne.s32.totalorder %s111, %s125
    %p127 = scmp.eq.s32.totalorder %s38, 0
    %p128 = por %p126, %p127
    %s130 = sadd.s32 %s129, 1
    %p133 = scmp.eq.s32.totalorder %s32, 1
    %p134 = scmp.ne.s32.totalorder %s129, %s131
    %p135 = scmp.eq.s32.totalorder %s32, 0
    %p136 = por %p134, %p135
    %p137 = scmp.ne.s32.totalorder %s129, %s131
    %p138 = scmp.eq.s32.totalorder %s37, 1
    %p139 = por %p137, %p138
    %p140 = scmp.ne.s32.totalorder %s131, %s132
    %p141 = scmp.eq.s32.totalorder %s37, 0
    %p142 = por %p140, %p141
    %p143 = scmp.ne.s32.totalorder %s131, %s132
    %p144 = scmp.eq.s32.totalorder %s38, 1
    %p145 = por %p143, %p144
    %p147 = scmp.ne.s32.totalorder %s132, %s146
    %p148 = scmp.eq.s32.totalorder %s38, 0
    %p149 = por %p147, %p148
    %s151 = sadd.s32 %s150, 1
    %p154 = scmp.eq.s32.totalorder %s32, 1
    %p155 = scmp.ne.s32.totalorder %s150, %s152
    %p156 = scmp.eq.s32.totalorder %s32, 0
    %p157 = por %p155, %p156
    %p158 = scmp.ne.s32.totalorder %s150, %s152
    %p159 = scmp.eq.s32.totalorder %s37, 1
    %p160 = por %p158, %p159
    %p161 = scmp.ne.s32.totalorder %s152, %s153
    %p162 = scmp.eq.s32.totalorder %s37, 0
    %p163 = por %p161, %p162
    %p164 = scmp.ne.s32.totalorder %s152, %s153
    %p165 = scmp.eq.s32.totalorder %s38, 1
    %p166 = por %p164, %p165
    %p168 = scmp.ne.s32.totalorder %s153, %s167
    %p169 = scmp.eq.s32.totalorder %s38, 0
    %p170 = por %p168, %p169
    %s172 = sadd.s32 %s171, 1
    %p175 = scmp.eq.s32.totalorder %s32, 1
    %p176 = scmp.ne.s32.totalorder %s171, %s173
    %p177 = scmp.eq.s32.totalorder %s32, 0
    %p178 = por %p176, %p177
    %p179 = scmp.ne.s32.totalorder %s171, %s173
    %p180 = scmp.eq.s32.totalorder %s37, 1
    %p181 = por %p179, %p180
    %p182 = scmp.ne.s32.totalorder %s173, %s174
    %p183 = scmp.eq.s32.totalorder %s37, 0
    %p184 = por %p182, %p183
    %p185 = scmp.ne.s32.totalorder %s173, %s174
    %p186 = scmp.eq.s32.totalorder %s38, 1
    %p187 = por %p185, %p186
    %p189 = scmp.ne.s32.totalorder %s174, %s188
    %p190 = scmp.eq.s32.totalorder %s38, 0
    %p191 = por %p189, %p190
    %s193 = sadd.s32 %s192, 1
    %p196 = scmp.eq.s32.totalorder %s32, 1
    %p197 = scmp.ne.s32.totalorder %s192, %s194
    %p198 = scmp.eq.s32.totalorder %s32, 0
    %p199 = por %p197, %p198
    %p200 = scmp.ne.s32.totalorder %s192, %s194
    %p201 = scmp.eq.s32.totalorder %s37, 1
    %p202 = por %p200, %p201
    %p203 = scmp.ne.s32.totalorder %s194, %s195
    %p204 = scmp.eq.s32.totalorder %s37, 0
    %p205 = por %p203, %p204
    %p206 = scmp.ne.s32.totalorder %s194, %s195
    %p207 = scmp.eq.s32.totalorder %s38, 1
    %p208 = por %p206, %p207
    %p210 = scmp.ne.s32.totalorder %s195, %s209
    %p211 = scmp.eq.s32.totalorder %s38, 0
    %p212 = por %p210, %p211
    %s214 = sadd.s32 %s213, 1
    %p217 = scmp.eq.s32.totalorder %s32, 1
    %p218 = scmp.ne.s32.totalorder %s213, %s215
    %p219 = scmp.eq.s32.totalorder %s32, 0
    %p220 = por %p218, %p219
    %p221 = scmp.ne.s32.totalorder %s213, %s215
    %p222 = scmp.eq.s32.totalorder %s37, 1
    %p223 = por %p221, %p222
    %p224 = scmp.ne.s32.totalorder %s215, %s216
    %p225 = scmp.eq.s32.totalorder %s37, 0
    %p226 = por %p224, %p225
    %p227 = scmp.ne.s32.totalorder %s215, %s216
    %p228 = scmp.eq.s32.totalorder %s38, 1
    %p229 = por %p227, %p228
    %p231 = scmp.ne.s32.totalorder %s216, %s230
    %p232 = scmp.eq.s32.totalorder %s38, 0
    %p233 = por %p231, %p232
    %s235 = sadd.s32 %s234, 1
    %p238 = scmp.eq.s32.totalorder %s32, 1
    %p239 = scmp.ne.s32.totalorder %s234, %s236
    %p240 = scmp.eq.s32.totalorder %s32, 0
    %p241 = por %p239, %p240
    %p242 = scmp.ne.s32.totalorder %s234, %s236
    %p243 = scmp.eq.s32.totalorder %s37, 1
    %p244 = por %p242, %p243
    %p245 = scmp.ne.s32.totalorder %s236, %s237
    %p246 = scmp.eq.s32.totalorder %s37, 0
    %p247 = por %p245, %p246
    %p248 = scmp.ne.s32.totalorder %s236, %s237
    %p249 = scmp.eq.s32.totalorder %s38, 1
    %p250 = por %p248, %p249
    %p252 = scmp.ne.s32.totalorder %s237, %s251
    %p253 = scmp.eq.s32.totalorder %s38, 0
    %p254 = por %p252, %p253
    %s256 = sadd.s32 %s255, 1
    %p259 = scmp.eq.s32.totalorder %s32, 1
    %p260 = scmp.ne.s32.totalorder %s255, %s257
    %p261 = scmp.eq.s32.totalorder %s32, 0
    %p262 = por %p260, %p261
    %p263 = scmp.ne.s32.totalorder %s255, %s257
    %p264 = scmp.eq.s32.totalorder %s37, 1
    %p265 = por %p263, %p264
    %p266 = scmp.ne.s32.totalorder %s257, %s258
    %p267 = scmp.eq.s32.totalorder %s37, 0
    %p268 = por %p266, %p267
    %p269 = scmp.ne.s32.totalorder %s257, %s258
    %p270 = scmp.eq.s32.totalorder %s38, 1
    %p271 = por %p269, %p270
    %p273 = scmp.ne.s32.totalorder %s258, %s272
    %p274 = scmp.eq.s32.totalorder %s38, 0
    %p275 = por %p273, %p274
    %s277 = sadd.s32 %s276, 1
    %p280 = scmp.eq.s32.totalorder %s32, 1
    %p281 = scmp.ne.s32.totalorder %s276, %s278
    %p282 = scmp.eq.s32.totalorder %s32, 0
    %p283 = por %p281, %p282
    %p284 = scmp.ne.s32.totalorder %s276, %s278
    %p285 = scmp.eq.s32.totalorder %s37, 1
    %p286 = por %p284, %p285
    %p287 = scmp.ne.s32.totalorder %s278, %s279
    %p288 = scmp.eq.s32.totalorder %s37, 0
    %p289 = por %p287, %p288
    %p290 = scmp.ne.s32.totalorder %s278, %s279
    %p291 = scmp.eq.s32.totalorder %s38, 1
    %p292 = por %p290, %p291
    %p294 = scmp.ne.s32.totalorder %s279, %s293
    %p295 = scmp.eq.s32.totalorder %s38, 0
    %p296 = por %p294, %p295
    %s298 = sadd.s32 %s297, 1
    %p301 = scmp.eq.s32.totalorder %s32, 1
    %p302 = scmp.ne.s32.totalorder %s297, %s299
    %p303 = scmp.eq.s32.totalorder %s32, 0
    %p304 = por %p302, %p303
    %p305 = scmp.ne.s32.totalorder %s297, %s299
    %p306 = scmp.eq.s32.totalorder %s37, 1
    %p307 = por %p305, %p306
    %p308 = scmp.ne.s32.totalorder %s299, %s300
    %p309 = scmp.eq.s32.totalorder %s37, 0
    %p310 = por %p308, %p309
    %p311 = scmp.ne.s32.totalorder %s299, %s300
    %p312 = scmp.eq.s32.totalorder %s38, 1
    %p313 = por %p311, %p312
    %p315 = scmp.ne.s32.totalorder %s300, %s314
    %p316 = scmp.eq.s32.totalorder %s38, 0
    %p317 = por %p315, %p316
    %s319 = sadd.s32 %s318, 1
    %p322 = scmp.eq.s32.totalorder %s32, 1
    %p323 = scmp.ne.s32.totalorder %s318, %s320
    %p324 = scmp.eq.s32.totalorder %s32, 0
    %p325 = por %p323, %p324
    %p326 = scmp.ne.s32.totalorder %s318, %s320
    %p327 = scmp.eq.s32.totalorder %s37, 1
    %p328 = por %p326, %p327
    %p329 = scmp.ne.s32.totalorder %s320, %s321
    %p330 = scmp.eq.s32.totalorder %s37, 0
    %p331 = por %p329, %p330
    %p332 = scmp.ne.s32.totalorder %s320, %s321
    %p333 = scmp.eq.s32.totalorder %s38, 1
    %p334 = por %p332, %p333
    %p336 = scmp.ne.s32.totalorder %s321, %s335
    %p337 = scmp.eq.s32.totalorder %s38, 0
    %p338 = por %p336, %p337
    %s340 = sadd.s32 %s339, 1
    %p343 = scmp.eq.s32.totalorder %s32, 1
    %p344 = scmp.ne.s32.totalorder %s339, %s341
    %p345 = scmp.eq.s32.totalorder %s32, 0
    %p346 = por %p344, %p345
    %p347 = scmp.ne.s32.totalorder %s339, %s341
    %p348 = scmp.eq.s32.totalorder %s37, 1
    %p349 = por %p347, %p348
    %p350 = scmp.ne.s32.totalorder %s341, %s342
    %p351 = scmp.eq.s32.totalorder %s37, 0
    %p352 = por %p350, %p351
    %p353 = scmp.ne.s32.totalorder %s341, %s342
    %p354 = scmp.eq.s32.totalorder %s38, 1
    %p355 = por %p353, %p354
    %p357 = scmp.ne.s32.totalorder %s342, %s356
    %p358 = scmp.eq.s32.totalorder %s38, 0
    %p359 = por %p357, %p358
    %s361 = sadd.s32 %s360, 1
    %p364 = scmp.eq.s32.totalorder %s32, 1
    %p365 = scmp.ne.s32.totalorder %s360, %s362
    %p366 = scmp.eq.s32.totalorder %s32, 0
    %p367 = por %p365, %p366
    %p368 = scmp.ne.s32.totalorder %s360, %s362
    %p369 = scmp.eq.s32.totalorder %s37, 1
    %p370 = por %p368, %p369
    %p371 = scmp.ne.s32.totalorder %s362, %s363
    %p372 = scmp.eq.s32.totalorder %s37, 0
    %p373 = por %p371, %p372
    %p374 = scmp.ne.s32.totalorder %s362, %s363
    %p375 = scmp.eq.s32.totalorder %s38, 1
    %p376 = por %p374, %p375
    %p378 = scmp.ne.s32.totalorder %s363, %s377
    %p379 = scmp.eq.s32.totalorder %s38, 0
    %p380 = por %p378, %p379
    %s382 = sadd.s32 %s381, 1
    %p385 = scmp.eq.s32.totalorder %s32, 1
    %p386 = scmp.ne.s32.totalorder %s381, %s383
    %p387 = scmp.eq.s32.totalorder %s32, 0
    %p388 = por %p386, %p387
    %p389 = scmp.ne.s32.totalorder %s381, %s383
    %p390 = scmp.eq.s32.totalorder %s37, 1
    %p391 = por %p389, %p390
    %p392 = scmp.ne.s32.totalorder %s383, %s384
    %p393 = scmp.eq.s32.totalorder %s37, 0
    %p394 = por %p392, %p393
    %p395 = scmp.ne.s32.totalorder %s383, %s384
    %p396 = scmp.eq.s32.totalorder %s38, 1
    %p397 = por %p395, %p396
    %p399 = scmp.ne.s32.totalorder %s384, %s398
    %p400 = scmp.eq.s32.totalorder %s38, 0
    %p401 = por %p399, %p400
    %s403 = sadd.s32 %s402, 1
    %p406 = scmp.eq.s32.totalorder %s32, 1
    %p407 = scmp.ne.s32.totalorder %s402, %s404
    %p408 = scmp.eq.s32.totalorder %s32, 0
    %p409 = por %p407, %p408
    %p410 = scmp.ne.s32.totalorder %s402, %s404
    %p411 = scmp.eq.s32.totalorder %s37, 1
    %p412 = por %p410, %p411
    %p413 = scmp.ne.s32.totalorder %s404, %s405
    %p414 = scmp.eq.s32.totalorder %s37, 0
    %p415 = por %p413, %p414
    %p416 = scmp.ne.s32.totalorder %s404, %s405
    %p417 = scmp.eq.s32.totalorder %s38, 1
    %p418 = por %p416, %p417
    %p420 = scmp.ne.s32.totalorder %s405, %s419
    %p421 = scmp.eq.s32.totalorder %s38, 0
    %p422 = por %p420, %p421
    %s424 = sadd.s32 %s423, 1
    %p427 = scmp.eq.s32.totalorder %s32, 1
    %p428 = scmp.ne.s32.totalorder %s423, %s425
    %p429 = scmp.eq.s32.totalorder %s32, 0
    %p430 = por %p428, %p429
    %p431 = scmp.ne.s32.totalorder %s423, %s425
    %p432 = scmp.eq.s32.totalorder %s37, 1
    %p433 = por %p431, %p432
    %p434 = scmp.ne.s32.totalorder %s425, %s426
    %p435 = scmp.eq.s32.totalorder %s37, 0
    %p436 = por %p434, %p435
    %p437 = scmp.ne.s32.totalorder %s425, %s426
    %p438 = scmp.eq.s32.totalorder %s38, 1
    %p439 = por %p437, %p438
    %p441 = scmp.ne.s32.totalorder %s426, %s440
    %p442 = scmp.eq.s32.totalorder %s38, 0
    %p443 = por %p441, %p442
    %s445 = sadd.s32 %s444, 1
    %p448 = scmp.eq.s32.totalorder %s32, 1
    %p449 = scmp.ne.s32.totalorder %s444, %s446
    %p450 = scmp.eq.s32.totalorder %s32, 0
    %p451 = por %p449, %p450
    %p452 = scmp.ne.s32.totalorder %s444, %s446
    %p453 = scmp.eq.s32.totalorder %s37, 1
    %p454 = por %p452, %p453
    %p455 = scmp.ne.s32.totalorder %s446, %s447
    %p456 = scmp.eq.s32.totalorder %s37, 0
    %p457 = por %p455, %p456
    %p458 = scmp.ne.s32.totalorder %s446, %s447
    %p459 = scmp.eq.s32.totalorder %s38, 1
    %p460 = por %p458, %p459
    %p462 = scmp.ne.s32.totalorder %s447, %s461
    %p463 = scmp.eq.s32.totalorder %s38, 0
    %p464 = por %p462, %p463
    %s466 = sadd.s32 %s465, 1
    %p469 = scmp.eq.s32.totalorder %s32, 1
    %p470 = scmp.ne.s32.totalorder %s465, %s467
    %p471 = scmp.eq.s32.totalorder %s32, 0
    %p472 = por %p470, %p471
    %p473 = scmp.ne.s32.totalorder %s465, %s467
    %p474 = scmp.eq.s32.totalorder %s37, 1
    %p475 = por %p473, %p474
    %p476 = scmp.ne.s32.totalorder %s467, %s468
    %p477 = scmp.eq.s32.totalorder %s37, 0
    %p478 = por %p476, %p477
    %p479 = scmp.ne.s32.totalorder %s467, %s468
    %p480 = scmp.eq.s32.totalorder %s38, 1
    %p481 = por %p479, %p480
    %p483 = scmp.ne.s32.totalorder %s468, %s482
    %p484 = scmp.eq.s32.totalorder %s38, 0
    %p485 = por %p483, %p484
    %s487 = sadd.s32 %s486, 1
    %p490 = scmp.eq.s32.totalorder %s32, 1
    %p491 = scmp.ne.s32.totalorder %s486, %s488
    %p492 = scmp.eq.s32.totalorder %s32, 0
    %p493 = por %p491, %p492
    %p494 = scmp.ne.s32.totalorder %s486, %s488
    %p495 = scmp.eq.s32.totalorder %s37, 1
    %p496 = por %p494, %p495
    %p497 = scmp.ne.s32.totalorder %s488, %s489
    %p498 = scmp.eq.s32.totalorder %s37, 0
    %p499 = por %p497, %p498
    %p500 = scmp.ne.s32.totalorder %s488, %s489
    %p501 = scmp.eq.s32.totalorder %s38, 1
    %p502 = por %p500, %p501
    %p504 = scmp.ne.s32.totalorder %s489, %s503
    %p505 = scmp.eq.s32.totalorder %s38, 0
    %p506 = por %p504, %p505
    %s508 = sadd.s32 %s507, 1
    %p511 = scmp.eq.s32.totalorder %s32, 1
    %p512 = scmp.ne.s32.totalorder %s507, %s509
    %p513 = scmp.eq.s32.totalorder %s32, 0
    %p514 = por %p512, %p513
    %p515 = scmp.ne.s32.totalorder %s507, %s509
    %p516 = scmp.eq.s32.totalorder %s37, 1
    %p517 = por %p515, %p516
    %p518 = scmp.ne.s32.totalorder %s509, %s510
    %p519 = scmp.eq.s32.totalorder %s37, 0
    %p520 = por %p518, %p519
    %p521 = scmp.ne.s32.totalorder %s509, %s510
    %p522 = scmp.eq.s32.totalorder %s38, 1
    %p523 = por %p521, %p522
    %p525 = scmp.ne.s32.totalorder %s510, %s524
    %p526 = scmp.eq.s32.totalorder %s38, 0
    %p527 = por %p525, %p526
    %s529 = sadd.s32 %s528, 1
    %p532 = scmp.eq.s32.totalorder %s32, 1
    %p533 = scmp.ne.s32.totalorder %s528, %s530
    %p534 = scmp.eq.s32.totalorder %s32, 0
    %p535 = por %p533, %p534
    %p536 = scmp.ne.s32.totalorder %s528, %s530
    %p537 = scmp.eq.s32.totalorder %s37, 1
    %p538 = por %p536, %p537
    %p539 = scmp.ne.s32.totalorder %s530, %s531
    %p540 = scmp.eq.s32.totalorder %s37, 0
    %p541 = por %p539, %p540
    %p542 = scmp.ne.s32.totalorder %s530, %s531
    %p543 = scmp.eq.s32.totalorder %s38, 1
    %p544 = por %p542, %p543
    %p546 = scmp.ne.s32.totalorder %s531, %s545
    %p547 = scmp.eq.s32.totalorder %s38, 0
    %p548 = por %p546, %p547
    %s550 = sadd.s32 %s549, 1
    %p553 = scmp.eq.s32.totalorder %s32, 1
    %p554 = scmp.ne.s32.totalorder %s549, %s551
    %p555 = scmp.eq.s32.totalorder %s32, 0
    %p556 = por %p554, %p555
    %p557 = scmp.ne.s32.totalorder %s549, %s551
    %p558 = scmp.eq.s32.totalorder %s37, 1
    %p559 = por %p557, %p558
    %p560 = scmp.ne.s32.totalorder %s551, %s552
    %p561 = scmp.eq.s32.totalorder %s37, 0
    %p562 = por %p560, %p561
    %p563 = scmp.ne.s32.totalorder %s551, %s552
    %p564 = scmp.eq.s32.totalorder %s38, 1
    %p565 = por %p563, %p564
    %p567 = scmp.ne.s32.totalorder %s552, %s566
    %p568 = scmp.eq.s32.totalorder %s38, 0
    %p569 = por %p567, %p568
    %s571 = sadd.s32 %s570, 1
    %p574 = scmp.eq.s32.totalorder %s32, 1
    %p575 = scmp.ne.s32.totalorder %s570, %s572
    %p576 = scmp.eq.s32.totalorder %s32, 0
    %p577 = por %p575, %p576
    %p578 = scmp.ne.s32.totalorder %s570, %s572
    %p579 = scmp.eq.s32.totalorder %s37, 1
    %p580 = por %p578, %p579
    %p581 = scmp.ne.s32.totalorder %s572, %s573
    %p582 = scmp.eq.s32.totalorder %s37, 0
    %p583 = por %p581, %p582
    %p584 = scmp.ne.s32.totalorder %s572, %s573
    %p585 = scmp.eq.s32.totalorder %s38, 1
    %p586 = por %p584, %p585
    %p588 = scmp.ne.s32.totalorder %s573, %s587
    %p589 = scmp.eq.s32.totalorder %s38, 0
    %p590 = por %p588, %p589
    %s591 = ssub.s32 %s32, %s39
    %p592 = scmp.eq.s32.totalorder %s591, 0
    %s594 = sadd.s32 %s593, 1
    %s595 = scalar_select %p592, %s593, %s594
    %p598 = pneg %p592
    %p599 = scmp.eq.s32.totalorder %s32, 1
    %p600 = por %p598, %p599
    %p601 = scmp.ne.s32.totalorder %s593, %s596
    %p602 = scmp.eq.s32.totalorder %s32, 0
    %p603 = por %p601, %p602
    %p604 = scmp.ne.s32.totalorder %s593, %s596
    %p605 = scmp.eq.s32.totalorder %s37, 1
    %p606 = por %p604, %p605
    %p607 = scmp.ne.s32.totalorder %s596, %s597
    %p608 = scmp.eq.s32.totalorder %s37, 0
    %p609 = por %p607, %p608
    %p610 = scmp.ne.s32.totalorder %s596, %s597
    %p611 = scmp.eq.s32.totalorder %s38, 1
    %p612 = por %p610, %p611
    %p614 = scmp.ne.s32.totalorder %s597, %s613
    %p615 = scmp.eq.s32.totalorder %s38, 0
    %p616 = por %p614, %p615
    %p617 = scmp.le.s32.totalorder 1, %s32
    %p618 = scmp.lt.s32.totalorder %s32, 3
    %p619 = pnand %p617, %p618
    %p620 = pneg %p619
    // Predicated region
    $region9: #{medium_resnet_forward.1} parent=5 // pred_check
      _
    $region10: #{medium_resnet_forward.1} parent=5 // pred_check_branch
      %622 = sbr.rel (%p619) target = $region12
    $region11: #{medium_resnet_forward.1} parent=5 // pred_region
      %s623 = ssub.s32 %s32, 1
      // Predicated region
      $region13: #{medium_resnet_forward.1} parent=11 // pred_check
        %p624 = pneg %p79
      $region14: #{medium_resnet_forward.1} parent=11 // pred_check_branch
        %626 = sbr.rel (%p624) target = $region16
      $region15: #{medium_resnet_forward.1} parent=11 // pred_region
        _
      $region16: #{medium_resnet_forward.1} parent=11 // pred_fallthru
        _
      // Predicated region
      $region17: #{medium_resnet_forward.1} parent=11 // pred_check
        %p627 = pneg %p100
      $region18: #{medium_resnet_forward.1} parent=11 // pred_check_branch
        %629 = sbr.rel (%p627) target = $region20
      $region19: #{medium_resnet_forward.1} parent=11 // pred_region
        _
      $region20: #{medium_resnet_forward.1} parent=11 // pred_fallthru
        _
      // Predicated region
      $region21: #{medium_resnet_forward.1} parent=11 // pred_check
        %p630 = pneg %p121
      $region22: #{medium_resnet_forward.1} parent=11 // pred_check_branch
        %632 = sbr.rel (%p630) target = $region24
      $region23: #{medium_resnet_forward.1} parent=11 // pred_region
        _
      $region24: #{medium_resnet_forward.1} parent=11 // pred_fallthru
        _
      // Predicated region
      $region25: #{medium_resnet_forward.1} parent=11 // pred_check
        %p633 = pneg %p142
      $region26: #{medium_resnet_forward.1} parent=11 // pred_check_branch
        %635 = sbr.rel (%p633) target = $region28
      $region27: #{medium_resnet_forward.1} parent=11 // pred_region
        _
      $region28: #{medium_resnet_forward.1} parent=11 // pred_fallthru
        _
      // Predicated region
      $region29: #{medium_resnet_forward.1} parent=11 // pred_check
        %p636 = pneg %p163
      $region30: #{medium_resnet_forward.1} parent=11 // pred_check_branch
        %638 = sbr.rel (%p636) target = $region32
      $region31: #{medium_resnet_forward.1} parent=11 // pred_region
        _
      $region32: #{medium_resnet_forward.1} parent=11 // pred_fallthru
        _
      // Predicated region
      $region33: #{medium_resnet_forward.1} parent=11 // pred_check
        %p639 = pneg %p184
      $region34: #{medium_resnet_forward.1} parent=11 // pred_check_branch
        %641 = sbr.rel (%p639) target = $region36
      $region35: #{medium_resnet_forward.1} parent=11 // pred_region
        _
      $region36: #{medium_resnet_forward.1} parent=11 // pred_fallthru
        _
      // Predicated region
      $region37: #{medium_resnet_forward.1} parent=11 // pred_check
        %p642 = pneg %p205
      $region38: #{medium_resnet_forward.1} parent=11 // pred_check_branch
        %644 = sbr.rel (%p642) target = $region40
      $region39: #{medium_resnet_forward.1} parent=11 // pred_region
        _
      $region40: #{medium_resnet_forward.1} parent=11 // pred_fallthru
        _
      // Predicated region
      $region41: #{medium_resnet_forward.1} parent=11 // pred_check
        %p645 = pneg %p226
      $region42: #{medium_resnet_forward.1} parent=11 // pred_check_branch
        %647 = sbr.rel (%p645) target = $region44
      $region43: #{medium_resnet_forward.1} parent=11 // pred_region
        _
      $region44: #{medium_resnet_forward.1} parent=11 // pred_fallthru
        _
      // Predicated region
      $region45: #{medium_resnet_forward.1} parent=11 // pred_check
        %p648 = pneg %p247
      $region46: #{medium_resnet_forward.1} parent=11 // pred_check_branch
        %650 = sbr.rel (%p648) target = $region48
      $region47: #{medium_resnet_forward.1} parent=11 // pred_region
        _
      $region48: #{medium_resnet_forward.1} parent=11 // pred_fallthru
        _
      // Predicated region
      $region49: #{medium_resnet_forward.1} parent=11 // pred_check
        %p651 = pneg %p268
      $region50: #{medium_resnet_forward.1} parent=11 // pred_check_branch
        %653 = sbr.rel (%p651) target = $region52
      $region51: #{medium_resnet_forward.1} parent=11 // pred_region
        _
      $region52: #{medium_resnet_forward.1} parent=11 // pred_fallthru
        _
      // Predicated region
      $region53: #{medium_resnet_forward.1} parent=11 // pred_check
        %p654 = pneg %p289
      $region54: #{medium_resnet_forward.1} parent=11 // pred_check_branch
        %656 = sbr.rel (%p654) target = $region56
      $region55: #{medium_resnet_forward.1} parent=11 // pred_region
        _
      $region56: #{medium_resnet_forward.1} parent=11 // pred_fallthru
        _
      // Predicated region
      $region57: #{medium_resnet_forward.1} parent=11 // pred_check
        %p657 = pneg %p310
      $region58: #{medium_resnet_forward.1} parent=11 // pred_check_branch
        %659 = sbr.rel (%p657) target = $region60
      $region59: #{medium_resnet_forward.1} parent=11 // pred_region
        _
      $region60: #{medium_resnet_forward.1} parent=11 // pred_fallthru
        _
      // Predicated region
      $region61: #{medium_resnet_forward.1} parent=11 // pred_check
        %p660 = pneg %p331
      $region62: #{medium_resnet_forward.1} parent=11 // pred_check_branch
        %662 = sbr.rel (%p660) target = $region64
      $region63: #{medium_resnet_forward.1} parent=11 // pred_region
        _
      $region64: #{medium_resnet_forward.1} parent=11 // pred_fallthru
        _
      // Predicated region
      $region65: #{medium_resnet_forward.1} parent=11 // pred_check
        %p663 = pneg %p352
      $region66: #{medium_resnet_forward.1} parent=11 // pred_check_branch
        %665 = sbr.rel (%p663) target = $region68
      $region67: #{medium_resnet_forward.1} parent=11 // pred_region
        _
      $region68: #{medium_resnet_forward.1} parent=11 // pred_fallthru
        _
      // Predicated region
      $region69: #{medium_resnet_forward.1} parent=11 // pred_check
        %p666 = pneg %p373
      $region70: #{medium_resnet_forward.1} parent=11 // pred_check_branch
        %668 = sbr.rel (%p666) target = $region72
      $region71: #{medium_resnet_forward.1} parent=11 // pred_region
        _
      $region72: #{medium_resnet_forward.1} parent=11 // pred_fallthru
        _
      // Predicated region
      $region73: #{medium_resnet_forward.1} parent=11 // pred_check
        %p669 = pneg %p394
      $region74: #{medium_resnet_forward.1} parent=11 // pred_check_branch
        %671 = sbr.rel (%p669) target = $region76
      $region75: #{medium_resnet_forward.1} parent=11 // pred_region
        _
      $region76: #{medium_resnet_forward.1} parent=11 // pred_fallthru
        _
      // Predicated region
      $region77: #{medium_resnet_forward.1} parent=11 // pred_check
        %p672 = pneg %p415
      $region78: #{medium_resnet_forward.1} parent=11 // pred_check_branch
        %674 = sbr.rel (%p672) target = $region80
      $region79: #{medium_resnet_forward.1} parent=11 // pred_region
        _
      $region80: #{medium_resnet_forward.1} parent=11 // pred_fallthru
        _
      // Predicated region
      $region81: #{medium_resnet_forward.1} parent=11 // pred_check
        %p675 = pneg %p436
      $region82: #{medium_resnet_forward.1} parent=11 // pred_check_branch
        %677 = sbr.rel (%p675) target = $region84
      $region83: #{medium_resnet_forward.1} parent=11 // pred_region
        _
      $region84: #{medium_resnet_forward.1} parent=11 // pred_fallthru
        _
      // Predicated region
      $region85: #{medium_resnet_forward.1} parent=11 // pred_check
        %p678 = pneg %p457
      $region86: #{medium_resnet_forward.1} parent=11 // pred_check_branch
        %680 = sbr.rel (%p678) target = $region88
      $region87: #{medium_resnet_forward.1} parent=11 // pred_region
        _
      $region88: #{medium_resnet_forward.1} parent=11 // pred_fallthru
        _
      // Predicated region
      $region89: #{medium_resnet_forward.1} parent=11 // pred_check
        %p681 = pneg %p478
      $region90: #{medium_resnet_forward.1} parent=11 // pred_check_branch
        %683 = sbr.rel (%p681) target = $region92
      $region91: #{medium_resnet_forward.1} parent=11 // pred_region
        _
      $region92: #{medium_resnet_forward.1} parent=11 // pred_fallthru
        _
      // Predicated region
      $region93: #{medium_resnet_forward.1} parent=11 // pred_check
        %p684 = pneg %p499
      $region94: #{medium_resnet_forward.1} parent=11 // pred_check_branch
        %686 = sbr.rel (%p684) target = $region96
      $region95: #{medium_resnet_forward.1} parent=11 // pred_region
        _
      $region96: #{medium_resnet_forward.1} parent=11 // pred_fallthru
        _
      // Predicated region
      $region97: #{medium_resnet_forward.1} parent=11 // pred_check
        %p687 = pneg %p520
      $region98: #{medium_resnet_forward.1} parent=11 // pred_check_branch
        %689 = sbr.rel (%p687) target = $region100
      $region99: #{medium_resnet_forward.1} parent=11 // pred_region
        _
      $region100: #{medium_resnet_forward.1} parent=11 // pred_fallthru
        _
      // Predicated region
      $region101: #{medium_resnet_forward.1} parent=11 // pred_check
        %p690 = pneg %p541
      $region102: #{medium_resnet_forward.1} parent=11 // pred_check_branch
        %692 = sbr.rel (%p690) target = $region104
      $region103: #{medium_resnet_forward.1} parent=11 // pred_region
        _
      $region104: #{medium_resnet_forward.1} parent=11 // pred_fallthru
        _
      // Predicated region
      $region105: #{medium_resnet_forward.1} parent=11 // pred_check
        %p693 = pneg %p562
      $region106: #{medium_resnet_forward.1} parent=11 // pred_check_branch
        %695 = sbr.rel (%p693) target = $region108
      $region107: #{medium_resnet_forward.1} parent=11 // pred_region
        _
      $region108: #{medium_resnet_forward.1} parent=11 // pred_fallthru
        _
      // Predicated region
      $region109: #{medium_resnet_forward.1} parent=11 // pred_check
        %p696 = pneg %p583
      $region110: #{medium_resnet_forward.1} parent=11 // pred_check_branch
        %698 = sbr.rel (%p696) target = $region112
      $region111: #{medium_resnet_forward.1} parent=11 // pred_region
        _
      $region112: #{medium_resnet_forward.1} parent=11 // pred_fallthru
        _
    $region12: #{medium_resnet_forward.1} parent=5 // pred_fallthru
      _
    %p699 = scmp.lt.s32.totalorder %s32, 2
    // Predicated region
    $region113: #{medium_resnet_forward.1} parent=5 // pred_check
      %p700 = pneg %p699
    $region114: #{medium_resnet_forward.1} parent=5 // pred_check_branch
      %702 = sbr.rel (%p700) target = $region116
    $region115: #{medium_resnet_forward.1} parent=5 // pred_region
      // Predicated region
      $region117: #{medium_resnet_forward.1} parent=115 // pred_check
        %p703 = pneg %p52
      $region118: #{medium_resnet_forward.1} parent=115 // pred_check_branch
        %705 = sbr.rel (%p703) target = $region120
      $region119: #{medium_resnet_forward.1} parent=115 // pred_region
        %p706 = scmp.lt.s32.totalorder %s32, 1
        %s707 = scalar_select %p706, %s32, 1
        %s708 = smul.addr %s707, 2
        %s709 = smul.addr %s708, 8
        %s710 = scalar_lea.vmem %s0, %s709
      $region120: #{medium_resnet_forward.1} parent=115 // pred_fallthru
        _
    $region116: #{medium_resnet_forward.1} parent=5 // pred_fallthru
      _
    %p711 = scmp.le.s32.totalorder 1, %s32
    %p712 = scmp.lt.s32.totalorder %s32, 3
    %p713 = pnand %p711, %p712
    %p714 = pneg %p713
    // Predicated region
    $region121: #{medium_resnet_forward.1} parent=5 // pred_check
      _
    $region122: #{medium_resnet_forward.1} parent=5 // pred_check_branch
      %716 = sbr.rel (%p713) target = $region124
    $region123: #{medium_resnet_forward.1} parent=5 // pred_region
      %s717 = ssub.s32 %s32, 1
      %p718 = scmp.lt.s32.totalorder %s37, 1
      %s719 = scalar_select %p718, %s37, 1
      %s720 = smul.addr %s719, 2
      %s721 = smul.addr %s720, 8
      %s722 = scalar_lea.vmem %s0, %s721
      %p723 = pneg %p58
      %p724 = pneg %p55
      %p725 = pneg %p79
      %p726 = pneg %p76
      %p727 = pneg %p100
      %p728 = pneg %p97
      %p729 = pneg %p121
      %p730 = pneg %p118
      %p731 = pneg %p142
      %p732 = pneg %p139
      %p733 = pneg %p163
      %p734 = pneg %p160
      %p735 = pneg %p184
      %p736 = pneg %p181
      %p737 = pneg %p205
      %p738 = pneg %p202
      %p739 = pneg %p226
      %p740 = pneg %p223
      %p741 = pneg %p247
      %p742 = pneg %p244
      %p743 = pneg %p268
      %p744 = pneg %p265
      %p745 = pneg %p289
      %p746 = pneg %p286
      %p747 = pneg %p310
      %p748 = pneg %p307
      %p749 = pneg %p331
      %p750 = pneg %p328
      %p751 = pneg %p352
      %p752 = pneg %p349
      %p753 = pneg %p373
      %p754 = pneg %p370
      %p755 = pneg %p394
      %p756 = pneg %p391
      %p757 = pneg %p415
      %p758 = pneg %p412
      %p759 = pneg %p436
      %p760 = pneg %p433
      %p761 = pneg %p457
      %p762 = pneg %p454
      %p763 = pneg %p478
      %p764 = pneg %p475
      %p765 = pneg %p499
      %p766 = pneg %p496
      %p767 = pneg %p520
      %p768 = pneg %p517
      %p769 = pneg %p541
      %p770 = pneg %p538
      %p771 = pneg %p562
      %p772 = pneg %p559
      %p773 = pneg %p583
      %p774 = pneg %p580
      %p775 = pneg %p609
      %p776 = pneg %p606
      %p777 = scmp.lt.s32.totalorder %s37, 1
      %s778 = scalar_select %p777, %s37, 1
      %s779 = smul.addr %s778, 8
      %s780 = scalar_lea.vmem %s26, %s779
      %p781 = scmp.lt.s32.totalorder %s37, 1
      %s782 = scalar_select %p781, %s37, 1
      %s783 = smul.addr %s782, 2
      %s784 = smul.addr %s783, 8
      %s785 = scalar_lea.vmem %s0, %s784
      %p786 = scmp.lt.s32.totalorder %s37, 1
      %s787 = scalar_select %p786, %s37, 1
      %s788 = smul.addr %s787, 8
      %s789 = scalar_lea.vmem %s26, %s788
      %v791 = vld [vmem:[%s1] sm:$0xff]
      %v792 = vld [vmem:[%s1 + $0x8] sm:$0xff]
      %v793 = vld [vmem:[%s1 + $0x10] sm:$0x1]
      %v794 = vld [vmem:[%s1 + $0x18] sm:$0x1]
      %v795 = vld [vmem:[%s2] sm:$0xff]
      %v796 = vld [vmem:[%s2 + $0x8] sm:$0x1]
      %v797 = vld [vmem:[%s785] sm:$0xff]
      %v798 = vld [vmem:[%s785 + $0x8] sm:$0xff]
      %799 = vrot.lane.b32.xlu0 %v797, 17
      %v800 = vpop.permute.xlu0 %799
      %801 = vrot.lane.b32.xlu0 %v798, 17
      %v802 = vpop.permute.xlu0 %801
      %v803 = vlaneseq
      %v804 = vand.u32 %v803, 127
      %vm805 = vcmp.lt.s32.totalorder %v804, 17
      %v806 = vsel %vm805, %v800, %v802
      %v807 = vsel %vm805, %v802, %v800
      %v808 = vlaneseq
      %v809 = vshrl.u32 %v808, 7
      %v810 = vsub.s32 0, %v809
      %v811 = vrot.slane %v791, %v810
      %v812 = vlaneseq
      %v813 = vshrl.u32 %v812, 7
      %v814 = vsub.s32 0, %v813
      %v815 = vrot.slane %v792, %v814
      %v816 = vmul.f32 %v807, %v811
      %v817 = vmul.f32 %v806, %v815
      %818 = vrot.lane.b32.xlu0 %v797, 16
      %v819 = vpop.permute.xlu0 %818
      %820 = vrot.lane.b32.xlu0 %v798, 16
      %v821 = vpop.permute.xlu0 %820
      %vm822 = vcmp.lt.s32.totalorder %v804, 16
      %v823 = vsel %vm822, %v819, %v821
      %v824 = vsel %vm822, %v821, %v819
      %v825 = vlaneseq
      %v826 = vshrl.u32 %v825, 7
      %v827 = vsub.s32 1, %v826
      %v828 = vrot.slane %v791, %v827
      %v829 = vlaneseq
      %v830 = vshrl.u32 %v829, 7
      %v831 = vsub.s32 1, %v830
      %v832 = vrot.slane %v792, %v831
      %v833 = vmul.f32 %v824, %v828
      %v834 = vmul.f32 %v823, %v832
      %835 = vrot.lane.b32.xlu0 %v797, 15
      %v836 = vpop.permute.xlu0 %835
      %837 = vrot.lane.b32.xlu0 %v798, 15
      %v838 = vpop.permute.xlu0 %837
      %vm839 = vcmp.lt.s32.totalorder %v804, 15
      %v840 = vsel %vm839, %v836, %v838
      %v841 = vsel %vm839, %v838, %v836
      %v842 = vlaneseq
      %v843 = vshrl.u32 %v842, 7
      %v844 = vsub.s32 2, %v843
      %v845 = vrot.slane %v791, %v844
      %v846 = vlaneseq
      %v847 = vshrl.u32 %v846, 7
      %v848 = vsub.s32 2, %v847
      %v849 = vrot.slane %v792, %v848
      %v850 = vmul.f32 %v841, %v845
      %v851 = vmul.f32 %v840, %v849
      %852 = vrot.lane.b32.xlu0 %v797, 1
      %v853 = vpop.permute.xlu0 %852
      %854 = vrot.lane.b32.xlu0 %v798, 1
      %v855 = vpop.permute.xlu0 %854
      %vm856 = vcmp.lt.s32.totalorder %v804, 1
      %v857 = vsel %vm856, %v853, %v855
      %v858 = vsel %vm856, %v855, %v853
      %v859 = vlaneseq
      %v860 = vshrl.u32 %v859, 7
      %v861 = vsub.s32 3, %v860
      %v862 = vrot.slane %v791, %v861
      %v863 = vlaneseq
      %v864 = vshrl.u32 %v863, 7
      %v865 = vsub.s32 3, %v864
      %v866 = vrot.slane %v792, %v865
      %v867 = vmul.f32 %v858, %v862
      %v868 = vmul.f32 %v857, %v866
      %v869 = vlaneseq
      %v870 = vshrl.u32 %v869, 7
      %v871 = vsub.s32 4, %v870
      %v872 = vrot.slane %v791, %v871
      %v873 = vlaneseq
      %v874 = vshrl.u32 %v873, 7
      %v875 = vsub.s32 4, %v874
      %v876 = vrot.slane %v792, %v875
      %v877 = vmul.f32 %v797, %v872
      %v878 = vmul.f32 %v798, %v876
      %879 = vrot.lane.b32.xlu0 %v797, 127
      %v880 = vpop.permute.xlu0 %879
      %881 = vrot.lane.b32.xlu0 %v798, 127
      %v882 = vpop.permute.xlu0 %881
      %vm883 = vcmp.lt.s32.totalorder %v804, 127
      %v884 = vsel %vm883, %v880, %v882
      %v885 = vsel %vm883, %v882, %v880
      %v886 = vlaneseq
      %v887 = vshrl.u32 %v886, 7
      %v888 = vsub.s32 5, %v887
      %v889 = vrot.slane %v791, %v888
      %v890 = vlaneseq
      %v891 = vshrl.u32 %v890, 7
      %v892 = vsub.s32 5, %v891
      %v893 = vrot.slane %v792, %v892
      %v894 = vmul.f32 %v884, %v889
      %v895 = vmul.f32 %v885, %v893
      %896 = vrot.lane.b32.xlu0 %v797, 113
      %v897 = vpop.permute.xlu0 %896
      %898 = vrot.lane.b32.xlu0 %v798, 113
      %v899 = vpop.permute.xlu0 %898
      %vm900 = vcmp.lt.s32.totalorder %v804, 113
      %v901 = vsel %vm900, %v897, %v899
      %v902 = vsel %vm900, %v899, %v897
      %v903 = vlaneseq
      %v904 = vshrl.u32 %v903, 7
      %v905 = vsub.s32 6, %v904
      %v906 = vrot.slane %v791, %v905
      %v907 = vlaneseq
      %v908 = vshrl.u32 %v907, 7
      %v909 = vsub.s32 6, %v908
      %v910 = vrot.slane %v792, %v909
      %v911 = vmul.f32 %v901, %v906
      %v912 = vmul.f32 %v902, %v910
      %913 = vrot.lane.b32.xlu0 %v797, 112
      %v914 = vpop.permute.xlu0 %913
      %915 = vrot.lane.b32.xlu0 %v798, 112
      %v916 = vpop.permute.xlu0 %915
      %vm917 = vcmp.lt.s32.totalorder %v804, 112
      %v918 = vsel %vm917, %v914, %v916
      %v919 = vsel %vm917, %v916, %v914
      %v920 = vlaneseq
      %v921 = vshrl.u32 %v920, 7
      %v922 = vsub.s32 7, %v921
      %v923 = vrot.slane %v791, %v922
      %v924 = vlaneseq
      %v925 = vshrl.u32 %v924, 7
      %v926 = vsub.s32 7, %v925
      %v927 = vrot.slane %v792, %v926
      %v928 = vmul.f32 %v918, %v923
      %v929 = vmul.f32 %v919, %v927
      %930 = vrot.lane.b32.xlu0 %v797, 111
      %v931 = vpop.permute.xlu0 %930
      %932 = vrot.lane.b32.xlu0 %v798, 111
      %v933 = vpop.permute.xlu0 %932
      %vm934 = vcmp.lt.s32.totalorder %v804, 111
      %v935 = vsel %vm934, %v931, %v933
      %v936 = vsel %vm934, %v933, %v931
      %v937 = vlaneseq
      %v938 = vshrl.u32 %v937, 7
      %v939 = vsub.s32 0, %v938
      %v940 = vrot.slane %v793, %v939
      %v941 = vlaneseq
      %v942 = vshrl.u32 %v941, 7
      %v943 = vsub.s32 0, %v942
      %v944 = vrot.slane %v794, %v943
      %v945 = vmul.f32 %v935, %v940
      %v946 = vmul.f32 %v936, %v944
      %v947 = vpack.c.bf16 %v833, %v816
      %v948 = vpack.c.bf16 %v834, %v817
      %v949 = vpack.c.bf16 %v867, %v850
      %v950 = vpack.c.bf16 %v868, %v851
      %v951 = vpack.c.bf16 %v894, %v877
      %v952 = vpack.c.bf16 %v895, %v878
      %v953 = vpack.c.bf16 %v928, %v911
      %v954 = vpack.c.bf16 %v929, %v912
      %v955 = vpack.c.bf16 %v945, %v945
      %v956 = vpack.c.bf16 %v946, %v946
      %v957 = vld [vmem:[%s4] sm:$0xf]
      %v958 = vld [vmem:[%s4 + $0x4] sm:$0xf]
      %v959 = vld [vmem:[%s5] sm:$0xff]
      %v960 = vld [vmem:[%s5 + $0x8] sm:$0xff]
      %962 = vset.pattern.permute.xlu0 0
      %963 = vperm.xlu0 %962, %v959
      %v964 = vpop.permute.xlu0 %963
      %967 = vset.pattern.permute.xlu0 0
      %968 = vperm.xlu0 %967, %v960
      %v969 = vpop.permute.xlu0 %968
      %v973 = vunpack.c.l.b16 %v957
      %v974 = vunpack.c.l.b16 %v958
      %v975 = vpack.c.b16 %v974, %v973
      %vm976 = vcmask 588800
      %v978 = vsel %vm976, %v975, 0
      %vm980 = vcmask 1043456
      %v982 = vsel %vm980, %v955, 0
      %v985 = vsel %vm980, %v956, 0
      %987 = vmatprep.subr.bf16.mxu0 %v948
      %988 = vmatpush1.bf16.msra.mxu0 %v947
      %989 = vmatprep.subr.bf16.mxu0 %v950
      %990 = vmatpush1.bf16.msra.mxu0 %v949
      %991 = vmatprep.subr.bf16.mxu0 %v952
      %992 = vmatpush1.bf16.msra.mxu0 %v951
      %993 = vmatprep.subr.bf16.mxu0 %v954
      %994 = vmatpush1.bf16.msra.mxu0 %v953
      %995 = vmatprep.subr.bf16.mxu0 %v985
      %996 = vmatpush1.bf16.msra.mxu0 %v982
      %997 = vmatprep.subr.bf16.mxu0 0
      %998 = vmatpush1.bf16.msra.mxu0 0
      %999 = vmatprep.subr.bf16.mxu0 0
      %1000 = vmatpush1.bf16.msra.mxu0 0
      %1001 = vmatprep.subr.bf16.mxu0 0
      %1002 = vmatpush1.bf16.msra.mxu0 0
      %1003 = vmatprep.subr.bf16.mxu0 0
      %1004 = vmatpush1.bf16.msra.mxu0 0
      %1005 = vmatprep.subr.bf16.mxu0 0
      %1006 = vmatpush1.bf16.msra.mxu0 0
      %1007 = vmatprep.subr.bf16.mxu0 0
      %1008 = vmatpush1.bf16.msra.mxu0 0
      %1009 = vmatprep.subr.bf16.mxu0 0
      %1010 = vmatpush1.bf16.msra.mxu0 0
      %1011 = vmatprep.subr.bf16.mxu0 0
      %1012 = vmatpush1.bf16.msra.mxu0 0
      %1013 = vmatprep.subr.bf16.mxu0 0
      %1014 = vmatpush1.bf16.msra.mxu0 0
      %1015 = vmatprep.subr.bf16.mxu0 0
      %1016 = vmatpush1.bf16.msra.mxu0 0
      %1017 = vmatprep.subr.bf16.mxu0 0
      %1018 = vmatpush1.bf16.msra.mxu0 0
      %1019 = vmatprep.mubr.bf16.mxu0 0
      %1020 = vmatmul.mubr.bf16.gmra.mrb[0].mxu0 %v978
      %v1021 = vpop.f32.mrb[0].mxu0
      %v1022 = vadd.f32 %v964, %v1021
      %v1023 = vpop.f32.mrb[0].mxu0
      %v1024 = vadd.f32 %v964, %v1023
      %v1025 = vpop.f32.mrb[0].mxu0
      %v1026 = vadd.f32 %v969, %v1025
      %v1027 = vpop.f32.mrb[0].mxu0
      %v1028 = vadd.f32 %v969, %v1027
      %1029 = vdwg.mxu0
      %v1030 = vmax.f32 %v1022, 0.0
      %v1031 = vmax.f32 %v1024, 0.0
      %v1032 = vmax.f32 %v1026, 0.0
      %v1033 = vmax.f32 %v1028, 0.0
      %1034 = vrot.lane.b32.xlu0 %v1030, 17
      %v1035 = vpop.permute.xlu0 %1034
      %1036 = vrot.lane.b32.xlu0 %v1032, 17
      %v1037 = vpop.permute.xlu0 %1036
      %1038 = vrot.lane.b32.xlu0 %v1031, 17
      %v1039 = vpop.permute.xlu0 %1038
      %1040 = vrot.lane.b32.xlu0 %v1033, 17
      %v1041 = vpop.permute.xlu0 %1040
      %v1042 = vsel %vm805, %v1035, %v1039
      %v1043 = vsel %vm805, %v1037, %v1041
      %v1044 = vsel %vm805, %v1039, %v1035
      %v1045 = vsel %vm805, %v1041, %v1037
      %v1046 = vmul.f32 %v1044, %v811
      %v1047 = vmul.f32 %v1042, %v815
      %v1048 = vmul.f32 %v1045, %v811
      %v1049 = vmul.f32 %v1043, %v815
      %1050 = vrot.lane.b32.xlu0 %v1030, 16
      %v1051 = vpop.permute.xlu0 %1050
      %1052 = vrot.lane.b32.xlu0 %v1032, 16
      %v1053 = vpop.permute.xlu0 %1052
      %1054 = vrot.lane.b32.xlu0 %v1031, 16
      %v1055 = vpop.permute.xlu0 %1054
      %1056 = vrot.lane.b32.xlu0 %v1033, 16
      %v1057 = vpop.permute.xlu0 %1056
      %v1058 = vsel %vm822, %v1051, %v1055
      %v1059 = vsel %vm822, %v1053, %v1057
      %v1060 = vsel %vm822, %v1055, %v1051
      %v1061 = vsel %vm822, %v1057, %v1053
      %v1062 = vmul.f32 %v1060, %v828
      %v1063 = vmul.f32 %v1058, %v832
      %v1064 = vmul.f32 %v1061, %v828
      %v1065 = vmul.f32 %v1059, %v832
      %1066 = vrot.lane.b32.xlu0 %v1030, 15
      %v1067 = vpop.permute.xlu0 %1066
      %1068 = vrot.lane.b32.xlu0 %v1032, 15
      %v1069 = vpop.permute.xlu0 %1068
      %1070 = vrot.lane.b32.xlu0 %v1031, 15
      %v1071 = vpop.permute.xlu0 %1070
      %1072 = vrot.lane.b32.xlu0 %v1033, 15
      %v1073 = vpop.permute.xlu0 %1072
      %v1074 = vsel %vm839, %v1067, %v1071
      %v1075 = vsel %vm839, %v1069, %v1073
      %v1076 = vsel %vm839, %v1071, %v1067
      %v1077 = vsel %vm839, %v1073, %v1069
      %v1078 = vmul.f32 %v1076, %v845
      %v1079 = vmul.f32 %v1074, %v849
      %v1080 = vmul.f32 %v1077, %v845
      %v1081 = vmul.f32 %v1075, %v849
      %1082 = vrot.lane.b32.xlu0 %v1030, 1
      %v1083 = vpop.permute.xlu0 %1082
      %1084 = vrot.lane.b32.xlu0 %v1032, 1
      %v1085 = vpop.permute.xlu0 %1084
      %1086 = vrot.lane.b32.xlu0 %v1031, 1
      %v1087 = vpop.permute.xlu0 %1086
      %1088 = vrot.lane.b32.xlu0 %v1033, 1
      %v1089 = vpop.permute.xlu0 %1088
      %v1090 = vsel %vm856, %v1083, %v1087
      %v1091 = vsel %vm856, %v1085, %v1089
      %v1092 = vsel %vm856, %v1087, %v1083
      %v1093 = vsel %vm856, %v1089, %v1085
      %v1094 = vmul.f32 %v1092, %v862
      %v1095 = vmul.f32 %v1090, %v866
      %v1096 = vmul.f32 %v1093, %v862
      %v1097 = vmul.f32 %v1091, %v866
      %v1098 = vmul.f32 %v1030, %v872
      %v1099 = vmul.f32 %v1031, %v876
      %v1100 = vmul.f32 %v1032, %v872
      %v1101 = vmul.f32 %v1033, %v876
      %1102 = vrot.lane.b32.xlu0 %v1030, 127
      %v1103 = vpop.permute.xlu0 %1102
      %1104 = vrot.lane.b32.xlu0 %v1032, 127
      %v1105 = vpop.permute.xlu0 %1104
      %1106 = vrot.lane.b32.xlu0 %v1031, 127
      %v1107 = vpop.permute.xlu0 %1106
      %1108 = vrot.lane.b32.xlu0 %v1033, 127
      %v1109 = vpop.permute.xlu0 %1108
      %v1110 = vsel %vm883, %v1103, %v1107
      %v1111 = vsel %vm883, %v1105, %v1109
      %v1112 = vsel %vm883, %v1107, %v1103
      %v1113 = vsel %vm883, %v1109, %v1105
      %v1114 = vmul.f32 %v1110, %v889
      %v1115 = vmul.f32 %v1112, %v893
      %v1116 = vmul.f32 %v1111, %v889
      %v1117 = vmul.f32 %v1113, %v893
      %1118 = vrot.lane.b32.xlu0 %v1030, 113
      %v1119 = vpop.permute.xlu0 %1118
      %1120 = vrot.lane.b32.xlu0 %v1032, 113
      %v1121 = vpop.permute.xlu0 %1120
      %1122 = vrot.lane.b32.xlu0 %v1031, 113
      %v1123 = vpop.permute.xlu0 %1122
      %1124 = vrot.lane.b32.xlu0 %v1033, 113
      %v1125 = vpop.permute.xlu0 %1124
      %v1126 = vsel %vm900, %v1119, %v1123
      %v1127 = vsel %vm900, %v1121, %v1125
      %v1128 = vsel %vm900, %v1123, %v1119
      %v1129 = vsel %vm900, %v1125, %v1121
      %v1130 = vmul.f32 %v1126, %v906
      %v1131 = vmul.f32 %v1128, %v910
      %v1132 = vmul.f32 %v1127, %v906
      %v1133 = vmul.f32 %v1129, %v910
      %1134 = vrot.lane.b32.xlu0 %v1030, 112
      %v1135 = vpop.permute.xlu0 %1134
      %1136 = vrot.lane.b32.xlu0 %v1032, 112
      %v1137 = vpop.permute.xlu0 %1136
      %1138 = vrot.lane.b32.xlu0 %v1031, 112
      %v1139 = vpop.permute.xlu0 %1138
      %1140 = vrot.lane.b32.xlu0 %v1033, 112
      %v1141 = vpop.permute.xlu0 %1140
      %v1142 = vsel %vm917, %v1135, %v1139
      %v1143 = vsel %vm917, %v1137, %v1141
      %v1144 = vsel %vm917, %v1139, %v1135
      %v1145 = vsel %vm917, %v1141, %v1137
      %v1146 = vmul.f32 %v1142, %v923
      %v1147 = vmul.f32 %v1144, %v927
      %v1148 = vmul.f32 %v1143, %v923
      %v1149 = vmul.f32 %v1145, %v927
      %1150 = vrot.lane.b32.xlu0 %v1030, 111
      %v1151 = vpop.permute.xlu0 %1150
      %1152 = vrot.lane.b32.xlu0 %v1032, 111
      %v1153 = vpop.permute.xlu0 %1152
      %1154 = vrot.lane.b32.xlu0 %v1031, 111
      %v1155 = vpop.permute.xlu0 %1154
      %1156 = vrot.lane.b32.xlu0 %v1033, 111
      %v1157 = vpop.permute.xlu0 %1156
      %v1158 = vsel %vm934, %v1151, %v1155
      %v1159 = vsel %vm934, %v1153, %v1157
      %v1160 = vsel %vm934, %v1155, %v1151
      %v1161 = vsel %vm934, %v1157, %v1153
      %v1162 = vmul.f32 %v1158, %v940
      %v1163 = vmul.f32 %v1160, %v944
      %v1164 = vmul.f32 %v1159, %v940
      %v1165 = vmul.f32 %v1161, %v944
      %v1166 = vpack.c.bf16 %v1048, %v1046
      %v1167 = vpack.c.bf16 %v1049, %v1047
      %v1168 = vpack.c.bf16 %v1064, %v1062
      %v1169 = vpack.c.bf16 %v1065, %v1063
      %v1170 = vpack.c.bf16 %v1080, %v1078
      %v1171 = vpack.c.bf16 %v1081, %v1079
      %v1172 = vpack.c.bf16 %v1096, %v1094
      %v1173 = vpack.c.bf16 %v1097, %v1095
      %v1174 = vpack.c.bf16 %v1100, %v1098
      %v1175 = vpack.c.bf16 %v1101, %v1099
      %v1176 = vpack.c.bf16 %v1116, %v1114
      %v1177 = vpack.c.bf16 %v1117, %v1115
      %v1178 = vpack.c.bf16 %v1132, %v1130
      %v1179 = vpack.c.bf16 %v1133, %v1131
      %v1180 = vpack.c.bf16 %v1148, %v1146
      %v1181 = vpack.c.bf16 %v1149, %v1147
      %v1182 = vpack.c.bf16 %v1164, %v1162
      %v1183 = vpack.c.bf16 %v1165, %v1163
      %v1184 = vld [vmem:[%s6] sm:$0xff]
      %v1185 = vld [vmem:[%s6 + $0x8] sm:$0xff]
      %v1186 = vld [vmem:[%s7] sm:$0xff]
      %v1187 = vld [vmem:[%s7 + $0x8] sm:$0xff]
      %1189 = vset.pattern.permute.xlu0 0
      %1190 = vperm.xlu0 %1189, %v1186
      %v1191 = vpop.permute.xlu0 %1190
      %1194 = vset.pattern.permute.xlu0 0
      %1195 = vperm.xlu0 %1194, %v1187
      %v1196 = vpop.permute.xlu0 %1195
      %v1200 = vunpack.c.l.b16 %v1184
      %v1201 = vunpack.c.h.b16 %v1184
      %v1202 = vunpack.c.l.b16 %v1185
      %v1203 = vunpack.c.h.b16 %v1185
      %v1204 = vpack.c.b16 %v1202, %v1200
      %v1205 = vpack.c.b16 %v1203, %v1201
      %vm1207 = vcmask 130048
      %v1209 = vsel %vm1207, %v1205, 0
      %1211 = vmatprep.subr.bf16.mxu0 %v1167
      %1212 = vmatpush1.bf16.msra.mxu0 %v1166
      %1213 = vmatprep.subr.bf16.mxu0 %v1169
      %1214 = vmatpush1.bf16.msra.mxu0 %v1168
      %1215 = vmatprep.subr.bf16.mxu0 %v1171
      %1216 = vmatpush1.bf16.msra.mxu0 %v1170
      %1217 = vmatprep.subr.bf16.mxu0 %v1173
      %1218 = vmatpush1.bf16.msra.mxu0 %v1172
      %1219 = vmatprep.subr.bf16.mxu0 %v1175
      %1220 = vmatpush1.bf16.msra.mxu0 %v1174
      %1221 = vmatprep.subr.bf16.mxu0 %v1177
      %1222 = vmatpush1.bf16.msra.mxu0 %v1176
      %1223 = vmatprep.subr.bf16.mxu0 %v1179
      %1224 = vmatpush1.bf16.msra.mxu0 %v1178
      %1225 = vmatprep.subr.bf16.mxu0 %v1181
      %1226 = vmatpush1.bf16.msra.mxu0 %v1180
      %1227 = vmatprep.subr.bf16.mxu0 %v1183
      %1228 = vmatpush1.bf16.msra.mxu0 %v1182
      %1229 = vmatprep.subr.bf16.mxu0 0
      %1230 = vmatpush1.bf16.msra.mxu0 0
      %1231 = vmatprep.subr.bf16.mxu0 0
      %1232 = vmatpush1.bf16.msra.mxu0 0
      %1233 = vmatprep.subr.bf16.mxu0 0
      %1234 = vmatpush1.bf16.msra.mxu0 0
      %1235 = vmatprep.subr.bf16.mxu0 0
      %1236 = vmatpush1.bf16.msra.mxu0 0
      %1237 = vmatprep.subr.bf16.mxu0 0
      %1238 = vmatpush1.bf16.msra.mxu0 0
      %1239 = vmatprep.subr.bf16.mxu0 0
      %1240 = vmatpush1.bf16.msra.mxu0 0
      %1241 = vmatprep.subr.bf16.mxu0 0
      %1242 = vmatpush1.bf16.msra.mxu0 0
      %1243 = vmatprep.mubr.bf16.mxu0 %v1209
      %1244 = vmatmul.mubr.bf16.gmra.mrb[0].mxu0 %v1204
      %v1245 = vpop.f32.mrb[0].mxu0
      %v1246 = vadd.f32 %v1191, %v1245
      %v1247 = vpop.f32.mrb[0].mxu0
      %v1248 = vadd.f32 %v1191, %v1247
      %v1249 = vpop.f32.mrb[0].mxu0
      %v1250 = vadd.f32 %v1196, %v1249
      %v1251 = vpop.f32.mrb[0].mxu0
      %v1252 = vadd.f32 %v1196, %v1251
      %1253 = vdwg.mxu0
      %v1254 = vmax.f32 %v1246, 0.0
      %v1255 = vmax.f32 %v1248, 0.0
      %v1256 = vmax.f32 %v1250, 0.0
      %v1257 = vmax.f32 %v1252, 0.0
      %1258 = vrot.lane.b32.xlu0 %v1254, 17
      %v1259 = vpop.permute.xlu0 %1258
      %1260 = vrot.lane.b32.xlu0 %v1256, 17
      %v1261 = vpop.permute.xlu0 %1260
      %1262 = vrot.lane.b32.xlu0 %v1255, 17
      %v1263 = vpop.permute.xlu0 %1262
      %1264 = vrot.lane.b32.xlu0 %v1257, 17
      %v1265 = vpop.permute.xlu0 %1264
      %v1266 = vsel %vm805, %v1259, %v1263
      %v1267 = vsel %vm805, %v1261, %v1265
      %v1268 = vsel %vm805, %v1263, %v1259
      %v1269 = vsel %vm805, %v1265, %v1261
      %v1270 = vmul.f32 %v1268, %v811
      %v1271 = vmul.f32 %v1266, %v815
      %v1272 = vmul.f32 %v1269, %v811
      %v1273 = vmul.f32 %v1267, %v815
      %1274 = vrot.lane.b32.xlu0 %v1254, 16
      %v1275 = vpop.permute.xlu0 %1274
      %1276 = vrot.lane.b32.xlu0 %v1256, 16
      %v1277 = vpop.permute.xlu0 %1276
      %1278 = vrot.lane.b32.xlu0 %v1255, 16
      %v1279 = vpop.permute.xlu0 %1278
      %1280 = vrot.lane.b32.xlu0 %v1257, 16
      %v1281 = vpop.permute.xlu0 %1280
      %v1282 = vsel %vm822, %v1275, %v1279
      %v1283 = vsel %vm822, %v1277, %v1281
      %v1284 = vsel %vm822, %v1279, %v1275
      %v1285 = vsel %vm822, %v1281, %v1277
      %v1286 = vmul.f32 %v1284, %v828
      %v1287 = vmul.f32 %v1282, %v832
      %v1288 = vmul.f32 %v1285, %v828
      %v1289 = vmul.f32 %v1283, %v832
      %1290 = vrot.lane.b32.xlu0 %v1254, 15
      %v1291 = vpop.permute.xlu0 %1290
      %1292 = vrot.lane.b32.xlu0 %v1256, 15
      %v1293 = vpop.permute.xlu0 %1292
      %1294 = vrot.lane.b32.xlu0 %v1255, 15
      %v1295 = vpop.permute.xlu0 %1294
      %1296 = vrot.lane.b32.xlu0 %v1257, 15
      %v1297 = vpop.permute.xlu0 %1296
      %v1298 = vsel %vm839, %v1291, %v1295
      %v1299 = vsel %vm839, %v1293, %v1297
      %v1300 = vsel %vm839, %v1295, %v1291
      %v1301 = vsel %vm839, %v1297, %v1293
      %v1302 = vmul.f32 %v1300, %v845
      %v1303 = vmul.f32 %v1298, %v849
      %v1304 = vmul.f32 %v1301, %v845
      %v1305 = vmul.f32 %v1299, %v849
      %1306 = vrot.lane.b32.xlu0 %v1254, 1
      %v1307 = vpop.permute.xlu0 %1306
      %1308 = vrot.lane.b32.xlu0 %v1256, 1
      %v1309 = vpop.permute.xlu0 %1308
      %1310 = vrot.lane.b32.xlu0 %v1255, 1
      %v1311 = vpop.permute.xlu0 %1310
      %1312 = vrot.lane.b32.xlu0 %v1257, 1
      %v1313 = vpop.permute.xlu0 %1312
      %v1314 = vsel %vm856, %v1307, %v1311
      %v1315 = vsel %vm856, %v1309, %v1313
      %v1316 = vsel %vm856, %v1311, %v1307
      %v1317 = vsel %vm856, %v1313, %v1309
      %v1318 = vmul.f32 %v1316, %v862
      %v1319 = vmul.f32 %v1314, %v866
      %v1320 = vmul.f32 %v1317, %v862
      %v1321 = vmul.f32 %v1315, %v866
      %v1322 = vmul.f32 %v1254, %v872
      %v1323 = vmul.f32 %v1255, %v876
      %v1324 = vmul.f32 %v1256, %v872
      %v1325 = vmul.f32 %v1257, %v876
      %1326 = vrot.lane.b32.xlu0 %v1254, 127
      %v1327 = vpop.permute.xlu0 %1326
      %1328 = vrot.lane.b32.xlu0 %v1256, 127
      %v1329 = vpop.permute.xlu0 %1328
      %1330 = vrot.lane.b32.xlu0 %v1255, 127
      %v1331 = vpop.permute.xlu0 %1330
      %1332 = vrot.lane.b32.xlu0 %v1257, 127
      %v1333 = vpop.permute.xlu0 %1332
      %v1334 = vsel %vm883, %v1327, %v1331
      %v1335 = vsel %vm883, %v1329, %v1333
      %v1336 = vsel %vm883, %v1331, %v1327
      %v1337 = vsel %vm883, %v1333, %v1329
      %v1338 = vmul.f32 %v1334, %v889
      %v1339 = vmul.f32 %v1336, %v893
      %v1340 = vmul.f32 %v1335, %v889
      %v1341 = vmul.f32 %v1337, %v893
      %1342 = vrot.lane.b32.xlu0 %v1254, 113
      %v1343 = vpop.permute.xlu0 %1342
      %1344 = vrot.lane.b32.xlu0 %v1256, 113
      %v1345 = vpop.permute.xlu0 %1344
      %1346 = vrot.lane.b32.xlu0 %v1255, 113
      %v1347 = vpop.permute.xlu0 %1346
      %1348 = vrot.lane.b32.xlu0 %v1257, 113
      %v1349 = vpop.permute.xlu0 %1348
      %v1350 = vsel %vm900, %v1343, %v1347
      %v1351 = vsel %vm900, %v1345, %v1349
      %v1352 = vsel %vm900, %v1347, %v1343
      %v1353 = vsel %vm900, %v1349, %v1345
      %v1354 = vmul.f32 %v1350, %v906
      %v1355 = vmul.f32 %v1352, %v910
      %v1356 = vmul.f32 %v1351, %v906
      %v1357 = vmul.f32 %v1353, %v910
      %1358 = vrot.lane.b32.xlu0 %v1254, 112
      %v1359 = vpop.permute.xlu0 %1358
      %1360 = vrot.lane.b32.xlu0 %v1256, 112
      %v1361 = vpop.permute.xlu0 %1360
      %1362 = vrot.lane.b32.xlu0 %v1255, 112
      %v1363 = vpop.permute.xlu0 %1362
      %1364 = vrot.lane.b32.xlu0 %v1257, 112
      %v1365 = vpop.permute.xlu0 %1364
      %v1366 = vsel %vm917, %v1359, %v1363
      %v1367 = vsel %vm917, %v1361, %v1365
      %v1368 = vsel %vm917, %v1363, %v1359
      %v1369 = vsel %vm917, %v1365, %v1361
      %v1370 = vmul.f32 %v1366, %v923
      %v1371 = vmul.f32 %v1368, %v927
      %v1372 = vmul.f32 %v1367, %v923
      %v1373 = vmul.f32 %v1369, %v927
      %1374 = vrot.lane.b32.xlu0 %v1254, 111
      %v1375 = vpop.permute.xlu0 %1374
      %1376 = vrot.lane.b32.xlu0 %v1256, 111
      %v1377 = vpop.permute.xlu0 %1376
      %1378 = vrot.lane.b32.xlu0 %v1255, 111
      %v1379 = vpop.permute.xlu0 %1378
      %1380 = vrot.lane.b32.xlu0 %v1257, 111
      %v1381 = vpop.permute.xlu0 %1380
      %v1382 = vsel %vm934, %v1375, %v1379
      %v1383 = vsel %vm934, %v1377, %v1381
      %v1384 = vsel %vm934, %v1379, %v1375
      %v1385 = vsel %vm934, %v1381, %v1377
      %v1386 = vmul.f32 %v1382, %v940
      %v1387 = vmul.f32 %v1384, %v944
      %v1388 = vmul.f32 %v1383, %v940
      %v1389 = vmul.f32 %v1385, %v944
      %v1390 = vpack.c.bf16 %v1272, %v1270
      %v1391 = vpack.c.bf16 %v1273, %v1271
      %v1392 = vpack.c.bf16 %v1288, %v1286
      %v1393 = vpack.c.bf16 %v1289, %v1287
      %v1394 = vpack.c.bf16 %v1304, %v1302
      %v1395 = vpack.c.bf16 %v1305, %v1303
      %v1396 = vpack.c.bf16 %v1320, %v1318
      %v1397 = vpack.c.bf16 %v1321, %v1319
      %v1398 = vpack.c.bf16 %v1324, %v1322
      %v1399 = vpack.c.bf16 %v1325, %v1323
      %v1400 = vpack.c.bf16 %v1340, %v1338
      %v1401 = vpack.c.bf16 %v1341, %v1339
      %v1402 = vpack.c.bf16 %v1356, %v1354
      %v1403 = vpack.c.bf16 %v1357, %v1355
      %v1404 = vpack.c.bf16 %v1372, %v1370
      %v1405 = vpack.c.bf16 %v1373, %v1371
      %v1406 = vpack.c.bf16 %v1388, %v1386
      %v1407 = vpack.c.bf16 %v1389, %v1387
      %v1408 = vld [vmem:[%s8] sm:$0xff]
      %v1409 = vld [vmem:[%s8 + $0x8] sm:$0xff]
      %v1410 = vld [vmem:[%s9] sm:$0xff]
      %v1411 = vld [vmem:[%s9 + $0x8] sm:$0xff]
      %1413 = vset.pattern.permute.xlu0 0
      %1414 = vperm.xlu0 %1413, %v1410
      %v1415 = vpop.permute.xlu0 %1414
      %1418 = vset.pattern.permute.xlu0 0
      %1419 = vperm.xlu0 %1418, %v1411
      %v1420 = vpop.permute.xlu0 %1419
      %v1424 = vunpack.c.l.b16 %v1408
      %v1425 = vunpack.c.h.b16 %v1408
      %v1426 = vunpack.c.l.b16 %v1409
      %v1427 = vunpack.c.h.b16 %v1409
      %v1428 = vpack.c.b16 %v1426, %v1424
      %v1429 = vpack.c.b16 %v1427, %v1425
      %v1432 = vsel %vm1207, %v1429, 0
      %1434 = vmatprep.subr.bf16.mxu0 %v1391
      %1435 = vmatpush1.bf16.msra.mxu0 %v1390
      %1436 = vmatprep.subr.bf16.mxu0 %v1393
      %1437 = vmatpush1.bf16.msra.mxu0 %v1392
      %1438 = vmatprep.subr.bf16.mxu0 %v1395
      %1439 = vmatpush1.bf16.msra.mxu0 %v1394
      %1440 = vmatprep.subr.bf16.mxu0 %v1397
      %1441 = vmatpush1.bf16.msra.mxu0 %v1396
      %1442 = vmatprep.subr.bf16.mxu0 %v1399
      %1443 = vmatpush1.bf16.msra.mxu0 %v1398
      %1444 = vmatprep.subr.bf16.mxu0 %v1401
      %1445 = vmatpush1.bf16.msra.mxu0 %v1400
      %1446 = vmatprep.subr.bf16.mxu0 %v1403
      %1447 = vmatpush1.bf16.msra.mxu0 %v1402
      %1448 = vmatprep.subr.bf16.mxu0 %v1405
      %1449 = vmatpush1.bf16.msra.mxu0 %v1404
      %1450 = vmatprep.subr.bf16.mxu0 %v1407
      %1451 = vmatpush1.bf16.msra.mxu0 %v1406
      %1452 = vmatprep.subr.bf16.mxu0 0
      %1453 = vmatpush1.bf16.msra.mxu0 0
      %1454 = vmatprep.subr.bf16.mxu0 0
      %1455 = vmatpush1.bf16.msra.mxu0 0
      %1456 = vmatprep.subr.bf16.mxu0 0
      %1457 = vmatpush1.bf16.msra.mxu0 0
      %1458 = vmatprep.subr.bf16.mxu0 0
      %1459 = vmatpush1.bf16.msra.mxu0 0
      %1460 = vmatprep.subr.bf16.mxu0 0
      %1461 = vmatpush1.bf16.msra.mxu0 0
      %1462 = vmatprep.subr.bf16.mxu0 0
      %1463 = vmatpush1.bf16.msra.mxu0 0
      %1464 = vmatprep.subr.bf16.mxu0 0
      %1465 = vmatpush1.bf16.msra.mxu0 0
      %1466 = vmatprep.mubr.bf16.mxu0 %v1432
      %1467 = vmatmul.mubr.bf16.gmra.mrb[0].mxu0 %v1428
      %v1468 = vpop.f32.mrb[0].mxu0
      %v1469 = vadd.f32 %v1415, %v1468
      %v1470 = vpop.f32.mrb[0].mxu0
      %v1471 = vadd.f32 %v1415, %v1470
      %v1472 = vpop.f32.mrb[0].mxu0
      %v1473 = vadd.f32 %v1420, %v1472
      %v1474 = vpop.f32.mrb[0].mxu0
      %v1475 = vadd.f32 %v1420, %v1474
      %1476 = vdwg.mxu0
      %v1477 = vadd.f32 %v1469, %v1030
      %v1478 = vadd.f32 %v1471, %v1031
      %v1479 = vadd.f32 %v1473, %v1032
      %v1480 = vadd.f32 %v1475, %v1033
      %v1481 = vmax.f32 %v1477, 0.0
      %v1482 = vmax.f32 %v1478, 0.0
      %v1483 = vmax.f32 %v1479, 0.0
      %v1484 = vmax.f32 %v1480, 0.0
      %1485 = vrot.lane.b32.xlu0 %v1481, 17
      %v1486 = vpop.permute.xlu0 %1485
      %1487 = vrot.lane.b32.xlu0 %v1483, 17
      %v1488 = vpop.permute.xlu0 %1487
      %1489 = vrot.lane.b32.xlu0 %v1482, 17
      %v1490 = vpop.permute.xlu0 %1489
      %1491 = vrot.lane.b32.xlu0 %v1484, 17
      %v1492 = vpop.permute.xlu0 %1491
      %v1493 = vsel %vm805, %v1486, %v1490
      %v1494 = vsel %vm805, %v1488, %v1492
      %v1495 = vsel %vm805, %v1490, %v1486
      %v1496 = vsel %vm805, %v1492, %v1488
      %v1497 = vmul.f32 %v1495, %v811
      %v1498 = vmul.f32 %v1493, %v815
      %v1499 = vmul.f32 %v1496, %v811
      %v1500 = vmul.f32 %v1494, %v815
      %1501 = vrot.lane.b32.xlu0 %v1481, 16
      %v1502 = vpop.permute.xlu0 %1501
      %1503 = vrot.lane.b32.xlu0 %v1483, 16
      %v1504 = vpop.permute.xlu0 %1503
      %1505 = vrot.lane.b32.xlu0 %v1482, 16
      %v1506 = vpop.permute.xlu0 %1505
      %1507 = vrot.lane.b32.xlu0 %v1484, 16
      %v1508 = vpop.permute.xlu0 %1507
      %v1509 = vsel %vm822, %v1502, %v1506
      %v1510 = vsel %vm822, %v1504, %v1508
      %v1511 = vsel %vm822, %v1506, %v1502
      %v1512 = vsel %vm822, %v1508, %v1504
      %v1513 = vmul.f32 %v1511, %v828
      %v1514 = vmul.f32 %v1509, %v832
      %v1515 = vmul.f32 %v1512, %v828
      %v1516 = vmul.f32 %v1510, %v832
      %1517 = vrot.lane.b32.xlu0 %v1481, 15
      %v1518 = vpop.permute.xlu0 %1517
      %1519 = vrot.lane.b32.xlu0 %v1483, 15
      %v1520 = vpop.permute.xlu0 %1519
      %1521 = vrot.lane.b32.xlu0 %v1482, 15
      %v1522 = vpop.permute.xlu0 %1521
      %1523 = vrot.lane.b32.xlu0 %v1484, 15
      %v1524 = vpop.permute.xlu0 %1523
      %v1525 = vsel %vm839, %v1518, %v1522
      %v1526 = vsel %vm839, %v1520, %v1524
      %v1527 = vsel %vm839, %v1522, %v1518
      %v1528 = vsel %vm839, %v1524, %v1520
      %v1529 = vmul.f32 %v1527, %v845
      %v1530 = vmul.f32 %v1525, %v849
      %v1531 = vmul.f32 %v1528, %v845
      %v1532 = vmul.f32 %v1526, %v849
      %1533 = vrot.lane.b32.xlu0 %v1481, 1
      %v1534 = vpop.permute.xlu0 %1533
      %1535 = vrot.lane.b32.xlu0 %v1483, 1
      %v1536 = vpop.permute.xlu0 %1535
      %1537 = vrot.lane.b32.xlu0 %v1482, 1
      %v1538 = vpop.permute.xlu0 %1537
      %1539 = vrot.lane.b32.xlu0 %v1484, 1
      %v1540 = vpop.permute.xlu0 %1539
      %v1541 = vsel %vm856, %v1534, %v1538
      %v1542 = vsel %vm856, %v1536, %v1540
      %v1543 = vsel %vm856, %v1538, %v1534
      %v1544 = vsel %vm856, %v1540, %v1536
      %v1545 = vmul.f32 %v1543, %v862
      %v1546 = vmul.f32 %v1541, %v866
      %v1547 = vmul.f32 %v1544, %v862
      %v1548 = vmul.f32 %v1542, %v866
      %v1549 = vmul.f32 %v1481, %v872
      %v1550 = vmul.f32 %v1482, %v876
      %v1551 = vmul.f32 %v1483, %v872
      %v1552 = vmul.f32 %v1484, %v876
      %1553 = vrot.lane.b32.xlu0 %v1481, 127
      %v1554 = vpop.permute.xlu0 %1553
      %1555 = vrot.lane.b32.xlu0 %v1483, 127
      %v1556 = vpop.permute.xlu0 %1555
      %1557 = vrot.lane.b32.xlu0 %v1482, 127
      %v1558 = vpop.permute.xlu0 %1557
      %1559 = vrot.lane.b32.xlu0 %v1484, 127
      %v1560 = vpop.permute.xlu0 %1559
      %v1561 = vsel %vm883, %v1554, %v1558
      %v1562 = vsel %vm883, %v1556, %v1560
      %v1563 = vsel %vm883, %v1558, %v1554
      %v1564 = vsel %vm883, %v1560, %v1556
      %v1565 = vmul.f32 %v1561, %v889
      %v1566 = vmul.f32 %v1563, %v893
      %v1567 = vmul.f32 %v1562, %v889
      %v1568 = vmul.f32 %v1564, %v893
      %1569 = vrot.lane.b32.xlu0 %v1481, 113
      %v1570 = vpop.permute.xlu0 %1569
      %1571 = vrot.lane.b32.xlu0 %v1483, 113
      %v1572 = vpop.permute.xlu0 %1571
      %1573 = vrot.lane.b32.xlu0 %v1482, 113
      %v1574 = vpop.permute.xlu0 %1573
      %1575 = vrot.lane.b32.xlu0 %v1484, 113
      %v1576 = vpop.permute.xlu0 %1575
      %v1577 = vsel %vm900, %v1570, %v1574
      %v1578 = vsel %vm900, %v1572, %v1576
      %v1579 = vsel %vm900, %v1574, %v1570
      %v1580 = vsel %vm900, %v1576, %v1572
      %v1581 = vmul.f32 %v1577, %v906
      %v1582 = vmul.f32 %v1579, %v910
      %v1583 = vmul.f32 %v1578, %v906
      %v1584 = vmul.f32 %v1580, %v910
      %1585 = vrot.lane.b32.xlu0 %v1481, 112
      %v1586 = vpop.permute.xlu0 %1585
      %1587 = vrot.lane.b32.xlu0 %v1483, 112
      %v1588 = vpop.permute.xlu0 %1587
      %1589 = vrot.lane.b32.xlu0 %v1482, 112
      %v1590 = vpop.permute.xlu0 %1589
      %1591 = vrot.lane.b32.xlu0 %v1484, 112
      %v1592 = vpop.permute.xlu0 %1591
      %v1593 = vsel %vm917, %v1586, %v1590
      %v1594 = vsel %vm917, %v1588, %v1592
      %v1595 = vsel %vm917, %v1590, %v1586
      %v1596 = vsel %vm917, %v1592, %v1588
      %v1597 = vmul.f32 %v1593, %v923
      %v1598 = vmul.f32 %v1595, %v927
      %v1599 = vmul.f32 %v1594, %v923
      %v1600 = vmul.f32 %v1596, %v927
      %1601 = vrot.lane.b32.xlu0 %v1481, 111
      %v1602 = vpop.permute.xlu0 %1601
      %1603 = vrot.lane.b32.xlu0 %v1483, 111
      %v1604 = vpop.permute.xlu0 %1603
      %1605 = vrot.lane.b32.xlu0 %v1482, 111
      %v1606 = vpop.permute.xlu0 %1605
      %1607 = vrot.lane.b32.xlu0 %v1484, 111
      %v1608 = vpop.permute.xlu0 %1607
      %v1609 = vsel %vm934, %v1602, %v1606
      %v1610 = vsel %vm934, %v1604, %v1608
      %v1611 = vsel %vm934, %v1606, %v1602
      %v1612 = vsel %vm934, %v1608, %v1604
      %v1613 = vmul.f32 %v1609, %v940
      %v1614 = vmul.f32 %v1611, %v944
      %v1615 = vmul.f32 %v1610, %v940
      %v1616 = vmul.f32 %v1612, %v944
      %v1617 = vpack.c.bf16 %v1499, %v1497
      %v1618 = vpack.c.bf16 %v1500, %v1498
      %v1619 = vpack.c.bf16 %v1515, %v1513
      %v1620 = vpack.c.bf16 %v1516, %v1514
      %v1621 = vpack.c.bf16 %v1531, %v1529
      %v1622 = vpack.c.bf16 %v1532, %v1530
      %v1623 = vpack.c.bf16 %v1547, %v1545
      %v1624 = vpack.c.bf16 %v1548, %v1546
      %v1625 = vpack.c.bf16 %v1551, %v1549
      %v1626 = vpack.c.bf16 %v1552, %v1550
      %v1627 = vpack.c.bf16 %v1567, %v1565
      %v1628 = vpack.c.bf16 %v1568, %v1566
      %v1629 = vpack.c.bf16 %v1583, %v1581
      %v1630 = vpack.c.bf16 %v1584, %v1582
      %v1631 = vpack.c.bf16 %v1599, %v1597
      %v1632 = vpack.c.bf16 %v1600, %v1598
      %v1633 = vpack.c.bf16 %v1615, %v1613
      %v1634 = vpack.c.bf16 %v1616, %v1614
      %v1635 = vld [vmem:[%s10] sm:$0xff]
      %v1636 = vld [vmem:[%s10 + $0x8] sm:$0xff]
      %v1637 = vld [vmem:[%s11] sm:$0xff]
      %v1638 = vld [vmem:[%s11 + $0x8] sm:$0xff]
      %1640 = vset.pattern.permute.xlu0 0
      %1641 = vperm.xlu0 %1640, %v1637
      %v1642 = vpop.permute.xlu0 %1641
      %1645 = vset.pattern.permute.xlu0 0
      %1646 = vperm.xlu0 %1645, %v1638
      %v1647 = vpop.permute.xlu0 %1646
      %v1651 = vunpack.c.l.b16 %v1635
      %v1652 = vunpack.c.h.b16 %v1635
      %v1653 = vunpack.c.l.b16 %v1636
      %v1654 = vunpack.c.h.b16 %v1636
      %v1655 = vpack.c.b16 %v1653, %v1651
      %v1656 = vpack.c.b16 %v1654, %v1652
      %v1659 = vsel %vm1207, %v1656, 0
      %1661 = vmatprep.subr.bf16.mxu0 %v1618
      %1662 = vmatpush1.bf16.msra.mxu0 %v1617
      %1663 = vmatprep.subr.bf16.mxu0 %v1620
      %1664 = vmatpush1.bf16.msra.mxu0 %v1619
      %1665 = vmatprep.subr.bf16.mxu0 %v1622
      %1666 = vmatpush1.bf16.msra.mxu0 %v1621
      %1667 = vmatprep.subr.bf16.mxu0 %v1624
      %1668 = vmatpush1.bf16.msra.mxu0 %v1623
      %1669 = vmatprep.subr.bf16.mxu0 %v1626
      %1670 = vmatpush1.bf16.msra.mxu0 %v1625
      %1671 = vmatprep.subr.bf16.mxu0 %v1628
      %1672 = vmatpush1.bf16.msra.mxu0 %v1627
      %1673 = vmatprep.subr.bf16.mxu0 %v1630
      %1674 = vmatpush1.bf16.msra.mxu0 %v1629
      %1675 = vmatprep.subr.bf16.mxu0 %v1632
      %1676 = vmatpush1.bf16.msra.mxu0 %v1631
      %1677 = vmatprep.subr.bf16.mxu0 %v1634
      %1678 = vmatpush1.bf16.msra.mxu0 %v1633
      %1679 = vmatprep.subr.bf16.mxu0 0
      %1680 = vmatpush1.bf16.msra.mxu0 0
      %1681 = vmatprep.subr.bf16.mxu0 0
      %1682 = vmatpush1.bf16.msra.mxu0 0
      %1683 = vmatprep.subr.bf16.mxu0 0
      %1684 = vmatpush1.bf16.msra.mxu0 0
      %1685 = vmatprep.subr.bf16.mxu0 0
      %1686 = vmatpush1.bf16.msra.mxu0 0
      %1687 = vmatprep.subr.bf16.mxu0 0
      %1688 = vmatpush1.bf16.msra.mxu0 0
      %1689 = vmatprep.subr.bf16.mxu0 0
      %1690 = vmatpush1.bf16.msra.mxu0 0
      %1691 = vmatprep.subr.bf16.mxu0 0
      %1692 = vmatpush1.bf16.msra.mxu0 0
      %1693 = vmatprep.mubr.bf16.mxu0 %v1659
      %1694 = vmatmul.mubr.bf16.gmra.mrb[0].mxu0 %v1655
      %v1695 = vpop.f32.mrb[0].mxu0
      %v1696 = vadd.f32 %v1642, %v1695
      %v1697 = vpop.f32.mrb[0].mxu0
      %v1698 = vadd.f32 %v1642, %v1697
      %v1699 = vpop.f32.mrb[0].mxu0
      %v1700 = vadd.f32 %v1647, %v1699
      %v1701 = vpop.f32.mrb[0].mxu0
      %v1702 = vadd.f32 %v1647, %v1701
      %1703 = vdwg.mxu0
      %v1704 = vmax.f32 %v1696, 0.0
      %v1705 = vmax.f32 %v1698, 0.0
      %v1706 = vmax.f32 %v1700, 0.0
      %v1707 = vmax.f32 %v1702, 0.0
      %1708 = vrot.lane.b32.xlu0 %v1704, 17
      %v1709 = vpop.permute.xlu0 %1708
      %1710 = vrot.lane.b32.xlu0 %v1706, 17
      %v1711 = vpop.permute.xlu0 %1710
      %1712 = vrot.lane.b32.xlu0 %v1705, 17
      %v1713 = vpop.permute.xlu0 %1712
      %1714 = vrot.lane.b32.xlu0 %v1707, 17
      %v1715 = vpop.permute.xlu0 %1714
      %v1716 = vsel %vm805, %v1709, %v1713
      %v1717 = vsel %vm805, %v1711, %v1715
      %v1718 = vsel %vm805, %v1713, %v1709
      %v1719 = vsel %vm805, %v1715, %v1711
      %v1720 = vmul.f32 %v1718, %v811
      %v1721 = vmul.f32 %v1716, %v815
      %v1722 = vmul.f32 %v1719, %v811
      %v1723 = vmul.f32 %v1717, %v815
      %1724 = vrot.lane.b32.xlu0 %v1704, 16
      %v1725 = vpop.permute.xlu0 %1724
      %1726 = vrot.lane.b32.xlu0 %v1706, 16
      %v1727 = vpop.permute.xlu0 %1726
      %1728 = vrot.lane.b32.xlu0 %v1705, 16
      %v1729 = vpop.permute.xlu0 %1728
      %1730 = vrot.lane.b32.xlu0 %v1707, 16
      %v1731 = vpop.permute.xlu0 %1730
      %v1732 = vsel %vm822, %v1725, %v1729
      %v1733 = vsel %vm822, %v1727, %v1731
      %v1734 = vsel %vm822, %v1729, %v1725
      %v1735 = vsel %vm822, %v1731, %v1727
      %v1736 = vmul.f32 %v1734, %v828
      %v1737 = vmul.f32 %v1732, %v832
      %v1738 = vmul.f32 %v1735, %v828
      %v1739 = vmul.f32 %v1733, %v832
      %1740 = vrot.lane.b32.xlu0 %v1704, 15
      %v1741 = vpop.permute.xlu0 %1740
      %1742 = vrot.lane.b32.xlu0 %v1706, 15
      %v1743 = vpop.permute.xlu0 %1742
      %1744 = vrot.lane.b32.xlu0 %v1705, 15
      %v1745 = vpop.permute.xlu0 %1744
      %1746 = vrot.lane.b32.xlu0 %v1707, 15
      %v1747 = vpop.permute.xlu0 %1746
      %v1748 = vsel %vm839, %v1741, %v1745
      %v1749 = vsel %vm839, %v1743, %v1747
      %v1750 = vsel %vm839, %v1745, %v1741
      %v1751 = vsel %vm839, %v1747, %v1743
      %v1752 = vmul.f32 %v1750, %v845
      %v1753 = vmul.f32 %v1748, %v849
      %v1754 = vmul.f32 %v1751, %v845
      %v1755 = vmul.f32 %v1749, %v849
      %1756 = vrot.lane.b32.xlu0 %v1704, 1
      %v1757 = vpop.permute.xlu0 %1756
      %1758 = vrot.lane.b32.xlu0 %v1706, 1
      %v1759 = vpop.permute.xlu0 %1758
      %1760 = vrot.lane.b32.xlu0 %v1705, 1
      %v1761 = vpop.permute.xlu0 %1760
      %1762 = vrot.lane.b32.xlu0 %v1707, 1
      %v1763 = vpop.permute.xlu0 %1762
      %v1764 = vsel %vm856, %v1757, %v1761
      %v1765 = vsel %vm856, %v1759, %v1763
      %v1766 = vsel %vm856, %v1761, %v1757
      %v1767 = vsel %vm856, %v1763, %v1759
      %v1768 = vmul.f32 %v1766, %v862
      %v1769 = vmul.f32 %v1764, %v866
      %v1770 = vmul.f32 %v1767, %v862
      %v1771 = vmul.f32 %v1765, %v866
      %v1772 = vmul.f32 %v1704, %v872
      %v1773 = vmul.f32 %v1705, %v876
      %v1774 = vmul.f32 %v1706, %v872
      %v1775 = vmul.f32 %v1707, %v876
      %1776 = vrot.lane.b32.xlu0 %v1704, 127
      %v1777 = vpop.permute.xlu0 %1776
      %1778 = vrot.lane.b32.xlu0 %v1706, 127
      %v1779 = vpop.permute.xlu0 %1778
      %1780 = vrot.lane.b32.xlu0 %v1705, 127
      %v1781 = vpop.permute.xlu0 %1780
      %1782 = vrot.lane.b32.xlu0 %v1707, 127
      %v1783 = vpop.permute.xlu0 %1782
      %v1784 = vsel %vm883, %v1777, %v1781
      %v1785 = vsel %vm883, %v1779, %v1783
      %v1786 = vsel %vm883, %v1781, %v1777
      %v1787 = vsel %vm883, %v1783, %v1779
      %v1788 = vmul.f32 %v1784, %v889
      %v1789 = vmul.f32 %v1786, %v893
      %v1790 = vmul.f32 %v1785, %v889
      %v1791 = vmul.f32 %v1787, %v893
      %1792 = vrot.lane.b32.xlu0 %v1704, 113
      %v1793 = vpop.permute.xlu0 %1792
      %1794 = vrot.lane.b32.xlu0 %v1706, 113
      %v1795 = vpop.permute.xlu0 %1794
      %1796 = vrot.lane.b32.xlu0 %v1705, 113
      %v1797 = vpop.permute.xlu0 %1796
      %1798 = vrot.lane.b32.xlu0 %v1707, 113
      %v1799 = vpop.permute.xlu0 %1798
      %v1800 = vsel %vm900, %v1793, %v1797
      %v1801 = vsel %vm900, %v1795, %v1799
      %v1802 = vsel %vm900, %v1797, %v1793
      %v1803 = vsel %vm900, %v1799, %v1795
      %v1804 = vmul.f32 %v1800, %v906
      %v1805 = vmul.f32 %v1802, %v910
      %v1806 = vmul.f32 %v1801, %v906
      %v1807 = vmul.f32 %v1803, %v910
      %1808 = vrot.lane.b32.xlu0 %v1704, 112
      %v1809 = vpop.permute.xlu0 %1808
      %1810 = vrot.lane.b32.xlu0 %v1706, 112
      %v1811 = vpop.permute.xlu0 %1810
      %1812 = vrot.lane.b32.xlu0 %v1705, 112
      %v1813 = vpop.permute.xlu0 %1812
      %1814 = vrot.lane.b32.xlu0 %v1707, 112
      %v1815 = vpop.permute.xlu0 %1814
      %v1816 = vsel %vm917, %v1809, %v1813
      %v1817 = vsel %vm917, %v1811, %v1815
      %v1818 = vsel %vm917, %v1813, %v1809
      %v1819 = vsel %vm917, %v1815, %v1811
      %v1820 = vmul.f32 %v1816, %v923
      %v1821 = vmul.f32 %v1818, %v927
      %v1822 = vmul.f32 %v1817, %v923
      %v1823 = vmul.f32 %v1819, %v927
      %1824 = vrot.lane.b32.xlu0 %v1704, 111
      %v1825 = vpop.permute.xlu0 %1824
      %1826 = vrot.lane.b32.xlu0 %v1706, 111
      %v1827 = vpop.permute.xlu0 %1826
      %1828 = vrot.lane.b32.xlu0 %v1705, 111
      %v1829 = vpop.permute.xlu0 %1828
      %1830 = vrot.lane.b32.xlu0 %v1707, 111
      %v1831 = vpop.permute.xlu0 %1830
      %v1832 = vsel %vm934, %v1825, %v1829
      %v1833 = vsel %vm934, %v1827, %v1831
      %v1834 = vsel %vm934, %v1829, %v1825
      %v1835 = vsel %vm934, %v1831, %v1827
      %v1836 = vmul.f32 %v1832, %v940
      %v1837 = vmul.f32 %v1834, %v944
      %v1838 = vmul.f32 %v1833, %v940
      %v1839 = vmul.f32 %v1835, %v944
      %v1840 = vpack.c.bf16 %v1722, %v1720
      %v1841 = vpack.c.bf16 %v1723, %v1721
      %v1842 = vpack.c.bf16 %v1738, %v1736
      %v1843 = vpack.c.bf16 %v1739, %v1737
      %v1844 = vpack.c.bf16 %v1754, %v1752
      %v1845 = vpack.c.bf16 %v1755, %v1753
      %v1846 = vpack.c.bf16 %v1770, %v1768
      %v1847 = vpack.c.bf16 %v1771, %v1769
      %v1848 = vpack.c.bf16 %v1774, %v1772
      %v1849 = vpack.c.bf16 %v1775, %v1773
      %v1850 = vpack.c.bf16 %v1790, %v1788
      %v1851 = vpack.c.bf16 %v1791, %v1789
      %v1852 = vpack.c.bf16 %v1806, %v1804
      %v1853 = vpack.c.bf16 %v1807, %v1805
      %v1854 = vpack.c.bf16 %v1822, %v1820
      %v1855 = vpack.c.bf16 %v1823, %v1821
      %v1856 = vpack.c.bf16 %v1838, %v1836
      %v1857 = vpack.c.bf16 %v1839, %v1837
      %v1858 = vld [vmem:[%s12] sm:$0xff]
      %v1859 = vld [vmem:[%s12 + $0x8] sm:$0xff]
      %v1860 = vld [vmem:[%s13] sm:$0xff]
      %v1861 = vld [vmem:[%s13 + $0x8] sm:$0xff]
      %1863 = vset.pattern.permute.xlu0 0
      %1864 = vperm.xlu0 %1863, %v1860
      %v1865 = vpop.permute.xlu0 %1864
      %1868 = vset.pattern.permute.xlu0 0
      %1869 = vperm.xlu0 %1868, %v1861
      %v1870 = vpop.permute.xlu0 %1869
      %v1874 = vunpack.c.l.b16 %v1858
      %v1875 = vunpack.c.h.b16 %v1858
      %v1876 = vunpack.c.l.b16 %v1859
      %v1877 = vunpack.c.h.b16 %v1859
      %v1878 = vpack.c.b16 %v1876, %v1874
      %v1879 = vpack.c.b16 %v1877, %v1875
      %v1882 = vsel %vm1207, %v1879, 0
      %1884 = vmatprep.subr.bf16.mxu0 %v1841
      %1885 = vmatpush1.bf16.msra.mxu0 %v1840
      %1886 = vmatprep.subr.bf16.mxu0 %v1843
      %1887 = vmatpush1.bf16.msra.mxu0 %v1842
      %1888 = vmatprep.subr.bf16.mxu0 %v1845
      %1889 = vmatpush1.bf16.msra.mxu0 %v1844
      %1890 = vmatprep.subr.bf16.mxu0 %v1847
      %1891 = vmatpush1.bf16.msra.mxu0 %v1846
      %1892 = vmatprep.subr.bf16.mxu0 %v1849
      %1893 = vmatpush1.bf16.msra.mxu0 %v1848
      %1894 = vmatprep.subr.bf16.mxu0 %v1851
      %1895 = vmatpush1.bf16.msra.mxu0 %v1850
      %1896 = vmatprep.subr.bf16.mxu0 %v1853
      %1897 = vmatpush1.bf16.msra.mxu0 %v1852
      %1898 = vmatprep.subr.bf16.mxu0 %v1855
      %1899 = vmatpush1.bf16.msra.mxu0 %v1854
      %1900 = vmatprep.subr.bf16.mxu0 %v1857
      %1901 = vmatpush1.bf16.msra.mxu0 %v1856
      %1902 = vmatprep.subr.bf16.mxu0 0
      %1903 = vmatpush1.bf16.msra.mxu0 0
      %1904 = vmatprep.subr.bf16.mxu0 0
      %1905 = vmatpush1.bf16.msra.mxu0 0
      %1906 = vmatprep.subr.bf16.mxu0 0
      %1907 = vmatpush1.bf16.msra.mxu0 0
      %1908 = vmatprep.subr.bf16.mxu0 0
      %1909 = vmatpush1.bf16.msra.mxu0 0
      %1910 = vmatprep.subr.bf16.mxu0 0
      %1911 = vmatpush1.bf16.msra.mxu0 0
      %1912 = vmatprep.subr.bf16.mxu0 0
      %1913 = vmatpush1.bf16.msra.mxu0 0
      %1914 = vmatprep.subr.bf16.mxu0 0
      %1915 = vmatpush1.bf16.msra.mxu0 0
      %1916 = vmatprep.mubr.bf16.mxu0 %v1882
      %1917 = vmatmul.mubr.bf16.gmra.mrb[0].mxu0 %v1878
      %v1918 = vpop.f32.mrb[0].mxu0
      %v1919 = vadd.f32 %v1865, %v1918
      %v1920 = vpop.f32.mrb[0].mxu0
      %v1921 = vadd.f32 %v1865, %v1920
      %v1922 = vpop.f32.mrb[0].mxu0
      %v1923 = vadd.f32 %v1870, %v1922
      %v1924 = vpop.f32.mrb[0].mxu0
      %v1925 = vadd.f32 %v1870, %v1924
      %1926 = vdwg.mxu0
      %v1927 = vadd.f32 %v1919, %v1481
      %v1928 = vadd.f32 %v1921, %v1482
      %v1929 = vadd.f32 %v1923, %v1483
      %v1930 = vadd.f32 %v1925, %v1484
      %v1931 = vmax.f32 %v1927, 0.0
      %v1932 = vmax.f32 %v1928, 0.0
      %v1933 = vmax.f32 %v1929, 0.0
      %v1934 = vmax.f32 %v1930, 0.0
      %v1935 = vld [vmem:[%s3] sm:$0xff]
      %v1936 = vld [vmem:[%s3 + $0x8] sm:$0xff]
      %v1937 = vld [vmem:[%s3 + $0x10] sm:$0xff]
      %v1938 = vld [vmem:[%s3 + $0x18] sm:$0xff]
      %v1939 = vld [vmem:[%s3 + $0x20] sm:$0xff]
      %v1940 = vld [vmem:[%s3 + $0x28] sm:$0xff]
      %v1941 = vld [vmem:[%s3 + $0x30] sm:$0xff]
      %v1942 = vld [vmem:[%s3 + $0x38] sm:$0xff]
      %v1943 = vld [vmem:[%s3 + $0x40] sm:$0xff]
      %v1944 = vld [vmem:[%s3 + $0x48] sm:$0xff]
      %v1945 = vld [vmem:[%s3 + $0x50] sm:$0xff]
      %v1946 = vld [vmem:[%s3 + $0x58] sm:$0xff]
      %v1947 = vld [vmem:[%s3 + $0x60] sm:$0xff]
      %v1948 = vld [vmem:[%s3 + $0x68] sm:$0xff]
      %v1949 = vld [vmem:[%s3 + $0x70] sm:$0xff]
      %v1950 = vld [vmem:[%s3 + $0x78] sm:$0xff]
      %v1951 = vld [vmem:[%s3 + $0x80] sm:$0xff]
      %v1952 = vld [vmem:[%s3 + $0x88] sm:$0xff]
      %v1953 = vld [vmem:[%s3 + $0x90] sm:$0xff]
      %v1954 = vld [vmem:[%s3 + $0x98] sm:$0xff]
      %v1955 = vld [vmem:[%s3 + $0xa0] sm:$0xff]
      %v1956 = vld [vmem:[%s3 + $0xa8] sm:$0xff]
      %v1957 = vld [vmem:[%s3 + $0xb0] sm:$0xff]
      %v1958 = vld [vmem:[%s3 + $0xb8] sm:$0xff]
      %v1959 = vld [vmem:[%s3 + $0xc0] sm:$0xff]
      %v1960 = vld [vmem:[%s3 + $0xc8] sm:$0xff]
      %v1961 = vld [vmem:[%s3 + $0xd0] sm:$0xff]
      %v1962 = vld [vmem:[%s3 + $0xd8] sm:$0xff]
      %v1963 = vld [vmem:[%s3 + $0xe0] sm:$0xff]
      %v1964 = vld [vmem:[%s3 + $0xe8] sm:$0xff]
      %v1965 = vld [vmem:[%s3 + $0xf0] sm:$0xff]
      %v1966 = vld [vmem:[%s3 + $0xf8] sm:$0xff]
      %1967 = vrot.lane.b32.xlu0 %v1931, 17
      %v1968 = vpop.permute.xlu0 %1967
      %1969 = vrot.lane.b32.xlu0 %v1933, 17
      %v1970 = vpop.permute.xlu0 %1969
      %1971 = vrot.lane.b32.xlu0 %v1932, 17
      %v1972 = vpop.permute.xlu0 %1971
      %1973 = vrot.lane.b32.xlu0 %v1934, 17
      %v1974 = vpop.permute.xlu0 %1973
      %v1975 = vsel %vm805, %v1968, %v1972
      %v1976 = vsel %vm805, %v1970, %v1974
      %v1977 = vsel %vm805, %v1972, %v1968
      %v1978 = vsel %vm805, %v1974, %v1970
      %v1979 = vmul.f32 %v1977, %v811
      %v1980 = vmul.f32 %v1975, %v815
      %v1981 = vmul.f32 %v1978, %v811
      %v1982 = vmul.f32 %v1976, %v815
      %1983 = vrot.lane.b32.xlu0 %v1931, 16
      %v1984 = vpop.permute.xlu0 %1983
      %1985 = vrot.lane.b32.xlu0 %v1933, 16
      %v1986 = vpop.permute.xlu0 %1985
      %1987 = vrot.lane.b32.xlu0 %v1932, 16
      %v1988 = vpop.permute.xlu0 %1987
      %1989 = vrot.lane.b32.xlu0 %v1934, 16
      %v1990 = vpop.permute.xlu0 %1989
      %v1991 = vsel %vm822, %v1984, %v1988
      %v1992 = vsel %vm822, %v1986, %v1990
      %v1993 = vsel %vm822, %v1988, %v1984
      %v1994 = vsel %vm822, %v1990, %v1986
      %v1995 = vmul.f32 %v1993, %v828
      %v1996 = vmul.f32 %v1991, %v832
      %v1997 = vmul.f32 %v1994, %v828
      %v1998 = vmul.f32 %v1992, %v832
      %1999 = vrot.lane.b32.xlu0 %v1931, 15
      %v2000 = vpop.permute.xlu0 %1999
      %2001 = vrot.lane.b32.xlu0 %v1933, 15
      %v2002 = vpop.permute.xlu0 %2001
      %2003 = vrot.lane.b32.xlu0 %v1932, 15
      %v2004 = vpop.permute.xlu0 %2003
      %2005 = vrot.lane.b32.xlu0 %v1934, 15
      %v2006 = vpop.permute.xlu0 %2005
      %v2007 = vsel %vm839, %v2000, %v2004
      %v2008 = vsel %vm839, %v2002, %v2006
      %v2009 = vsel %vm839, %v2004, %v2000
      %v2010 = vsel %vm839, %v2006, %v2002
      %v2011 = vmul.f32 %v2009, %v845
      %v2012 = vmul.f32 %v2007, %v849
      %v2013 = vmul.f32 %v2010, %v845
      %v2014 = vmul.f32 %v2008, %v849
      %2015 = vrot.lane.b32.xlu0 %v1931, 1
      %v2016 = vpop.permute.xlu0 %2015
      %2017 = vrot.lane.b32.xlu0 %v1933, 1
      %v2018 = vpop.permute.xlu0 %2017
      %2019 = vrot.lane.b32.xlu0 %v1932, 1
      %v2020 = vpop.permute.xlu0 %2019
      %2021 = vrot.lane.b32.xlu0 %v1934, 1
      %v2022 = vpop.permute.xlu0 %2021
      %v2023 = vsel %vm856, %v2016, %v2020
      %v2024 = vsel %vm856, %v2018, %v2022
      %v2025 = vsel %vm856, %v2020, %v2016
      %v2026 = vsel %vm856, %v2022, %v2018
      %v2027 = vmul.f32 %v2025, %v862
      %v2028 = vmul.f32 %v2023, %v866
      %v2029 = vmul.f32 %v2026, %v862
      %v2030 = vmul.f32 %v2024, %v866
      %v2031 = vmul.f32 %v1931, %v872
      %v2032 = vmul.f32 %v1932, %v876
      %v2033 = vmul.f32 %v1933, %v872
      %v2034 = vmul.f32 %v1934, %v876
      %2035 = vrot.lane.b32.xlu0 %v1931, 127
      %v2036 = vpop.permute.xlu0 %2035
      %2037 = vrot.lane.b32.xlu0 %v1933, 127
      %v2038 = vpop.permute.xlu0 %2037
      %2039 = vrot.lane.b32.xlu0 %v1932, 127
      %v2040 = vpop.permute.xlu0 %2039
      %2041 = vrot.lane.b32.xlu0 %v1934, 127
      %v2042 = vpop.permute.xlu0 %2041
      %v2043 = vsel %vm883, %v2036, %v2040
      %v2044 = vsel %vm883, %v2038, %v2042
      %v2045 = vsel %vm883, %v2040, %v2036
      %v2046 = vsel %vm883, %v2042, %v2038
      %v2047 = vmul.f32 %v2043, %v889
      %v2048 = vmul.f32 %v2045, %v893
      %v2049 = vmul.f32 %v2044, %v889
      %v2050 = vmul.f32 %v2046, %v893
      %2051 = vrot.lane.b32.xlu0 %v1931, 113
      %v2052 = vpop.permute.xlu0 %2051
      %2053 = vrot.lane.b32.xlu0 %v1933, 113
      %v2054 = vpop.permute.xlu0 %2053
      %2055 = vrot.lane.b32.xlu0 %v1932, 113
      %v2056 = vpop.permute.xlu0 %2055
      %2057 = vrot.lane.b32.xlu0 %v1934, 113
      %v2058 = vpop.permute.xlu0 %2057
      %v2059 = vsel %vm900, %v2052, %v2056
      %v2060 = vsel %vm900, %v2054, %v2058
      %v2061 = vsel %vm900, %v2056, %v2052
      %v2062 = vsel %vm900, %v2058, %v2054
      %v2063 = vmul.f32 %v2059, %v906
      %v2064 = vmul.f32 %v2061, %v910
      %v2065 = vmul.f32 %v2060, %v906
      %v2066 = vmul.f32 %v2062, %v910
      %2067 = vrot.lane.b32.xlu0 %v1931, 112
      %v2068 = vpop.permute.xlu0 %2067
      %2069 = vrot.lane.b32.xlu0 %v1933, 112
      %v2070 = vpop.permute.xlu0 %2069
      %2071 = vrot.lane.b32.xlu0 %v1932, 112
      %v2072 = vpop.permute.xlu0 %2071
      %2073 = vrot.lane.b32.xlu0 %v1934, 112
      %v2074 = vpop.permute.xlu0 %2073
      %v2075 = vsel %vm917, %v2068, %v2072
      %v2076 = vsel %vm917, %v2070, %v2074
      %v2077 = vsel %vm917, %v2072, %v2068
      %v2078 = vsel %vm917, %v2074, %v2070
      %v2079 = vmul.f32 %v2075, %v923
      %v2080 = vmul.f32 %v2077, %v927
      %v2081 = vmul.f32 %v2076, %v923
      %v2082 = vmul.f32 %v2078, %v927
      %2083 = vrot.lane.b32.xlu0 %v1931, 111
      %v2084 = vpop.permute.xlu0 %2083
      %2085 = vrot.lane.b32.xlu0 %v1933, 111
      %v2086 = vpop.permute.xlu0 %2085
      %2087 = vrot.lane.b32.xlu0 %v1932, 111
      %v2088 = vpop.permute.xlu0 %2087
      %2089 = vrot.lane.b32.xlu0 %v1934, 111
      %v2090 = vpop.permute.xlu0 %2089
      %v2091 = vsel %vm934, %v2084, %v2088
      %v2092 = vsel %vm934, %v2086, %v2090
      %v2093 = vsel %vm934, %v2088, %v2084
      %v2094 = vsel %vm934, %v2090, %v2086
      %v2095 = vmul.f32 %v2091, %v940
      %v2096 = vmul.f32 %v2093, %v944
      %v2097 = vmul.f32 %v2092, %v940
      %v2098 = vmul.f32 %v2094, %v944
      %v2099 = vpack.c.bf16 %v1981, %v1979
      %v2100 = vpack.c.bf16 %v1982, %v1980
      %v2101 = vpack.c.bf16 %v1997, %v1995
      %v2102 = vpack.c.bf16 %v1998, %v1996
      %v2103 = vpack.c.bf16 %v2013, %v2011
      %v2104 = vpack.c.bf16 %v2014, %v2012
      %v2105 = vpack.c.bf16 %v2029, %v2027
      %v2106 = vpack.c.bf16 %v2030, %v2028
      %v2107 = vpack.c.bf16 %v2033, %v2031
      %v2108 = vpack.c.bf16 %v2034, %v2032
      %v2109 = vpack.c.bf16 %v2049, %v2047
      %v2110 = vpack.c.bf16 %v2050, %v2048
      %v2111 = vpack.c.bf16 %v2065, %v2063
      %v2112 = vpack.c.bf16 %v2066, %v2064
      %v2113 = vpack.c.bf16 %v2081, %v2079
      %v2114 = vpack.c.bf16 %v2082, %v2080
      %v2115 = vpack.c.bf16 %v2097, %v2095
      %v2116 = vpack.c.bf16 %v2098, %v2096
      %v2117 = vld [vmem:[%s14] sm:$0xff]
      %v2118 = vld [vmem:[%s14 + $0x8] sm:$0xff]
      %v2119 = vld [vmem:[%s14 + $0x10] sm:$0xff]
      %v2120 = vld [vmem:[%s14 + $0x18] sm:$0xff]
      %v2125 = vunpack.c.l.b16 %v2117
      %v2126 = vunpack.c.h.b16 %v2117
      %v2127 = vunpack.c.l.b16 %v2118
      %v2128 = vunpack.c.h.b16 %v2118
      %v2129 = vunpack.c.l.b16 %v2119
      %v2130 = vunpack.c.h.b16 %v2119
      %v2131 = vunpack.c.l.b16 %v2120
      %v2132 = vunpack.c.h.b16 %v2120
      %v2133 = vpack.c.b16 %v2127, %v2125
      %v2134 = vpack.c.b16 %v2128, %v2126
      %v2135 = vpack.c.b16 %v2131, %v2129
      %v2136 = vpack.c.b16 %v2132, %v2130
      %v2140 = vsel %vm1207, %v2134, 0
      %v2143 = vsel %vm1207, %v2136, 0
      %2145 = vmatprep.subr.bf16.mxu0 %v2100
      %2146 = vmatpush1.bf16.msra.mxu0 %v2099
      %2147 = vmatprep.subr.bf16.mxu0 %v2102
      %2148 = vmatpush1.bf16.msra.mxu0 %v2101
      %2149 = vmatprep.subr.bf16.mxu0 %v2104
      %2150 = vmatpush1.bf16.msra.mxu0 %v2103
      %2151 = vmatprep.subr.bf16.mxu0 %v2106
      %2152 = vmatpush1.bf16.msra.mxu0 %v2105
      %2153 = vmatprep.subr.bf16.mxu0 %v2108
      %2154 = vmatpush1.bf16.msra.mxu0 %v2107
      %2155 = vmatprep.subr.bf16.mxu0 %v2110
      %2156 = vmatpush1.bf16.msra.mxu0 %v2109
      %2157 = vmatprep.subr.bf16.mxu0 %v2112
      %2158 = vmatpush1.bf16.msra.mxu0 %v2111
      %2159 = vmatprep.subr.bf16.mxu0 %v2114
      %2160 = vmatpush1.bf16.msra.mxu0 %v2113
      %2161 = vmatprep.subr.bf16.mxu0 %v2116
      %2162 = vmatpush1.bf16.msra.mxu0 %v2115
      %2163 = vmatprep.subr.bf16.mxu0 0
      %2164 = vmatpush1.bf16.msra.mxu0 0
      %2165 = vmatprep.subr.bf16.mxu0 0
      %2166 = vmatpush1.bf16.msra.mxu0 0
      %2167 = vmatprep.subr.bf16.mxu0 0
      %2168 = vmatpush1.bf16.msra.mxu0 0
      %2169 = vmatprep.subr.bf16.mxu0 0
      %2170 = vmatpush1.bf16.msra.mxu0 0
      %2171 = vmatprep.subr.bf16.mxu0 0
      %2172 = vmatpush1.bf16.msra.mxu0 0
      %2173 = vmatprep.subr.bf16.mxu0 0
      %2174 = vmatpush1.bf16.msra.mxu0 0
      %2175 = vmatprep.subr.bf16.mxu0 0
      %2176 = vmatpush1.bf16.msra.mxu0 0
      %2177 = vmatprep.mubr.bf16.mxu0 %v2140
      %2178 = vmatmul.mubr.bf16.gmra.mrb[0].mxu0 %v2133
      %v2179 = vpop.f32.mrb[0].mxu0
      %v2180 = vadd.f32 0.0, %v2179
      %v2181 = vpop.f32.mrb[0].mxu0
      %v2182 = vadd.f32 0.0, %v2181
      %v2183 = vpop.f32.mrb[0].mxu0
      %v2184 = vadd.f32 0.0, %v2183
      %v2185 = vpop.f32.mrb[0].mxu0
      %v2186 = vadd.f32 0.0, %v2185
      %2187 = vmatprep.mubr.bf16.mxu0 %v2143
      %2188 = vmatmul.mubr.bf16.gmra.mrb[0].mxu0 %v2135
      %v2189 = vpop.f32.mrb[0].mxu0
      %v2190 = vadd.f32 0.0, %v2189
      %v2191 = vpop.f32.mrb[0].mxu0
      %v2192 = vadd.f32 0.0, %v2191
      %v2193 = vpop.f32.mrb[0].mxu0
      %v2194 = vadd.f32 0.0, %v2193
      %v2195 = vpop.f32.mrb[0].mxu0
      %v2196 = vadd.f32 0.0, %v2195
      %2197 = vdwg.mxu0
      %v2198 = vld [vmem:[%s15] sm:$0xff]
      %v2199 = vld [vmem:[%s15 + $0x8] sm:$0xff]
      %v2200 = vld [vmem:[%s15 + $0x10] sm:$0xff]
      %v2201 = vld [vmem:[%s15 + $0x18] sm:$0xff]
      %2203 = vset.pattern.permute.xlu0 0
      %2204 = vperm.xlu0 %2203, %v2198
      %v2205 = vpop.permute.xlu0 %2204
      %2208 = vset.pattern.permute.xlu0 0
      %2209 = vperm.xlu0 %2208, %v2199
      %v2210 = vpop.permute.xlu0 %2209
      %2213 = vset.pattern.permute.xlu0 0
      %2214 = vperm.xlu0 %2213, %v2200
      %v2215 = vpop.permute.xlu0 %2214
      %2218 = vset.pattern.permute.xlu0 0
      %2219 = vperm.xlu0 %2218, %v2201
      %v2220 = vpop.permute.xlu0 %2219
      %2222 = vmatprep.subr.mxu0 0.0
      %2223 = vmatpush1.msra.mxu0 %v1935
      %2224 = vmatprep.subr.mxu0 0.0
      %2225 = vmatpush1.msra.mxu0 %v1936
      %2226 = vmatprep.subr.mxu0 0.0
      %2227 = vmatpush1.msra.mxu0 %v1937
      %2228 = vmatprep.subr.mxu0 0.0
      %2229 = vmatpush1.msra.mxu0 %v1938
      %2230 = vmatprep.subr.mxu0 0.0
      %2231 = vmatpush1.msra.mxu0 %v1939
      %2232 = vmatprep.subr.mxu0 0.0
      %2233 = vmatpush1.msra.mxu0 %v1940
      %2234 = vmatprep.subr.mxu0 0.0
      %2235 = vmatpush1.msra.mxu0 %v1941
      %2236 = vmatprep.subr.mxu0 0.0
      %2237 = vmatpush1.msra.mxu0 %v1942
      %2238 = vmatprep.subr.mxu0 0.0
      %2239 = vmatpush1.msra.mxu0 %v1943
      %2240 = vmatprep.subr.mxu0 0.0
      %2241 = vmatpush1.msra.mxu0 %v1944
      %2242 = vmatprep.subr.mxu0 0.0
      %2243 = vmatpush1.msra.mxu0 %v1945
      %2244 = vmatprep.subr.mxu0 0.0
      %2245 = vmatpush1.msra.mxu0 %v1946
      %2246 = vmatprep.subr.mxu0 0.0
      %2247 = vmatpush1.msra.mxu0 %v1947
      %2248 = vmatprep.subr.mxu0 0.0
      %2249 = vmatpush1.msra.mxu0 %v1948
      %2250 = vmatprep.subr.mxu0 0.0
      %2251 = vmatpush1.msra.mxu0 %v1949
      %2252 = vmatprep.subr.mxu0 0.0
      %2253 = vmatpush1.msra.mxu0 %v1950
      %2254 = vmatprep.subr.mxu0 0.0
      %2255 = vmatpush1.msra.mxu0 %v1951
      %2256 = vmatprep.subr.mxu0 0.0
      %2257 = vmatpush1.msra.mxu0 %v1952
      %2258 = vmatprep.subr.mxu0 0.0
      %2259 = vmatpush1.msra.mxu0 %v1953
      %2260 = vmatprep.subr.mxu0 0.0
      %2261 = vmatpush1.msra.mxu0 %v1954
      %2262 = vmatprep.subr.mxu0 0.0
      %2263 = vmatpush1.msra.mxu0 %v1955
      %2264 = vmatprep.subr.mxu0 0.0
      %2265 = vmatpush1.msra.mxu0 %v1956
      %2266 = vmatprep.subr.mxu0 0.0
      %2267 = vmatpush1.msra.mxu0 %v1957
      %2268 = vmatprep.subr.mxu0 0.0
      %2269 = vmatpush1.msra.mxu0 %v1958
      %2270 = vmatprep.subr.mxu0 0.0
      %2271 = vmatpush1.msra.mxu0 %v1959
      %2272 = vmatprep.subr.mxu0 0.0
      %2273 = vmatpush1.msra.mxu0 %v1960
      %2274 = vmatprep.subr.mxu0 0.0
      %2275 = vmatpush1.msra.mxu0 %v1961
      %2276 = vmatprep.subr.mxu0 0.0
      %2277 = vmatpush1.msra.mxu0 %v1962
      %2278 = vmatprep.subr.mxu0 0.0
      %2279 = vmatpush1.msra.mxu0 %v1963
      %2280 = vmatprep.subr.mxu0 0.0
      %2281 = vmatpush1.msra.mxu0 %v1964
      %2282 = vmatprep.subr.mxu0 0.0
      %2283 = vmatpush1.msra.mxu0 %v1965
      %2284 = vmatprep.subr.mxu0 0.0
      %2285 = vmatpush1.msra.mxu0 %v1966
      %2286 = vmatprep.mubr.f32.mxu0 %v2182
      %2287 = vmatmul.mubr.f32.gmra.mrb[0].mxu0 %v2180
      %v2288 = vpop.f32.mrb[0].mxu0
      %v2289 = vadd.f32 %v2205, %v2288
      %v2290 = vpop.f32.mrb[0].mxu0
      %2291 = vmatprep.mubr.f32.mxu0 %v2186
      %2292 = vmatmul.mubr.f32.gmra.mrb[0].mxu0 %v2184
      %v2293 = vpop.f32.mrb[0].mxu0
      %v2294 = vadd.f32 %v2210, %v2293
      %v2295 = vpop.f32.mrb[0].mxu0
      %2296 = vmatprep.mubr.f32.mxu0 %v2192
      %2297 = vmatmul.mubr.f32.gmra.mrb[0].mxu0 %v2190
      %v2298 = vpop.f32.mrb[0].mxu0
      %v2299 = vadd.f32 %v2215, %v2298
      %v2300 = vpop.f32.mrb[0].mxu0
      %2301 = vmatprep.mubr.f32.mxu0 %v2196
      %2302 = vmatmul.mubr.f32.gmra.mrb[0].mxu0 %v2194
      %v2303 = vpop.f32.mrb[0].mxu0
      %v2304 = vadd.f32 %v2220, %v2303
      %v2305 = vpop.f32.mrb[0].mxu0
      %2306 = vdwg.mxu0
      %v2307 = vmax.f32 %v2289, 0.0
      %v2308 = vmax.f32 %v2294, 0.0
      %v2309 = vmax.f32 %v2299, 0.0
      %v2310 = vmax.f32 %v2304, 0.0
      %vm2311 = vcmask 1048064
      %2312 = vrot.lane.b32.xlu0 %v2307, 64
      %v2313 = vpop.permute.xlu0 %2312
      %v2314 = vsel %vm2311, %v2313, %v2307
      %2315 = vrot.lane.b32.xlu0 %v2308, 64
      %v2316 = vpop.permute.xlu0 %2315
      %v2317 = vsel %vm2311, %v2316, %v2308
      %2318 = vrot.lane.b32.xlu0 %v2309, 64
      %v2319 = vpop.permute.xlu0 %2318
      %v2320 = vsel %vm2311, %v2319, %v2309
      %2321 = vrot.lane.b32.xlu0 %v2310, 64
      %v2322 = vpop.permute.xlu0 %2321
      %v2323 = vsel %vm2311, %v2322, %v2310
      %2324 = vrot.lane.b32.xlu0 %v2314, 64
      %v2325 = vpop.permute.xlu0 %2324
      %2326 = vrot.lane.b32.xlu0 %v2317, 64
      %v2327 = vpop.permute.xlu0 %2326
      %2328 = vrot.lane.b32.xlu0 %v2320, 64
      %v2329 = vpop.permute.xlu0 %2328
      %2330 = vrot.lane.b32.xlu0 %v2323, 64
      %v2331 = vpop.permute.xlu0 %2330
      %v2332 = vsel %vm2311, %v2325, %v2307
      %v2333 = vsel %vm2311, %v2327, %v2308
      %v2334 = vsel %vm2311, %v2329, %v2309
      %v2335 = vsel %vm2311, %v2331, %v2310
      %v2336 = vlaneseq
      %v2337 = vshrl.u32 %v2336, 7
      %v2338 = vsub.s32 0, %v2337
      %v2339 = vrot.slane %v795, %v2338
      %2341 = vrot.lane.b32.xlu0 %v2339, 55
      %v2342 = vpop.permute.xlu0 %2341
      %v2344 = vmul.f32 %v2332, %v2342
      %v2345 = vmul.f32 %v2333, %v2342
      %v2346 = vmul.f32 %v2334, %v2342
      %v2347 = vmul.f32 %v2335, %v2342
      %v2348 = vlaneseq
      %v2349 = vshrl.u32 %v2348, 7
      %v2350 = vsub.s32 1, %v2349
      %v2351 = vrot.slane %v795, %v2350
      %2353 = vrot.lane.b32.xlu0 %v2351, 56
      %v2354 = vpop.permute.xlu0 %2353
      %v2356 = vmul.f32 %v2332, %v2354
      %v2357 = vmul.f32 %v2333, %v2354
      %v2358 = vmul.f32 %v2334, %v2354
      %v2359 = vmul.f32 %v2335, %v2354
      %v2360 = vlaneseq
      %v2361 = vshrl.u32 %v2360, 7
      %v2362 = vsub.s32 2, %v2361
      %v2363 = vrot.slane %v795, %v2362
      %2365 = vrot.lane.b32.xlu0 %v2363, 57
      %v2366 = vpop.permute.xlu0 %2365
      %v2368 = vmul.f32 %v2332, %v2366
      %v2369 = vmul.f32 %v2333, %v2366
      %v2370 = vmul.f32 %v2334, %v2366
      %v2371 = vmul.f32 %v2335, %v2366
      %v2372 = vlaneseq
      %v2373 = vshrl.u32 %v2372, 7
      %v2374 = vsub.s32 3, %v2373
      %v2375 = vrot.slane %v795, %v2374
      %2377 = vrot.lane.b32.xlu0 %v2375, 63
      %v2378 = vpop.permute.xlu0 %2377
      %v2380 = vmul.f32 %v2332, %v2378
      %v2381 = vmul.f32 %v2333, %v2378
      %v2382 = vmul.f32 %v2334, %v2378
      %v2383 = vmul.f32 %v2335, %v2378
      %v2384 = vlaneseq
      %v2385 = vshrl.u32 %v2384, 7
      %v2386 = vsub.s32 4, %v2385
      %v2387 = vrot.slane %v795, %v2386
      %v2388 = vmul.f32 %v2307, %v2387
      %v2389 = vmul.f32 %v2308, %v2387
      %v2390 = vmul.f32 %v2309, %v2387
      %v2391 = vmul.f32 %v2310, %v2387
      %v2392 = vlaneseq
      %v2393 = vshrl.u32 %v2392, 7
      %v2394 = vsub.s32 5, %v2393
      %v2395 = vrot.slane %v795, %v2394
      %2397 = vrot.lane.b32.xlu0 %v2395, 1
      %v2398 = vpop.permute.xlu0 %2397
      %v2400 = vmul.f32 %v2332, %v2398
      %v2401 = vmul.f32 %v2333, %v2398
      %v2402 = vmul.f32 %v2334, %v2398
      %v2403 = vmul.f32 %v2335, %v2398
      %v2404 = vlaneseq
      %v2405 = vshrl.u32 %v2404, 7
      %v2406 = vsub.s32 6, %v2405
      %v2407 = vrot.slane %v795, %v2406
      %2409 = vrot.lane.b32.xlu0 %v2407, 7
      %v2410 = vpop.permute.xlu0 %2409
      %v2412 = vmul.f32 %v2332, %v2410
      %v2413 = vmul.f32 %v2333, %v2410
      %v2414 = vmul.f32 %v2334, %v2410
      %v2415 = vmul.f32 %v2335, %v2410
      %v2416 = vlaneseq
      %v2417 = vshrl.u32 %v2416, 7
      %v2418 = vsub.s32 7, %v2417
      %v2419 = vrot.slane %v795, %v2418
      %2421 = vrot.lane.b32.xlu0 %v2419, 8
      %v2422 = vpop.permute.xlu0 %2421
      %v2424 = vmul.f32 %v2332, %v2422
      %v2425 = vmul.f32 %v2333, %v2422
      %v2426 = vmul.f32 %v2334, %v2422
      %v2427 = vmul.f32 %v2335, %v2422
      %v2428 = vlaneseq
      %v2429 = vshrl.u32 %v2428, 7
      %v2430 = vsub.s32 0, %v2429
      %v2431 = vrot.slane %v796, %v2430
      %2433 = vrot.lane.b32.xlu0 %v2431, 9
      %v2434 = vpop.permute.xlu0 %2433
      %v2436 = vmul.f32 %v2332, %v2434
      %v2437 = vmul.f32 %v2333, %v2434
      %v2438 = vmul.f32 %v2334, %v2434
      %v2439 = vmul.f32 %v2335, %v2434
      %2444 = vrot.lane.b32.xlu0 %v2356, 127
      %v2445 = vpop.permute.xlu0 %2444
      %2446 = vrot.lane.b32.xlu0 %v2357, 127
      %v2447 = vpop.permute.xlu0 %2446
      %2448 = vrot.lane.b32.xlu0 %v2358, 127
      %v2449 = vpop.permute.xlu0 %2448
      %2450 = vrot.lane.b32.xlu0 %v2359, 127
      %v2451 = vpop.permute.xlu0 %2450
      %2460 = vrot.lane.b32.xlu0 %v2368, 126
      %v2461 = vpop.permute.xlu0 %2460
      %2462 = vrot.lane.b32.xlu0 %v2369, 126
      %v2463 = vpop.permute.xlu0 %2462
      %2464 = vrot.lane.b32.xlu0 %v2370, 126
      %v2465 = vpop.permute.xlu0 %2464
      %2466 = vrot.lane.b32.xlu0 %v2371, 126
      %v2467 = vpop.permute.xlu0 %2466
      %2476 = vrot.lane.b32.xlu0 %v2380, 120
      %v2477 = vpop.permute.xlu0 %2476
      %2478 = vrot.lane.b32.xlu0 %v2381, 120
      %v2479 = vpop.permute.xlu0 %2478
      %2480 = vrot.lane.b32.xlu0 %v2382, 120
      %v2481 = vpop.permute.xlu0 %2480
      %2482 = vrot.lane.b32.xlu0 %v2383, 120
      %v2483 = vpop.permute.xlu0 %2482
      %2492 = vrot.lane.b32.xlu0 %v2388, 55
      %v2493 = vpop.permute.xlu0 %2492
      %2494 = vrot.lane.b32.xlu0 %v2389, 55
      %v2495 = vpop.permute.xlu0 %2494
      %2496 = vrot.lane.b32.xlu0 %v2390, 55
      %v2497 = vpop.permute.xlu0 %2496
      %2498 = vrot.lane.b32.xlu0 %v2391, 55
      %v2499 = vpop.permute.xlu0 %2498
      %2508 = vrot.lane.b32.xlu0 %v2400, 54
      %v2509 = vpop.permute.xlu0 %2508
      %2510 = vrot.lane.b32.xlu0 %v2401, 54
      %v2511 = vpop.permute.xlu0 %2510
      %2512 = vrot.lane.b32.xlu0 %v2402, 54
      %v2513 = vpop.permute.xlu0 %2512
      %2514 = vrot.lane.b32.xlu0 %v2403, 54
      %v2515 = vpop.permute.xlu0 %2514
      %2524 = vrot.lane.b32.xlu0 %v2412, 48
      %v2525 = vpop.permute.xlu0 %2524
      %2526 = vrot.lane.b32.xlu0 %v2413, 48
      %v2527 = vpop.permute.xlu0 %2526
      %2528 = vrot.lane.b32.xlu0 %v2414, 48
      %v2529 = vpop.permute.xlu0 %2528
      %2530 = vrot.lane.b32.xlu0 %v2415, 48
      %v2531 = vpop.permute.xlu0 %2530
      %2540 = vrot.lane.b32.xlu0 %v2424, 47
      %v2541 = vpop.permute.xlu0 %2540
      %2542 = vrot.lane.b32.xlu0 %v2425, 47
      %v2543 = vpop.permute.xlu0 %2542
      %2544 = vrot.lane.b32.xlu0 %v2426, 47
      %v2545 = vpop.permute.xlu0 %2544
      %2546 = vrot.lane.b32.xlu0 %v2427, 47
      %v2547 = vpop.permute.xlu0 %2546
      %2556 = vrot.lane.b32.xlu0 %v2436, 46
      %v2557 = vpop.permute.xlu0 %2556
      %2558 = vrot.lane.b32.xlu0 %v2437, 46
      %v2559 = vpop.permute.xlu0 %2558
      %2560 = vrot.lane.b32.xlu0 %v2438, 46
      %v2561 = vpop.permute.xlu0 %2560
      %2562 = vrot.lane.b32.xlu0 %v2439, 46
      %v2563 = vpop.permute.xlu0 %2562
      %v2568 = vpack.c.bf16 %v2345, %v2344
      %v2569 = vpack.c.bf16 %v2347, %v2346
      %v2570 = vpack.c.bf16 %v2447, %v2445
      %v2571 = vpack.c.bf16 %v2451, %v2449
      %v2572 = vpack.c.bf16 %v2463, %v2461
      %v2573 = vpack.c.bf16 %v2467, %v2465
      %v2574 = vpack.c.bf16 %v2479, %v2477
      %v2575 = vpack.c.bf16 %v2483, %v2481
      %v2576 = vpack.c.bf16 %v2495, %v2493
      %v2577 = vpack.c.bf16 %v2499, %v2497
      %v2578 = vpack.c.bf16 %v2511, %v2509
      %v2579 = vpack.c.bf16 %v2515, %v2513
      %v2580 = vpack.c.bf16 %v2527, %v2525
      %v2581 = vpack.c.bf16 %v2531, %v2529
      %v2582 = vpack.c.bf16 %v2543, %v2541
      %v2583 = vpack.c.bf16 %v2547, %v2545
      %v2584 = vpack.c.bf16 %v2559, %v2557
      %v2585 = vpack.c.bf16 %v2563, %v2561
      %v2586 = vld [vmem:[%s18] sm:$0xff]
      %v2587 = vld [vmem:[%s18 + $0x8] sm:$0xf]
      %v2588 = vld [vmem:[%s18 + $0xc] sm:$0xff]
      %v2589 = vld [vmem:[%s18 + $0x14] sm:$0xf]
      %v2590 = vld [vmem:[%s18 + $0x18] sm:$0xff]
      %v2591 = vld [vmem:[%s18 + $0x20] sm:$0xf]
      %v2592 = vld [vmem:[%s18 + $0x24] sm:$0xff]
      %v2593 = vld [vmem:[%s18 + $0x2c] sm:$0xf]
      %v2594 = vld [vmem:[%s19] sm:$0xff]
      %v2595 = vld [vmem:[%s19 + $0x8] sm:$0xff]
      %v2596 = vld [vmem:[%s19 + $0x10] sm:$0xff]
      %v2597 = vld [vmem:[%s19 + $0x18] sm:$0xff]
      %2599 = vset.pattern.permute.xlu0 0
      %2600 = vperm.xlu0 %2599, %v2594
      %v2601 = vpop.permute.xlu0 %2600
      %2604 = vset.pattern.permute.xlu0 0
      %2605 = vperm.xlu0 %2604, %v2595
      %v2606 = vpop.permute.xlu0 %2605
      %2609 = vset.pattern.permute.xlu0 0
      %2610 = vperm.xlu0 %2609, %v2596
      %v2611 = vpop.permute.xlu0 %2610
      %2614 = vset.pattern.permute.xlu0 0
      %2615 = vperm.xlu0 %2614, %v2597
      %v2616 = vpop.permute.xlu0 %2615
      %v2626 = vunpack.c.l.b16 %v2586
      %v2627 = vunpack.c.h.b16 %v2586
      %v2628 = vunpack.c.l.b16 %v2587
      %v2629 = vunpack.c.l.b16 %v2588
      %v2630 = vunpack.c.h.b16 %v2588
      %v2631 = vunpack.c.l.b16 %v2589
      %v2632 = vunpack.c.l.b16 %v2590
      %v2633 = vunpack.c.h.b16 %v2590
      %v2634 = vunpack.c.l.b16 %v2591
      %v2635 = vunpack.c.l.b16 %v2592
      %v2636 = vunpack.c.h.b16 %v2592
      %v2637 = vunpack.c.l.b16 %v2593
      %v2638 = vpack.c.b16 %v2629, %v2626
      %v2639 = vpack.c.b16 %v2630, %v2627
      %v2640 = vpack.c.b16 %v2631, %v2628
      %v2641 = vpack.c.b16 %v2635, %v2632
      %v2642 = vpack.c.b16 %v2636, %v2633
      %v2643 = vpack.c.b16 %v2637, %v2634
      %2666 = vrot.lane.b32.xlu0 %v2568, 73
      %v2667 = vpop.permute.xlu0 %2666
      %2668 = vrot.lane.b32.xlu0 %v2569, 73
      %v2669 = vpop.permute.xlu0 %2668
      %2670 = vrot.lane.b32.xlu0 %v2570, 73
      %v2671 = vpop.permute.xlu0 %2670
      %2672 = vrot.lane.b32.xlu0 %v2571, 73
      %v2673 = vpop.permute.xlu0 %2672
      %2674 = vrot.lane.b32.xlu0 %v2572, 73
      %v2675 = vpop.permute.xlu0 %2674
      %2676 = vrot.lane.b32.xlu0 %v2573, 73
      %v2677 = vpop.permute.xlu0 %2676
      %2678 = vrot.lane.b32.xlu0 %v2574, 73
      %v2679 = vpop.permute.xlu0 %2678
      %2680 = vrot.lane.b32.xlu0 %v2575, 73
      %v2681 = vpop.permute.xlu0 %2680
      %2682 = vrot.lane.b32.xlu0 %v2576, 73
      %v2683 = vpop.permute.xlu0 %2682
      %2684 = vrot.lane.b32.xlu0 %v2577, 73
      %v2685 = vpop.permute.xlu0 %2684
      %2686 = vrot.lane.b32.xlu0 %v2578, 73
      %v2687 = vpop.permute.xlu0 %2686
      %2688 = vrot.lane.b32.xlu0 %v2579, 73
      %v2689 = vpop.permute.xlu0 %2688
      %2690 = vrot.lane.b32.xlu0 %v2580, 73
      %v2691 = vpop.permute.xlu0 %2690
      %2692 = vrot.lane.b32.xlu0 %v2581, 73
      %v2693 = vpop.permute.xlu0 %2692
      %2694 = vrot.lane.b32.xlu0 %v2582, 73
      %v2695 = vpop.permute.xlu0 %2694
      %2696 = vrot.lane.b32.xlu0 %v2583, 73
      %v2697 = vpop.permute.xlu0 %2696
      %2698 = vrot.lane.b32.xlu0 %v2584, 73
      %v2699 = vpop.permute.xlu0 %2698
      %2700 = vrot.lane.b32.xlu0 %v2585, 73
      %v2701 = vpop.permute.xlu0 %2700
      %vm2720 = vcmask 261120
      %v2722 = vsel %vm2720, %v2640, 0
      %v2725 = vsel %vm2720, %v2643, 0
      %2727 = vmatprep.subr.bf16.mxu0 0
      %2728 = vmatpush1.bf16.msra.mxu0 %v2667
      %2729 = vmatprep.subr.bf16.mxu0 0
      %2730 = vmatpush1.bf16.msra.mxu0 %v2669
      %2731 = vmatprep.subr.bf16.mxu0 0
      %2732 = vmatpush1.bf16.msra.mxu0 %v2671
      %2733 = vmatprep.subr.bf16.mxu0 0
      %2734 = vmatpush1.bf16.msra.mxu0 %v2673
      %2735 = vmatprep.subr.bf16.mxu0 0
      %2736 = vmatpush1.bf16.msra.mxu0 %v2675
      %2737 = vmatprep.subr.bf16.mxu0 0
      %2738 = vmatpush1.bf16.msra.mxu0 %v2677
      %2739 = vmatprep.subr.bf16.mxu0 0
      %2740 = vmatpush1.bf16.msra.mxu0 %v2679
      %2741 = vmatprep.subr.bf16.mxu0 0
      %2742 = vmatpush1.bf16.msra.mxu0 %v2681
      %2743 = vmatprep.subr.bf16.mxu0 0
      %2744 = vmatpush1.bf16.msra.mxu0 %v2683
      %2745 = vmatprep.subr.bf16.mxu0 0
      %2746 = vmatpush1.bf16.msra.mxu0 %v2685
      %2747 = vmatprep.subr.bf16.mxu0 0
      %2748 = vmatpush1.bf16.msra.mxu0 %v2687
      %2749 = vmatprep.subr.bf16.mxu0 0
      %2750 = vmatpush1.bf16.msra.mxu0 %v2689
      %2751 = vmatprep.subr.bf16.mxu0 0
      %2752 = vmatpush1.bf16.msra.mxu0 %v2691
      %2753 = vmatprep.subr.bf16.mxu0 0
      %2754 = vmatpush1.bf16.msra.mxu0 %v2693
      %2755 = vmatprep.subr.bf16.mxu0 0
      %2756 = vmatpush1.bf16.msra.mxu0 %v2695
      %2757 = vmatprep.subr.bf16.mxu0 0
      %2758 = vmatpush1.bf16.msra.mxu0 %v2697
      %2759 = vmatprep.mubr.bf16.mxu0 %v2639
      %2760 = vmatmul.mubr.bf16.gmra.mrb[0].mxu0 %v2638
      %v2761 = vpop.f32.mrb[0].mxu0
      %v2762 = vadd.f32 %v2601, %v2761
      %v2763 = vpop.f32.mrb[0].mxu0
      %v2764 = vpop.f32.mrb[0].mxu0
      %v2765 = vadd.f32 %v2606, %v2764
      %v2766 = vpop.f32.mrb[0].mxu0
      %2767 = vmatprep.mubr.bf16.mxu0 %v2642
      %2768 = vmatmul.mubr.bf16.gmra.mrb[0].mxu0 %v2641
      %v2769 = vpop.f32.mrb[0].mxu0
      %v2770 = vadd.f32 %v2611, %v2769
      %v2771 = vpop.f32.mrb[0].mxu0
      %v2772 = vpop.f32.mrb[0].mxu0
      %v2773 = vadd.f32 %v2616, %v2772
      %v2774 = vpop.f32.mrb[0].mxu0
      %2775 = vdwg.mxu0
      %2776 = vmatprep.subr.bf16.mxu0 0
      %2777 = vmatpush1.bf16.msra.mxu0 %v2699
      %2778 = vmatprep.subr.bf16.mxu0 0
      %2779 = vmatpush1.bf16.msra.mxu0 %v2701
      %2780 = vmatprep.subr.bf16.mxu0 0
      %2781 = vmatpush1.bf16.msra.mxu0 0
      %2782 = vmatprep.subr.bf16.mxu0 0
      %2783 = vmatpush1.bf16.msra.mxu0 0
      %2784 = vmatprep.subr.bf16.mxu0 0
      %2785 = vmatpush1.bf16.msra.mxu0 0
      %2786 = vmatprep.subr.bf16.mxu0 0
      %2787 = vmatpush1.bf16.msra.mxu0 0
      %2788 = vmatprep.subr.bf16.mxu0 0
      %2789 = vmatpush1.bf16.msra.mxu0 0
      %2790 = vmatprep.subr.bf16.mxu0 0
      %2791 = vmatpush1.bf16.msra.mxu0 0
      %2792 = vmatprep.subr.bf16.mxu0 0
      %2793 = vmatpush1.bf16.msra.mxu0 0
      %2794 = vmatprep.subr.bf16.mxu0 0
      %2795 = vmatpush1.bf16.msra.mxu0 0
      %2796 = vmatprep.subr.bf16.mxu0 0
      %2797 = vmatpush1.bf16.msra.mxu0 0
      %2798 = vmatprep.subr.bf16.mxu0 0
      %2799 = vmatpush1.bf16.msra.mxu0 0
      %2800 = vmatprep.subr.bf16.mxu0 0
      %2801 = vmatpush1.bf16.msra.mxu0 0
      %2802 = vmatprep.subr.bf16.mxu0 0
      %2803 = vmatpush1.bf16.msra.mxu0 0
      %2804 = vmatprep.subr.bf16.mxu0 0
      %2805 = vmatpush1.bf16.msra.mxu0 0
      %2806 = vmatprep.subr.bf16.mxu0 0
      %2807 = vmatpush1.bf16.msra.mxu0 0
      %2808 = vmatprep.mubr.bf16.mxu0 0
      %2809 = vmatmul.mubr.bf16.gmra.mrb[0].mxu0 %v2722
      %v2810 = vpop.f32.mrb[0].mxu0
      %v2811 = vadd.f32 %v2762, %v2810
      %v2812 = vpop.f32.mrb[0].mxu0
      %v2813 = vpop.f32.mrb[0].mxu0
      %v2814 = vadd.f32 %v2765, %v2813
      %v2815 = vpop.f32.mrb[0].mxu0
      %2816 = vmatprep.mubr.bf16.mxu0 0
      %2817 = vmatmul.mubr.bf16.gmra.mrb[0].mxu0 %v2725
      %v2818 = vpop.f32.mrb[0].mxu0
      %v2819 = vadd.f32 %v2770, %v2818
      %v2820 = vpop.f32.mrb[0].mxu0
      %v2821 = vpop.f32.mrb[0].mxu0
      %v2822 = vadd.f32 %v2773, %v2821
      %v2823 = vpop.f32.mrb[0].mxu0
      %2824 = vdwg.mxu0
      %2825 = vmatprep.subr.mxu0 0.0
      %2826 = vmatpush1.msra.mxu0 %v1935
      %2827 = vmatprep.subr.mxu0 0.0
      %2828 = vmatpush1.msra.mxu0 %v1936
      %2829 = vmatprep.subr.mxu0 0.0
      %2830 = vmatpush1.msra.mxu0 %v1937
      %2831 = vmatprep.subr.mxu0 0.0
      %2832 = vmatpush1.msra.mxu0 %v1938
      %2833 = vmatprep.subr.mxu0 0.0
      %2834 = vmatpush1.msra.mxu0 %v1939
      %2835 = vmatprep.subr.mxu0 0.0
      %2836 = vmatpush1.msra.mxu0 %v1940
      %2837 = vmatprep.subr.mxu0 0.0
      %2838 = vmatpush1.msra.mxu0 %v1941
      %2839 = vmatprep.subr.mxu0 0.0
      %2840 = vmatpush1.msra.mxu0 %v1942
      %2841 = vmatprep.subr.mxu0 0.0
      %2842 = vmatpush1.msra.mxu0 %v1943
      %2843 = vmatprep.subr.mxu0 0.0
      %2844 = vmatpush1.msra.mxu0 %v1944
      %2845 = vmatprep.subr.mxu0 0.0
      %2846 = vmatpush1.msra.mxu0 %v1945
      %2847 = vmatprep.subr.mxu0 0.0
      %2848 = vmatpush1.msra.mxu0 %v1946
      %2849 = vmatprep.subr.mxu0 0.0
      %2850 = vmatpush1.msra.mxu0 %v1947
      %2851 = vmatprep.subr.mxu0 0.0
      %2852 = vmatpush1.msra.mxu0 %v1948
      %2853 = vmatprep.subr.mxu0 0.0
      %2854 = vmatpush1.msra.mxu0 %v1949
      %2855 = vmatprep.subr.mxu0 0.0
      %2856 = vmatpush1.msra.mxu0 %v1950
      %2857 = vmatprep.subr.mxu0 0.0
      %2858 = vmatpush1.msra.mxu0 %v1951
      %2859 = vmatprep.subr.mxu0 0.0
      %2860 = vmatpush1.msra.mxu0 %v1952
      %2861 = vmatprep.subr.mxu0 0.0
      %2862 = vmatpush1.msra.mxu0 %v1953
      %2863 = vmatprep.subr.mxu0 0.0
      %2864 = vmatpush1.msra.mxu0 %v1954
      %2865 = vmatprep.subr.mxu0 0.0
      %2866 = vmatpush1.msra.mxu0 %v1955
      %2867 = vmatprep.subr.mxu0 0.0
      %2868 = vmatpush1.msra.mxu0 %v1956
      %2869 = vmatprep.subr.mxu0 0.0
      %2870 = vmatpush1.msra.mxu0 %v1957
      %2871 = vmatprep.subr.mxu0 0.0
      %2872 = vmatpush1.msra.mxu0 %v1958
      %2873 = vmatprep.subr.mxu0 0.0
      %2874 = vmatpush1.msra.mxu0 %v1959
      %2875 = vmatprep.subr.mxu0 0.0
      %2876 = vmatpush1.msra.mxu0 %v1960
      %2877 = vmatprep.subr.mxu0 0.0
      %2878 = vmatpush1.msra.mxu0 %v1961
      %2879 = vmatprep.subr.mxu0 0.0
      %2880 = vmatpush1.msra.mxu0 %v1962
      %2881 = vmatprep.subr.mxu0 0.0
      %2882 = vmatpush1.msra.mxu0 %v1963
      %2883 = vmatprep.subr.mxu0 0.0
      %2884 = vmatpush1.msra.mxu0 %v1964
      %2885 = vmatprep.subr.mxu0 0.0
      %2886 = vmatpush1.msra.mxu0 %v1965
      %2887 = vmatprep.subr.mxu0 0.0
      %2888 = vmatpush1.msra.mxu0 %v1966
      %2889 = vmatprep.mubr.f32.mxu0 %v1932
      %2890 = vmatmul.mubr.f32.gmra.mrb[0].mxu0 %v1931
      %v2891 = vpop.f32.mrb[0].mxu0
      %v2892 = vadd.f32 0.0, %v2891
      %v2893 = vpop.f32.mrb[0].mxu0
      %2894 = vmatprep.mubr.f32.mxu0 %v1934
      %2895 = vmatmul.mubr.f32.gmra.mrb[0].mxu0 %v1933
      %v2896 = vpop.f32.mrb[0].mxu0
      %v2897 = vadd.f32 0.0, %v2896
      %v2898 = vpop.f32.mrb[0].mxu0
      %2899 = vdwg.mxu0
      %v2900 = vld [vmem:[%s16] sm:$0xf]
      %v2901 = vld [vmem:[%s16 + $0x4] sm:$0xf]
      %v2902 = vld [vmem:[%s16 + $0x8] sm:$0xf]
      %v2903 = vld [vmem:[%s16 + $0xc] sm:$0xf]
      %v2904 = vpack.c.bf16 %v2897, %v2892
      %v2905 = vld [vmem:[%s17] sm:$0xff]
      %v2906 = vld [vmem:[%s17 + $0x8] sm:$0xff]
      %v2907 = vld [vmem:[%s17 + $0x10] sm:$0xff]
      %v2908 = vld [vmem:[%s17 + $0x18] sm:$0xff]
      %2910 = vset.pattern.permute.xlu0 0
      %2911 = vperm.xlu0 %2910, %v2905
      %v2912 = vpop.permute.xlu0 %2911
      %2915 = vset.pattern.permute.xlu0 0
      %2916 = vperm.xlu0 %2915, %v2906
      %v2917 = vpop.permute.xlu0 %2916
      %2920 = vset.pattern.permute.xlu0 0
      %2921 = vperm.xlu0 %2920, %v2907
      %v2922 = vpop.permute.xlu0 %2921
      %2925 = vset.pattern.permute.xlu0 0
      %2926 = vperm.xlu0 %2925, %v2908
      %v2927 = vpop.permute.xlu0 %2926
      %v2933 = vunpack.c.l.b16 %v2900
      %v2934 = vunpack.c.l.b16 %v2901
      %v2935 = vunpack.c.l.b16 %v2902
      %v2936 = vunpack.c.l.b16 %v2903
      %v2937 = vpack.c.b16 %v2934, %v2933
      %v2938 = vpack.c.b16 %v2936, %v2935
      %v2940 = vsel %vm1207, %v2937, 0
      %v2943 = vsel %vm1207, %v2938, 0
      %2945 = vmatprep.subr.bf16.mxu0 0
      %2946 = vmatpush1.bf16.msra.mxu0 %v2904
      %2947 = vmatprep.subr.bf16.mxu0 0
      %2948 = vmatpush1.bf16.msra.mxu0 0
      %2949 = vmatprep.subr.bf16.mxu0 0
      %2950 = vmatpush1.bf16.msra.mxu0 0
      %2951 = vmatprep.subr.bf16.mxu0 0
      %2952 = vmatpush1.bf16.msra.mxu0 0
      %2953 = vmatprep.subr.bf16.mxu0 0
      %2954 = vmatpush1.bf16.msra.mxu0 0
      %2955 = vmatprep.subr.bf16.mxu0 0
      %2956 = vmatpush1.bf16.msra.mxu0 0
      %2957 = vmatprep.subr.bf16.mxu0 0
      %2958 = vmatpush1.bf16.msra.mxu0 0
      %2959 = vmatprep.subr.bf16.mxu0 0
      %2960 = vmatpush1.bf16.msra.mxu0 0
      %2961 = vmatprep.subr.bf16.mxu0 0
      %2962 = vmatpush1.bf16.msra.mxu0 0
      %2963 = vmatprep.subr.bf16.mxu0 0
      %2964 = vmatpush1.bf16.msra.mxu0 0
      %2965 = vmatprep.subr.bf16.mxu0 0
      %2966 = vmatpush1.bf16.msra.mxu0 0
      %2967 = vmatprep.subr.bf16.mxu0 0
      %2968 = vmatpush1.bf16.msra.mxu0 0
      %2969 = vmatprep.subr.bf16.mxu0 0
      %2970 = vmatpush1.bf16.msra.mxu0 0
      %2971 = vmatprep.subr.bf16.mxu0 0
      %2972 = vmatpush1.bf16.msra.mxu0 0
      %2973 = vmatprep.subr.bf16.mxu0 0
      %2974 = vmatpush1.bf16.msra.mxu0 0
      %2975 = vmatprep.subr.bf16.mxu0 0
      %2976 = vmatpush1.bf16.msra.mxu0 0
      %2977 = vmatprep.mubr.bf16.mxu0 0
      %2978 = vmatmul.mubr.bf16.gmra.mrb[0].mxu0 %v2940
      %v2979 = vpop.f32.mrb[0].mxu0
      %v2980 = vadd.f32 %v2912, %v2979
      %v2981 = vpop.f32.mrb[0].mxu0
      %v2982 = vpop.f32.mrb[0].mxu0
      %v2983 = vadd.f32 %v2917, %v2982
      %v2984 = vpop.f32.mrb[0].mxu0
      %2985 = vmatprep.mubr.bf16.mxu0 0
      %2986 = vmatmul.mubr.bf16.gmra.mrb[0].mxu0 %v2943
      %v2987 = vpop.f32.mrb[0].mxu0
      %v2988 = vadd.f32 %v2922, %v2987
      %v2989 = vpop.f32.mrb[0].mxu0
      %v2990 = vpop.f32.mrb[0].mxu0
      %v2991 = vadd.f32 %v2927, %v2990
      %v2992 = vpop.f32.mrb[0].mxu0
      %2993 = vdwg.mxu0
      %v2994 = vadd.f32 %v2811, %v2980
      %v2995 = vadd.f32 %v2814, %v2983
      %v2996 = vadd.f32 %v2819, %v2988
      %v2997 = vadd.f32 %v2822, %v2991
      %v2998 = vmax.f32 %v2994, 0.0
      %v2999 = vmax.f32 %v2995, 0.0
      %v3000 = vmax.f32 %v2996, 0.0
      %v3001 = vmax.f32 %v2997, 0.0
      %3002 = vrot.lane.b32.xlu0 %v2998, 64
      %v3003 = vpop.permute.xlu0 %3002
      %v3004 = vsel %vm2311, %v3003, %v2998
      %3005 = vrot.lane.b32.xlu0 %v2999, 64
      %v3006 = vpop.permute.xlu0 %3005
      %v3007 = vsel %vm2311, %v3006, %v2999
      %3008 = vrot.lane.b32.xlu0 %v3000, 64
      %v3009 = vpop.permute.xlu0 %3008
      %v3010 = vsel %vm2311, %v3009, %v3000
      %3011 = vrot.lane.b32.xlu0 %v3001, 64
      %v3012 = vpop.permute.xlu0 %3011
      %v3013 = vsel %vm2311, %v3012, %v3001
      %3014 = vrot.lane.b32.xlu0 %v3004, 64
      %v3015 = vpop.permute.xlu0 %3014
      %3016 = vrot.lane.b32.xlu0 %v3007, 64
      %v3017 = vpop.permute.xlu0 %3016
      %3018 = vrot.lane.b32.xlu0 %v3010, 64
      %v3019 = vpop.permute.xlu0 %3018
      %3020 = vrot.lane.b32.xlu0 %v3013, 64
      %v3021 = vpop.permute.xlu0 %3020
      %v3022 = vsel %vm2311, %v3015, %v2998
      %v3023 = vsel %vm2311, %v3017, %v2999
      %v3024 = vsel %vm2311, %v3019, %v3000
      %v3025 = vsel %vm2311, %v3021, %v3001
      %v3026 = vmul.f32 %v3022, %v2342
      %v3027 = vmul.f32 %v3023, %v2342
      %v3028 = vmul.f32 %v3024, %v2342
      %v3029 = vmul.f32 %v3025, %v2342
      %v3030 = vmul.f32 %v3022, %v2354
      %v3031 = vmul.f32 %v3023, %v2354
      %v3032 = vmul.f32 %v3024, %v2354
      %v3033 = vmul.f32 %v3025, %v2354
      %v3034 = vmul.f32 %v3022, %v2366
      %v3035 = vmul.f32 %v3023, %v2366
      %v3036 = vmul.f32 %v3024, %v2366
      %v3037 = vmul.f32 %v3025, %v2366
      %v3038 = vmul.f32 %v3022, %v2378
      %v3039 = vmul.f32 %v3023, %v2378
      %v3040 = vmul.f32 %v3024, %v2378
      %v3041 = vmul.f32 %v3025, %v2378
      %v3042 = vmul.f32 %v2998, %v2387
      %v3043 = vmul.f32 %v2999, %v2387
      %v3044 = vmul.f32 %v3000, %v2387
      %v3045 = vmul.f32 %v3001, %v2387
      %v3046 = vmul.f32 %v3022, %v2398
      %v3047 = vmul.f32 %v3023, %v2398
      %v3048 = vmul.f32 %v3024, %v2398
      %v3049 = vmul.f32 %v3025, %v2398
      %v3050 = vmul.f32 %v3022, %v2410
      %v3051 = vmul.f32 %v3023, %v2410
      %v3052 = vmul.f32 %v3024, %v2410
      %v3053 = vmul.f32 %v3025, %v2410
      %v3054 = vmul.f32 %v3022, %v2422
      %v3055 = vmul.f32 %v3023, %v2422
      %v3056 = vmul.f32 %v3024, %v2422
      %v3057 = vmul.f32 %v3025, %v2422
      %v3058 = vmul.f32 %v3022, %v2434
      %v3059 = vmul.f32 %v3023, %v2434
      %v3060 = vmul.f32 %v3024, %v2434
      %v3061 = vmul.f32 %v3025, %v2434
      %3066 = vrot.lane.b32.xlu0 %v3030, 127
      %v3067 = vpop.permute.xlu0 %3066
      %3068 = vrot.lane.b32.xlu0 %v3031, 127
      %v3069 = vpop.permute.xlu0 %3068
      %3070 = vrot.lane.b32.xlu0 %v3032, 127
      %v3071 = vpop.permute.xlu0 %3070
      %3072 = vrot.lane.b32.xlu0 %v3033, 127
      %v3073 = vpop.permute.xlu0 %3072
      %3082 = vrot.lane.b32.xlu0 %v3034, 126
      %v3083 = vpop.permute.xlu0 %3082
      %3084 = vrot.lane.b32.xlu0 %v3035, 126
      %v3085 = vpop.permute.xlu0 %3084
      %3086 = vrot.lane.b32.xlu0 %v3036, 126
      %v3087 = vpop.permute.xlu0 %3086
      %3088 = vrot.lane.b32.xlu0 %v3037, 126
      %v3089 = vpop.permute.xlu0 %3088
      %3098 = vrot.lane.b32.xlu0 %v3038, 120
      %v3099 = vpop.permute.xlu0 %3098
      %3100 = vrot.lane.b32.xlu0 %v3039, 120
      %v3101 = vpop.permute.xlu0 %3100
      %3102 = vrot.lane.b32.xlu0 %v3040, 120
      %v3103 = vpop.permute.xlu0 %3102
      %3104 = vrot.lane.b32.xlu0 %v3041, 120
      %v3105 = vpop.permute.xlu0 %3104
      %3114 = vrot.lane.b32.xlu0 %v3042, 55
      %v3115 = vpop.permute.xlu0 %3114
      %3116 = vrot.lane.b32.xlu0 %v3043, 55
      %v3117 = vpop.permute.xlu0 %3116
      %3118 = vrot.lane.b32.xlu0 %v3044, 55
      %v3119 = vpop.permute.xlu0 %3118
      %3120 = vrot.lane.b32.xlu0 %v3045, 55
      %v3121 = vpop.permute.xlu0 %3120
      %3130 = vrot.lane.b32.xlu0 %v3046, 54
      %v3131 = vpop.permute.xlu0 %3130
      %3132 = vrot.lane.b32.xlu0 %v3047, 54
      %v3133 = vpop.permute.xlu0 %3132
      %3134 = vrot.lane.b32.xlu0 %v3048, 54
      %v3135 = vpop.permute.xlu0 %3134
      %3136 = vrot.lane.b32.xlu0 %v3049, 54
      %v3137 = vpop.permute.xlu0 %3136
      %3146 = vrot.lane.b32.xlu0 %v3050, 48
      %v3147 = vpop.permute.xlu0 %3146
      %3148 = vrot.lane.b32.xlu0 %v3051, 48
      %v3149 = vpop.permute.xlu0 %3148
      %3150 = vrot.lane.b32.xlu0 %v3052, 48
      %v3151 = vpop.permute.xlu0 %3150
      %3152 = vrot.lane.b32.xlu0 %v3053, 48
      %v3153 = vpop.permute.xlu0 %3152
      %3162 = vrot.lane.b32.xlu0 %v3054, 47
      %v3163 = vpop.permute.xlu0 %3162
      %3164 = vrot.lane.b32.xlu0 %v3055, 47
      %v3165 = vpop.permute.xlu0 %3164
      %3166 = vrot.lane.b32.xlu0 %v3056, 47
      %v3167 = vpop.permute.xlu0 %3166
      %3168 = vrot.lane.b32.xlu0 %v3057, 47
      %v3169 = vpop.permute.xlu0 %3168
      %3178 = vrot.lane.b32.xlu0 %v3058, 46
      %v3179 = vpop.permute.xlu0 %3178
      %3180 = vrot.lane.b32.xlu0 %v3059, 46
      %v3181 = vpop.permute.xlu0 %3180
      %3182 = vrot.lane.b32.xlu0 %v3060, 46
      %v3183 = vpop.permute.xlu0 %3182
      %3184 = vrot.lane.b32.xlu0 %v3061, 46
      %v3185 = vpop.permute.xlu0 %3184
      %v3190 = vpack.c.bf16 %v3027, %v3026
      %v3191 = vpack.c.bf16 %v3029, %v3028
      %v3192 = vpack.c.bf16 %v3069, %v3067
      %v3193 = vpack.c.bf16 %v3073, %v3071
      %v3194 = vpack.c.bf16 %v3085, %v3083
      %v3195 = vpack.c.bf16 %v3089, %v3087
      %v3196 = vpack.c.bf16 %v3101, %v3099
      %v3197 = vpack.c.bf16 %v3105, %v3103
      %v3198 = vpack.c.bf16 %v3117, %v3115
      %v3199 = vpack.c.bf16 %v3121, %v3119
      %v3200 = vpack.c.bf16 %v3133, %v3131
      %v3201 = vpack.c.bf16 %v3137, %v3135
      %v3202 = vpack.c.bf16 %v3149, %v3147
      %v3203 = vpack.c.bf16 %v3153, %v3151
      %v3204 = vpack.c.bf16 %v3165, %v3163
      %v3205 = vpack.c.bf16 %v3169, %v3167
      %v3206 = vpack.c.bf16 %v3181, %v3179
      %v3207 = vpack.c.bf16 %v3185, %v3183
      %v3208 = vld [vmem:[%s20] sm:$0xff]
      %v3209 = vld [vmem:[%s20 + $0x8] sm:$0xf]
      %v3210 = vld [vmem:[%s20 + $0xc] sm:$0xff]
      %v3211 = vld [vmem:[%s20 + $0x14] sm:$0xf]
      %v3212 = vld [vmem:[%s20 + $0x18] sm:$0xff]
      %v3213 = vld [vmem:[%s20 + $0x20] sm:$0xf]
      %v3214 = vld [vmem:[%s20 + $0x24] sm:$0xff]
      %v3215 = vld [vmem:[%s20 + $0x2c] sm:$0xf]
      %v3216 = vld [vmem:[%s21] sm:$0xff]
      %v3217 = vld [vmem:[%s21 + $0x8] sm:$0xff]
      %v3218 = vld [vmem:[%s21 + $0x10] sm:$0xff]
      %v3219 = vld [vmem:[%s21 + $0x18] sm:$0xff]
      %3221 = vset.pattern.permute.xlu0 0
      %3222 = vperm.xlu0 %3221, %v3216
      %v3223 = vpop.permute.xlu0 %3222
      %3226 = vset.pattern.permute.xlu0 0
      %3227 = vperm.xlu0 %3226, %v3217
      %v3228 = vpop.permute.xlu0 %3227
      %3231 = vset.pattern.permute.xlu0 0
      %3232 = vperm.xlu0 %3231, %v3218
      %v3233 = vpop.permute.xlu0 %3232
      %3236 = vset.pattern.permute.xlu0 0
      %3237 = vperm.xlu0 %3236, %v3219
      %v3238 = vpop.permute.xlu0 %3237
      %v3248 = vunpack.c.l.b16 %v3208
      %v3249 = vunpack.c.h.b16 %v3208
      %v3250 = vunpack.c.l.b16 %v3209
      %v3251 = vunpack.c.l.b16 %v3210
      %v3252 = vunpack.c.h.b16 %v3210
      %v3253 = vunpack.c.l.b16 %v3211
      %v3254 = vunpack.c.l.b16 %v3212
      %v3255 = vunpack.c.h.b16 %v3212
      %v3256 = vunpack.c.l.b16 %v3213
      %v3257 = vunpack.c.l.b16 %v3214
      %v3258 = vunpack.c.h.b16 %v3214
      %v3259 = vunpack.c.l.b16 %v3215
      %v3260 = vpack.c.b16 %v3251, %v3248
      %v3261 = vpack.c.b16 %v3252, %v3249
      %v3262 = vpack.c.b16 %v3253, %v3250
      %v3263 = vpack.c.b16 %v3257, %v3254
      %v3264 = vpack.c.b16 %v3258, %v3255
      %v3265 = vpack.c.b16 %v3259, %v3256
      %3288 = vrot.lane.b32.xlu0 %v3190, 73
      %v3289 = vpop.permute.xlu0 %3288
      %3290 = vrot.lane.b32.xlu0 %v3191, 73
      %v3291 = vpop.permute.xlu0 %3290
      %3292 = vrot.lane.b32.xlu0 %v3192, 73
      %v3293 = vpop.permute.xlu0 %3292
      %3294 = vrot.lane.b32.xlu0 %v3193, 73
      %v3295 = vpop.permute.xlu0 %3294
      %3296 = vrot.lane.b32.xlu0 %v3194, 73
      %v3297 = vpop.permute.xlu0 %3296
      %3298 = vrot.lane.b32.xlu0 %v3195, 73
      %v3299 = vpop.permute.xlu0 %3298
      %3300 = vrot.lane.b32.xlu0 %v3196, 73
      %v3301 = vpop.permute.xlu0 %3300
      %3302 = vrot.lane.b32.xlu0 %v3197, 73
      %v3303 = vpop.permute.xlu0 %3302
      %3304 = vrot.lane.b32.xlu0 %v3198, 73
      %v3305 = vpop.permute.xlu0 %3304
      %3306 = vrot.lane.b32.xlu0 %v3199, 73
      %v3307 = vpop.permute.xlu0 %3306
      %3308 = vrot.lane.b32.xlu0 %v3200, 73
      %v3309 = vpop.permute.xlu0 %3308
      %3310 = vrot.lane.b32.xlu0 %v3201, 73
      %v3311 = vpop.permute.xlu0 %3310
      %3312 = vrot.lane.b32.xlu0 %v3202, 73
      %v3313 = vpop.permute.xlu0 %3312
      %3314 = vrot.lane.b32.xlu0 %v3203, 73
      %v3315 = vpop.permute.xlu0 %3314
      %3316 = vrot.lane.b32.xlu0 %v3204, 73
      %v3317 = vpop.permute.xlu0 %3316
      %3318 = vrot.lane.b32.xlu0 %v3205, 73
      %v3319 = vpop.permute.xlu0 %3318
      %3320 = vrot.lane.b32.xlu0 %v3206, 73
      %v3321 = vpop.permute.xlu0 %3320
      %3322 = vrot.lane.b32.xlu0 %v3207, 73
      %v3323 = vpop.permute.xlu0 %3322
      %v3343 = vsel %vm2720, %v3262, 0
      %v3346 = vsel %vm2720, %v3265, 0
      %3348 = vmatprep.subr.bf16.mxu0 0
      %3349 = vmatpush1.bf16.msra.mxu0 %v3289
      %3350 = vmatprep.subr.bf16.mxu0 0
      %3351 = vmatpush1.bf16.msra.mxu0 %v3291
      %3352 = vmatprep.subr.bf16.mxu0 0
      %3353 = vmatpush1.bf16.msra.mxu0 %v3293
      %3354 = vmatprep.subr.bf16.mxu0 0
      %3355 = vmatpush1.bf16.msra.mxu0 %v3295
      %3356 = vmatprep.subr.bf16.mxu0 0
      %3357 = vmatpush1.bf16.msra.mxu0 %v3297
      %3358 = vmatprep.subr.bf16.mxu0 0
      %3359 = vmatpush1.bf16.msra.mxu0 %v3299
      %3360 = vmatprep.subr.bf16.mxu0 0
      %3361 = vmatpush1.bf16.msra.mxu0 %v3301
      %3362 = vmatprep.subr.bf16.mxu0 0
      %3363 = vmatpush1.bf16.msra.mxu0 %v3303
      %3364 = vmatprep.subr.bf16.mxu0 0
      %3365 = vmatpush1.bf16.msra.mxu0 %v3305
      %3366 = vmatprep.subr.bf16.mxu0 0
      %3367 = vmatpush1.bf16.msra.mxu0 %v3307
      %3368 = vmatprep.subr.bf16.mxu0 0
      %3369 = vmatpush1.bf16.msra.mxu0 %v3309
      %3370 = vmatprep.subr.bf16.mxu0 0
      %3371 = vmatpush1.bf16.msra.mxu0 %v3311
      %3372 = vmatprep.subr.bf16.mxu0 0
      %3373 = vmatpush1.bf16.msra.mxu0 %v3313
      %3374 = vmatprep.subr.bf16.mxu0 0
      %3375 = vmatpush1.bf16.msra.mxu0 %v3315
      %3376 = vmatprep.subr.bf16.mxu0 0
      %3377 = vmatpush1.bf16.msra.mxu0 %v3317
      %3378 = vmatprep.subr.bf16.mxu0 0
      %3379 = vmatpush1.bf16.msra.mxu0 %v3319
      %3380 = vmatprep.mubr.bf16.mxu0 %v3261
      %3381 = vmatmul.mubr.bf16.gmra.mrb[0].mxu0 %v3260
      %v3382 = vpop.f32.mrb[0].mxu0
      %v3383 = vadd.f32 %v3223, %v3382
      %v3384 = vpop.f32.mrb[0].mxu0
      %v3385 = vpop.f32.mrb[0].mxu0
      %v3386 = vadd.f32 %v3228, %v3385
      %v3387 = vpop.f32.mrb[0].mxu0
      %3388 = vmatprep.mubr.bf16.mxu0 %v3264
      %3389 = vmatmul.mubr.bf16.gmra.mrb[0].mxu0 %v3263
      %v3390 = vpop.f32.mrb[0].mxu0
      %v3391 = vadd.f32 %v3233, %v3390
      %v3392 = vpop.f32.mrb[0].mxu0
      %v3393 = vpop.f32.mrb[0].mxu0
      %v3394 = vadd.f32 %v3238, %v3393
      %v3395 = vpop.f32.mrb[0].mxu0
      %3396 = vdwg.mxu0
      %3397 = vmatprep.subr.bf16.mxu0 0
      %3398 = vmatpush1.bf16.msra.mxu0 %v3321
      %3399 = vmatprep.subr.bf16.mxu0 0
      %3400 = vmatpush1.bf16.msra.mxu0 %v3323
      %3401 = vmatprep.subr.bf16.mxu0 0
      %3402 = vmatpush1.bf16.msra.mxu0 0
      %3403 = vmatprep.subr.bf16.mxu0 0
      %3404 = vmatpush1.bf16.msra.mxu0 0
      %3405 = vmatprep.subr.bf16.mxu0 0
      %3406 = vmatpush1.bf16.msra.mxu0 0
      %3407 = vmatprep.subr.bf16.mxu0 0
      %3408 = vmatpush1.bf16.msra.mxu0 0
      %3409 = vmatprep.subr.bf16.mxu0 0
      %3410 = vmatpush1.bf16.msra.mxu0 0
      %3411 = vmatprep.subr.bf16.mxu0 0
      %3412 = vmatpush1.bf16.msra.mxu0 0
      %3413 = vmatprep.subr.bf16.mxu0 0
      %3414 = vmatpush1.bf16.msra.mxu0 0
      %3415 = vmatprep.subr.bf16.mxu0 0
      %3416 = vmatpush1.bf16.msra.mxu0 0
      %3417 = vmatprep.subr.bf16.mxu0 0
      %3418 = vmatpush1.bf16.msra.mxu0 0
      %3419 = vmatprep.subr.bf16.mxu0 0
      %3420 = vmatpush1.bf16.msra.mxu0 0
      %3421 = vmatprep.subr.bf16.mxu0 0
      %3422 = vmatpush1.bf16.msra.mxu0 0
      %3423 = vmatprep.subr.bf16.mxu0 0
      %3424 = vmatpush1.bf16.msra.mxu0 0
      %3425 = vmatprep.subr.bf16.mxu0 0
      %3426 = vmatpush1.bf16.msra.mxu0 0
      %3427 = vmatprep.subr.bf16.mxu0 0
      %3428 = vmatpush1.bf16.msra.mxu0 0
      %3429 = vmatprep.mubr.bf16.mxu0 0
      %3430 = vmatmul.mubr.bf16.gmra.mrb[0].mxu0 %v3343
      %v3431 = vpop.f32.mrb[0].mxu0
      %v3432 = vadd.f32 %v3383, %v3431
      %v3433 = vpop.f32.mrb[0].mxu0
      %v3434 = vpop.f32.mrb[0].mxu0
      %v3435 = vadd.f32 %v3386, %v3434
      %v3436 = vpop.f32.mrb[0].mxu0
      %3437 = vmatprep.mubr.bf16.mxu0 0
      %3438 = vmatmul.mubr.bf16.gmra.mrb[0].mxu0 %v3346
      %v3439 = vpop.f32.mrb[0].mxu0
      %v3440 = vadd.f32 %v3391, %v3439
      %v3441 = vpop.f32.mrb[0].mxu0
      %v3442 = vpop.f32.mrb[0].mxu0
      %v3443 = vadd.f32 %v3394, %v3442
      %v3444 = vpop.f32.mrb[0].mxu0
      %3445 = vdwg.mxu0
      %v3446 = vmax.f32 %v3432, 0.0
      %v3447 = vmax.f32 %v3435, 0.0
      %v3448 = vmax.f32 %v3440, 0.0
      %v3449 = vmax.f32 %v3443, 0.0
      %3450 = vrot.lane.b32.xlu0 %v3446, 64
      %v3451 = vpop.permute.xlu0 %3450
      %v3452 = vsel %vm2311, %v3451, %v3446
      %3453 = vrot.lane.b32.xlu0 %v3447, 64
      %v3454 = vpop.permute.xlu0 %3453
      %v3455 = vsel %vm2311, %v3454, %v3447
      %3456 = vrot.lane.b32.xlu0 %v3448, 64
      %v3457 = vpop.permute.xlu0 %3456
      %v3458 = vsel %vm2311, %v3457, %v3448
      %3459 = vrot.lane.b32.xlu0 %v3449, 64
      %v3460 = vpop.permute.xlu0 %3459
      %v3461 = vsel %vm2311, %v3460, %v3449
      %3462 = vrot.lane.b32.xlu0 %v3452, 64
      %v3463 = vpop.permute.xlu0 %3462
      %3464 = vrot.lane.b32.xlu0 %v3455, 64
      %v3465 = vpop.permute.xlu0 %3464
      %3466 = vrot.lane.b32.xlu0 %v3458, 64
      %v3467 = vpop.permute.xlu0 %3466
      %3468 = vrot.lane.b32.xlu0 %v3461, 64
      %v3469 = vpop.permute.xlu0 %3468
      %v3470 = vsel %vm2311, %v3463, %v3446
      %v3471 = vsel %vm2311, %v3465, %v3447
      %v3472 = vsel %vm2311, %v3467, %v3448
      %v3473 = vsel %vm2311, %v3469, %v3449
      %v3474 = vmul.f32 %v3470, %v2342
      %v3475 = vmul.f32 %v3471, %v2342
      %v3476 = vmul.f32 %v3472, %v2342
      %v3477 = vmul.f32 %v3473, %v2342
      %v3478 = vmul.f32 %v3470, %v2354
      %v3479 = vmul.f32 %v3471, %v2354
      %v3480 = vmul.f32 %v3472, %v2354
      %v3481 = vmul.f32 %v3473, %v2354
      %v3482 = vmul.f32 %v3470, %v2366
      %v3483 = vmul.f32 %v3471, %v2366
      %v3484 = vmul.f32 %v3472, %v2366
      %v3485 = vmul.f32 %v3473, %v2366
      %v3486 = vmul.f32 %v3470, %v2378
      %v3487 = vmul.f32 %v3471, %v2378
      %v3488 = vmul.f32 %v3472, %v2378
      %v3489 = vmul.f32 %v3473, %v2378
      %v3490 = vmul.f32 %v3446, %v2387
      %v3491 = vmul.f32 %v3447, %v2387
      %v3492 = vmul.f32 %v3448, %v2387
      %v3493 = vmul.f32 %v3449, %v2387
      %v3494 = vmul.f32 %v3470, %v2398
      %v3495 = vmul.f32 %v3471, %v2398
      %v3496 = vmul.f32 %v3472, %v2398
      %v3497 = vmul.f32 %v3473, %v2398
      %v3498 = vmul.f32 %v3470, %v2410
      %v3499 = vmul.f32 %v3471, %v2410
      %v3500 = vmul.f32 %v3472, %v2410
      %v3501 = vmul.f32 %v3473, %v2410
      %v3502 = vmul.f32 %v3470, %v2422
      %v3503 = vmul.f32 %v3471, %v2422
      %v3504 = vmul.f32 %v3472, %v2422
      %v3505 = vmul.f32 %v3473, %v2422
      %v3506 = vmul.f32 %v3470, %v2434
      %v3507 = vmul.f32 %v3471, %v2434
      %v3508 = vmul.f32 %v3472, %v2434
      %v3509 = vmul.f32 %v3473, %v2434
      %3514 = vrot.lane.b32.xlu0 %v3478, 127
      %v3515 = vpop.permute.xlu0 %3514
      %3516 = vrot.lane.b32.xlu0 %v3479, 127
      %v3517 = vpop.permute.xlu0 %3516
      %3518 = vrot.lane.b32.xlu0 %v3480, 127
      %v3519 = vpop.permute.xlu0 %3518
      %3520 = vrot.lane.b32.xlu0 %v3481, 127
      %v3521 = vpop.permute.xlu0 %3520
      %3530 = vrot.lane.b32.xlu0 %v3482, 126
      %v3531 = vpop.permute.xlu0 %3530
      %3532 = vrot.lane.b32.xlu0 %v3483, 126
      %v3533 = vpop.permute.xlu0 %3532
      %3534 = vrot.lane.b32.xlu0 %v3484, 126
      %v3535 = vpop.permute.xlu0 %3534
      %3536 = vrot.lane.b32.xlu0 %v3485, 126
      %v3537 = vpop.permute.xlu0 %3536
      %3546 = vrot.lane.b32.xlu0 %v3486, 120
      %v3547 = vpop.permute.xlu0 %3546
      %3548 = vrot.lane.b32.xlu0 %v3487, 120
      %v3549 = vpop.permute.xlu0 %3548
      %3550 = vrot.lane.b32.xlu0 %v3488, 120
      %v3551 = vpop.permute.xlu0 %3550
      %3552 = vrot.lane.b32.xlu0 %v3489, 120
      %v3553 = vpop.permute.xlu0 %3552
      %3562 = vrot.lane.b32.xlu0 %v3490, 55
      %v3563 = vpop.permute.xlu0 %3562
      %3564 = vrot.lane.b32.xlu0 %v3491, 55
      %v3565 = vpop.permute.xlu0 %3564
      %3566 = vrot.lane.b32.xlu0 %v3492, 55
      %v3567 = vpop.permute.xlu0 %3566
      %3568 = vrot.lane.b32.xlu0 %v3493, 55
      %v3569 = vpop.permute.xlu0 %3568
      %3578 = vrot.lane.b32.xlu0 %v3494, 54
      %v3579 = vpop.permute.xlu0 %3578
      %3580 = vrot.lane.b32.xlu0 %v3495, 54
      %v3581 = vpop.permute.xlu0 %3580
      %3582 = vrot.lane.b32.xlu0 %v3496, 54
      %v3583 = vpop.permute.xlu0 %3582
      %3584 = vrot.lane.b32.xlu0 %v3497, 54
      %v3585 = vpop.permute.xlu0 %3584
      %3594 = vrot.lane.b32.xlu0 %v3498, 48
      %v3595 = vpop.permute.xlu0 %3594
      %3596 = vrot.lane.b32.xlu0 %v3499, 48
      %v3597 = vpop.permute.xlu0 %3596
      %3598 = vrot.lane.b32.xlu0 %v3500, 48
      %v3599 = vpop.permute.xlu0 %3598
      %3600 = vrot.lane.b32.xlu0 %v3501, 48
      %v3601 = vpop.permute.xlu0 %3600
      %3610 = vrot.lane.b32.xlu0 %v3502, 47
      %v3611 = vpop.permute.xlu0 %3610
      %3612 = vrot.lane.b32.xlu0 %v3503, 47
      %v3613 = vpop.permute.xlu0 %3612
      %3614 = vrot.lane.b32.xlu0 %v3504, 47
      %v3615 = vpop.permute.xlu0 %3614
      %3616 = vrot.lane.b32.xlu0 %v3505, 47
      %v3617 = vpop.permute.xlu0 %3616
      %3626 = vrot.lane.b32.xlu0 %v3506, 46
      %v3627 = vpop.permute.xlu0 %3626
      %3628 = vrot.lane.b32.xlu0 %v3507, 46
      %v3629 = vpop.permute.xlu0 %3628
      %3630 = vrot.lane.b32.xlu0 %v3508, 46
      %v3631 = vpop.permute.xlu0 %3630
      %3632 = vrot.lane.b32.xlu0 %v3509, 46
      %v3633 = vpop.permute.xlu0 %3632
      %v3638 = vpack.c.bf16 %v3475, %v3474
      %v3639 = vpack.c.bf16 %v3477, %v3476
      %v3640 = vpack.c.bf16 %v3517, %v3515
      %v3641 = vpack.c.bf16 %v3521, %v3519
      %v3642 = vpack.c.bf16 %v3533, %v3531
      %v3643 = vpack.c.bf16 %v3537, %v3535
      %v3644 = vpack.c.bf16 %v3549, %v3547
      %v3645 = vpack.c.bf16 %v3553, %v3551
      %v3646 = vpack.c.bf16 %v3565, %v3563
      %v3647 = vpack.c.bf16 %v3569, %v3567
      %v3648 = vpack.c.bf16 %v3581, %v3579
      %v3649 = vpack.c.bf16 %v3585, %v3583
      %v3650 = vpack.c.bf16 %v3597, %v3595
      %v3651 = vpack.c.bf16 %v3601, %v3599
      %v3652 = vpack.c.bf16 %v3613, %v3611
      %v3653 = vpack.c.bf16 %v3617, %v3615
      %v3654 = vpack.c.bf16 %v3629, %v3627
      %v3655 = vpack.c.bf16 %v3633, %v3631
      %v3656 = vld [vmem:[%s22] sm:$0xff]
      %v3657 = vld [vmem:[%s22 + $0x8] sm:$0xf]
      %v3658 = vld [vmem:[%s22 + $0xc] sm:$0xff]
      %v3659 = vld [vmem:[%s22 + $0x14] sm:$0xf]
      %v3660 = vld [vmem:[%s22 + $0x18] sm:$0xff]
      %v3661 = vld [vmem:[%s22 + $0x20] sm:$0xf]
      %v3662 = vld [vmem:[%s22 + $0x24] sm:$0xff]
      %v3663 = vld [vmem:[%s22 + $0x2c] sm:$0xf]
      %v3664 = vld [vmem:[%s23] sm:$0xff]
      %v3665 = vld [vmem:[%s23 + $0x8] sm:$0xff]
      %v3666 = vld [vmem:[%s23 + $0x10] sm:$0xff]
      %v3667 = vld [vmem:[%s23 + $0x18] sm:$0xff]
      %3669 = vset.pattern.permute.xlu0 0
      %3670 = vperm.xlu0 %3669, %v3664
      %v3671 = vpop.permute.xlu0 %3670
      %3674 = vset.pattern.permute.xlu0 0
      %3675 = vperm.xlu0 %3674, %v3665
      %v3676 = vpop.permute.xlu0 %3675
      %3679 = vset.pattern.permute.xlu0 0
      %3680 = vperm.xlu0 %3679, %v3666
      %v3681 = vpop.permute.xlu0 %3680
      %3684 = vset.pattern.permute.xlu0 0
      %3685 = vperm.xlu0 %3684, %v3667
      %v3686 = vpop.permute.xlu0 %3685
      %v3696 = vunpack.c.l.b16 %v3656
      %v3697 = vunpack.c.h.b16 %v3656
      %v3698 = vunpack.c.l.b16 %v3657
      %v3699 = vunpack.c.l.b16 %v3658
      %v3700 = vunpack.c.h.b16 %v3658
      %v3701 = vunpack.c.l.b16 %v3659
      %v3702 = vunpack.c.l.b16 %v3660
      %v3703 = vunpack.c.h.b16 %v3660
      %v3704 = vunpack.c.l.b16 %v3661
      %v3705 = vunpack.c.l.b16 %v3662
      %v3706 = vunpack.c.h.b16 %v3662
      %v3707 = vunpack.c.l.b16 %v3663
      %v3708 = vpack.c.b16 %v3699, %v3696
      %v3709 = vpack.c.b16 %v3700, %v3697
      %v3710 = vpack.c.b16 %v3701, %v3698
      %v3711 = vpack.c.b16 %v3705, %v3702
      %v3712 = vpack.c.b16 %v3706, %v3703
      %v3713 = vpack.c.b16 %v3707, %v3704
      %3736 = vrot.lane.b32.xlu0 %v3638, 73
      %v3737 = vpop.permute.xlu0 %3736
      %3738 = vrot.lane.b32.xlu0 %v3639, 73
      %v3739 = vpop.permute.xlu0 %3738
      %3740 = vrot.lane.b32.xlu0 %v3640, 73
      %v3741 = vpop.permute.xlu0 %3740
      %3742 = vrot.lane.b32.xlu0 %v3641, 73
      %v3743 = vpop.permute.xlu0 %3742
      %3744 = vrot.lane.b32.xlu0 %v3642, 73
      %v3745 = vpop.permute.xlu0 %3744
      %3746 = vrot.lane.b32.xlu0 %v3643, 73
      %v3747 = vpop.permute.xlu0 %3746
      %3748 = vrot.lane.b32.xlu0 %v3644, 73
      %v3749 = vpop.permute.xlu0 %3748
      %3750 = vrot.lane.b32.xlu0 %v3645, 73
      %v3751 = vpop.permute.xlu0 %3750
      %3752 = vrot.lane.b32.xlu0 %v3646, 73
      %v3753 = vpop.permute.xlu0 %3752
      %3754 = vrot.lane.b32.xlu0 %v3647, 73
      %v3755 = vpop.permute.xlu0 %3754
      %3756 = vrot.lane.b32.xlu0 %v3648, 73
      %v3757 = vpop.permute.xlu0 %3756
      %3758 = vrot.lane.b32.xlu0 %v3649, 73
      %v3759 = vpop.permute.xlu0 %3758
      %3760 = vrot.lane.b32.xlu0 %v3650, 73
      %v3761 = vpop.permute.xlu0 %3760
      %3762 = vrot.lane.b32.xlu0 %v3651, 73
      %v3763 = vpop.permute.xlu0 %3762
      %3764 = vrot.lane.b32.xlu0 %v3652, 73
      %v3765 = vpop.permute.xlu0 %3764
      %3766 = vrot.lane.b32.xlu0 %v3653, 73
      %v3767 = vpop.permute.xlu0 %3766
      %3768 = vrot.lane.b32.xlu0 %v3654, 73
      %v3769 = vpop.permute.xlu0 %3768
      %3770 = vrot.lane.b32.xlu0 %v3655, 73
      %v3771 = vpop.permute.xlu0 %3770
      %v3791 = vsel %vm2720, %v3710, 0
      %v3794 = vsel %vm2720, %v3713, 0
      %3796 = vmatprep.subr.bf16.mxu0 0
      %3797 = vmatpush1.bf16.msra.mxu0 %v3737
      %3798 = vmatprep.subr.bf16.mxu0 0
      %3799 = vmatpush1.bf16.msra.mxu0 %v3739
      %3800 = vmatprep.subr.bf16.mxu0 0
      %3801 = vmatpush1.bf16.msra.mxu0 %v3741
      %3802 = vmatprep.subr.bf16.mxu0 0
      %3803 = vmatpush1.bf16.msra.mxu0 %v3743
      %3804 = vmatprep.subr.bf16.mxu0 0
      %3805 = vmatpush1.bf16.msra.mxu0 %v3745
      %3806 = vmatprep.subr.bf16.mxu0 0
      %3807 = vmatpush1.bf16.msra.mxu0 %v3747
      %3808 = vmatprep.subr.bf16.mxu0 0
      %3809 = vmatpush1.bf16.msra.mxu0 %v3749
      %3810 = vmatprep.subr.bf16.mxu0 0
      %3811 = vmatpush1.bf16.msra.mxu0 %v3751
      %3812 = vmatprep.subr.bf16.mxu0 0
      %3813 = vmatpush1.bf16.msra.mxu0 %v3753
      %3814 = vmatprep.subr.bf16.mxu0 0
      %3815 = vmatpush1.bf16.msra.mxu0 %v3755
      %3816 = vmatprep.subr.bf16.mxu0 0
      %3817 = vmatpush1.bf16.msra.mxu0 %v3757
      %3818 = vmatprep.subr.bf16.mxu0 0
      %3819 = vmatpush1.bf16.msra.mxu0 %v3759
      %3820 = vmatprep.subr.bf16.mxu0 0
      %3821 = vmatpush1.bf16.msra.mxu0 %v3761
      %3822 = vmatprep.subr.bf16.mxu0 0
      %3823 = vmatpush1.bf16.msra.mxu0 %v3763
      %3824 = vmatprep.subr.bf16.mxu0 0
      %3825 = vmatpush1.bf16.msra.mxu0 %v3765
      %3826 = vmatprep.subr.bf16.mxu0 0
      %3827 = vmatpush1.bf16.msra.mxu0 %v3767
      %3828 = vmatprep.mubr.bf16.mxu0 %v3709
      %3829 = vmatmul.mubr.bf16.gmra.mrb[0].mxu0 %v3708
      %v3830 = vpop.f32.mrb[0].mxu0
      %v3831 = vadd.f32 %v3671, %v3830
      %v3832 = vpop.f32.mrb[0].mxu0
      %v3833 = vpop.f32.mrb[0].mxu0
      %v3834 = vadd.f32 %v3676, %v3833
      %v3835 = vpop.f32.mrb[0].mxu0
      %3836 = vmatprep.mubr.bf16.mxu0 %v3712
      %3837 = vmatmul.mubr.bf16.gmra.mrb[0].mxu0 %v3711
      %v3838 = vpop.f32.mrb[0].mxu0
      %v3839 = vadd.f32 %v3681, %v3838
      %v3840 = vpop.f32.mrb[0].mxu0
      %v3841 = vpop.f32.mrb[0].mxu0
      %v3842 = vadd.f32 %v3686, %v3841
      %v3843 = vpop.f32.mrb[0].mxu0
      %3844 = vdwg.mxu0
      %3845 = vmatprep.subr.bf16.mxu0 0
      %3846 = vmatpush1.bf16.msra.mxu0 %v3769
      %3847 = vmatprep.subr.bf16.mxu0 0
      %3848 = vmatpush1.bf16.msra.mxu0 %v3771
      %3849 = vmatprep.subr.bf16.mxu0 0
      %3850 = vmatpush1.bf16.msra.mxu0 0
      %3851 = vmatprep.subr.bf16.mxu0 0
      %3852 = vmatpush1.bf16.msra.mxu0 0
      %3853 = vmatprep.subr.bf16.mxu0 0
      %3854 = vmatpush1.bf16.msra.mxu0 0
      %3855 = vmatprep.subr.bf16.mxu0 0
      %3856 = vmatpush1.bf16.msra.mxu0 0
      %3857 = vmatprep.subr.bf16.mxu0 0
      %3858 = vmatpush1.bf16.msra.mxu0 0
      %3859 = vmatprep.subr.bf16.mxu0 0
      %3860 = vmatpush1.bf16.msra.mxu0 0
      %3861 = vmatprep.subr.bf16.mxu0 0
      %3862 = vmatpush1.bf16.msra.mxu0 0
      %3863 = vmatprep.subr.bf16.mxu0 0
      %3864 = vmatpush1.bf16.msra.mxu0 0
      %3865 = vmatprep.subr.bf16.mxu0 0
      %3866 = vmatpush1.bf16.msra.mxu0 0
      %3867 = vmatprep.subr.bf16.mxu0 0
      %3868 = vmatpush1.bf16.msra.mxu0 0
      %3869 = vmatprep.subr.bf16.mxu0 0
      %3870 = vmatpush1.bf16.msra.mxu0 0
      %3871 = vmatprep.subr.bf16.mxu0 0
      %3872 = vmatpush1.bf16.msra.mxu0 0
      %3873 = vmatprep.subr.bf16.mxu0 0
      %3874 = vmatpush1.bf16.msra.mxu0 0
      %3875 = vmatprep.subr.bf16.mxu0 0
      %3876 = vmatpush1.bf16.msra.mxu0 0
      %3877 = vmatprep.mubr.bf16.mxu0 0
      %3878 = vmatmul.mubr.bf16.gmra.mrb[0].mxu0 %v3791
      %v3879 = vpop.f32.mrb[0].mxu0
      %v3880 = vadd.f32 %v3831, %v3879
      %v3881 = vpop.f32.mrb[0].mxu0
      %v3882 = vpop.f32.mrb[0].mxu0
      %v3883 = vadd.f32 %v3834, %v3882
      %v3884 = vpop.f32.mrb[0].mxu0
      %3885 = vmatprep.mubr.bf16.mxu0 0
      %3886 = vmatmul.mubr.bf16.gmra.mrb[0].mxu0 %v3794
      %v3887 = vpop.f32.mrb[0].mxu0
      %v3888 = vadd.f32 %v3839, %v3887
      %v3889 = vpop.f32.mrb[0].mxu0
      %v3890 = vpop.f32.mrb[0].mxu0
      %v3891 = vadd.f32 %v3842, %v3890
      %v3892 = vpop.f32.mrb[0].mxu0
      %3893 = vdwg.mxu0
      %v3894 = vadd.f32 %v3880, %v2998
      %v3895 = vadd.f32 %v3883, %v2999
      %v3896 = vadd.f32 %v3888, %v3000
      %v3897 = vadd.f32 %v3891, %v3001
      %v3898 = vmax.f32 %v3894, 0.0
      %v3899 = vmax.f32 %v3895, 0.0
      %v3900 = vmax.f32 %v3896, 0.0
      %v3901 = vmax.f32 %v3897, 0.0
      %v3902 = vld [vmem:[%s24] sm:$0x3]
      %v3904 = vsel %vm2720, %v3902, 0
      %3906 = vmatprep.subr.mxu0 0.0
      %3907 = vmatpush1.msra.mxu0 %v3898
      %3908 = vmatprep.subr.mxu0 0.0
      %3909 = vmatpush1.msra.mxu0 %v3899
      %3910 = vmatprep.subr.mxu0 0.0
      %3911 = vmatpush1.msra.mxu0 %v3900
      %3912 = vmatprep.subr.mxu0 0.0
      %3913 = vmatpush1.msra.mxu0 %v3901
      %3914 = vmatprep.subr.mxu0 0.0
      %3915 = vmatpush1.msra.mxu0 0.0
      %3916 = vmatprep.subr.mxu0 0.0
      %3917 = vmatpush1.msra.mxu0 0.0
      %3918 = vmatprep.subr.mxu0 0.0
      %3919 = vmatpush1.msra.mxu0 0.0
      %3920 = vmatprep.subr.mxu0 0.0
      %3921 = vmatpush1.msra.mxu0 0.0
      %3922 = vmatprep.subr.mxu0 0.0
      %3923 = vmatpush1.msra.mxu0 0.0
      %3924 = vmatprep.subr.mxu0 0.0
      %3925 = vmatpush1.msra.mxu0 0.0
      %3926 = vmatprep.subr.mxu0 0.0
      %3927 = vmatpush1.msra.mxu0 0.0
      %3928 = vmatprep.subr.mxu0 0.0
      %3929 = vmatpush1.msra.mxu0 0.0
      %3930 = vmatprep.subr.mxu0 0.0
      %3931 = vmatpush1.msra.mxu0 0.0
      %3932 = vmatprep.subr.mxu0 0.0
      %3933 = vmatpush1.msra.mxu0 0.0
      %3934 = vmatprep.subr.mxu0 0.0
      %3935 = vmatpush1.msra.mxu0 0.0
      %3936 = vmatprep.subr.mxu0 0.0
      %3937 = vmatpush1.msra.mxu0 0.0
      %3938 = vmatprep.subr.mxu0 0.0
      %3939 = vmatpush1.msra.mxu0 0.0
      %3940 = vmatprep.subr.mxu0 0.0
      %3941 = vmatpush1.msra.mxu0 0.0
      %3942 = vmatprep.subr.mxu0 0.0
      %3943 = vmatpush1.msra.mxu0 0.0
      %3944 = vmatprep.subr.mxu0 0.0
      %3945 = vmatpush1.msra.mxu0 0.0
      %3946 = vmatprep.subr.mxu0 0.0
      %3947 = vmatpush1.msra.mxu0 0.0
      %3948 = vmatprep.subr.mxu0 0.0
      %3949 = vmatpush1.msra.mxu0 0.0
      %3950 = vmatprep.subr.mxu0 0.0
      %3951 = vmatpush1.msra.mxu0 0.0
      %3952 = vmatprep.subr.mxu0 0.0
      %3953 = vmatpush1.msra.mxu0 0.0
      %3954 = vmatprep.subr.mxu0 0.0
      %3955 = vmatpush1.msra.mxu0 0.0
      %3956 = vmatprep.subr.mxu0 0.0
      %3957 = vmatpush1.msra.mxu0 0.0
      %3958 = vmatprep.subr.mxu0 0.0
      %3959 = vmatpush1.msra.mxu0 0.0
      %3960 = vmatprep.subr.mxu0 0.0
      %3961 = vmatpush1.msra.mxu0 0.0
      %3962 = vmatprep.subr.mxu0 0.0
      %3963 = vmatpush1.msra.mxu0 0.0
      %3964 = vmatprep.subr.mxu0 0.0
      %3965 = vmatpush1.msra.mxu0 0.0
      %3966 = vmatprep.subr.mxu0 0.0
      %3967 = vmatpush1.msra.mxu0 0.0
      %3968 = vmatprep.subr.mxu0 0.0
      %3969 = vmatpush1.msra.mxu0 0.0
      %3970 = vmatprep.mubr.f32.mxu0 0.0
      %3971 = vmatmul.mubr.f32.gmra.mrb[0].mxu0 %v3904
      %v3972 = vpop.f32.mrb[0].mxu0
      %v3973 = vadd.f32 0.0, %v3972
      %v3974 = vpop.f32.mrb[0].mxu0
      %3975 = vdwg.mxu0
      %vm3976 = vcmask 517120
      %v3977 = vsel %vm3976, %v3973, 0.0
      %3978 = vadd.xlane.f32.xlu0 %v3977
      %v3979 = vpop.xlane.xlu0 %3978
      %v3980 = vrcp.pop 64.0
      %v3981 = vmul.f32 %v3979, %v3980
      %v3982 = vld [vmem:[%s25] sm:$0x3]
      %v3983 = vadd.f32 %v3981, %v3982
      %3984 = vst [vmem:[%s789] sm:$0xff] 0.0
      %3986 = vset.pattern.permute.xlu0 0
      %3987 = vperm.xlu0 %3986, %v3983
      %v3988 = vpop.permute.xlu0 %3987
      %3990 = vst [vmem:[%s789] sm:$0x3] %v3988
      %p3991 = scmp.lt.s32.totalorder %s37, 1
      %s3992 = scalar_select %p3991, %s37, 1
      %s3993 = smul.addr %s3992, 8
      %s3994 = scalar_lea.vmem %s26, %s3993
      // Predicated region
      $region125: #{medium_resnet_forward.1} parent=123 // pred_check
        %p3995 = pneg %p606
      $region126: #{medium_resnet_forward.1} parent=123 // pred_check_branch
        %3997 = sbr.rel (%p3995) target = $region128
      $region127: #{medium_resnet_forward.1} parent=123 // pred_region
        _
      $region128: #{medium_resnet_forward.1} parent=123 // pred_fallthru
        _
    $region124: #{medium_resnet_forward.1} parent=5 // pred_fallthru
      _
    %p3998 = scmp.le.s32.totalorder 2, %s32
    // Predicated region
    $region129: #{medium_resnet_forward.1} parent=5 // pred_check
      %p3999 = pneg %p3998
    $region130: #{medium_resnet_forward.1} parent=5 // pred_check_branch
      %4001 = sbr.rel (%p3999) target = $region132
    $region131: #{medium_resnet_forward.1} parent=5 // pred_region
      %s4002 = ssub.s32 %s32, 2
      // Predicated region
      $region133: #{medium_resnet_forward.1} parent=131 // pred_check
        %p4003 = pneg %p612
      $region134: #{medium_resnet_forward.1} parent=131 // pred_check_branch
        %4005 = sbr.rel (%p4003) target = $region136
      $region135: #{medium_resnet_forward.1} parent=131 // pred_region
        %p4006 = scmp.lt.s32.totalorder %s38, 1
        %s4007 = scalar_select %p4006, %s38, 1
        %s4008 = smul.addr %s4007, 8
        %s4009 = scalar_lea.vmem %s26, %s4008
      $region136: #{medium_resnet_forward.1} parent=131 // pred_fallthru
        _
    $region132: #{medium_resnet_forward.1} parent=5 // pred_fallthru
      _
  $region6: #{medium_resnet_forward.1} parent=0 // loop_footer
    %s36 = sadd.s32 1, %s32
  $region7: #{medium_resnet_forward.1} parent=0 // loop_footer_branch
    %31 = sbr.rel target = $region3
  $region8: #{medium_resnet_forward.1} parent=0 // loop_exit
    _

</llo_original>
